<compile_context>
chip_gen: v7x
topology: tpu7x:2x2x1
jax: 0.10.0
libtpu: 0.0.40
codegen_flags: <defaults>
</compile_context>

<pallas_src>
import jax
import jax.numpy as jnp
from jax.experimental import pallas as pl
from jax.experimental.pallas import tpu as pltpu


def _sigmoid(x):
    # Exact identity: sigmoid(x) = 0.5 * tanh(0.5 x) + 0.5  (single native EUP op).
    return 0.5 * jnp.tanh(0.5 * x) + 0.5


# ------------------------------ fused model kernel ------------------------------
def make_rnn_kernel(num_layers, T, Bp, H, unroll=8):
    """Fused kernel: num_layers bidirectional LSTM layers + Linear + Sigmoid.

    Layouts (per layer):
      gate columns (width 8H), direction-major: [fwd: i f o g | bwd: i f o g]
      recurrent weight whh: (H, 8H) bf16, cols 0:4H = W_hh_fwd^T, cols 4H:8H = W_hh_bwd^T
      carries h, c: (2*Bp, H) f32, rows 0:Bp = fwd state, rows Bp:2Bp = bwd state
      hbuf (T*Bp, 2H): row s = [h_fwd(time s) | h_bwd(time T-1-s)]
    """
    H2, H3, H4, H8 = 2 * H, 3 * H, 4 * H, 8 * H
    unr = max(1, min(unroll, T))

    def kernel(*refs):
        pos = 0
        x_ref = refs[pos]; pos += 1
        lrefs = []
        for l in range(num_layers):
            n = 3 if l == 0 else 4
            lrefs.append(refs[pos:pos + n]); pos += n
        wdt_ref, wdb_ref, bd_ref = refs[pos:pos + 3]; pos += 3
        out_ref = refs[pos]; pos += 1
        gx_ref = refs[pos]; pos += 1
        gtmp_ref = None
        if num_layers > 1:
            gtmp_ref = refs[pos]; pos += 1
        hbuf_ref = refs[pos]; ybuf_ref = refs[pos + 1]

        for l in range(num_layers):
            # ---- hoisted input projection (dense, off the recurrence chain) ----
            if l == 0:
                w_in_ref, b_ref, whh_ref = lrefs[0]
                src = x_ref[...].astype(jnp.bfloat16)
                gx_ref[...] = (jnp.dot(src, w_in_ref[...],
                                       preferred_element_type=jnp.float32)
                               + b_ref[...])
            else:
                wa_ref, wb_ref, b_ref, whh_ref = lrefs[l]
                hall = hbuf_ref[...]                               # (T*Bp, 2H)
                gx_ref[...] = (jnp.dot(hall[:, 0:H].astype(jnp.bfloat16), wa_ref[...],
                                       preferred_element_type=jnp.float32)
                               + b_ref[...])                       # h_f(t) part @ time t
                gtmp_ref[...] = jnp.dot(hall[:, H:H2].astype(jnp.bfloat16), wb_ref[...],
                                        preferred_element_type=jnp.float32)
                # fold the backward-half contribution (it lives at the reversed row)
                # into gx -- bulk pass, iterations independent, full-width row adds.
                def fold(t, carry):
                    row = pl.multiple_of(t * Bp, Bp)
                    rrow = pl.multiple_of((T - 1 - t) * Bp, Bp)
                    gx_ref[pl.ds(row, Bp), :] = (gx_ref[pl.ds(row, Bp), :]
                                                 + gtmp_ref[pl.ds(rrow, Bp), :])
                    return carry
                jax.lax.fori_loop(0, T, fold, 0, unroll=unr)

            whh = whh_ref[...]                                     # (H, 8H) bf16, hoisted

            # ---- serial recurrence over time (both directions per step) ----
            def step(s, carry, whh=whh):
                h_st, c_st = carry                                 # (2Bp, H) f32
                row = pl.multiple_of(s * Bp, Bp)                   # fwd time index s
                rrow = pl.multiple_of((T - 1 - s) * Bp, Bp)        # bwd time index
                hh = jnp.dot(h_st.astype(jnp.bfloat16), whh,
                             preferred_element_type=jnp.float32)   # (2Bp, 8H)
                g_f = gx_ref[pl.ds(row, Bp), pl.ds(0, H4)] + hh[0:Bp, 0:H4]
                g_b = gx_ref[pl.ds(rrow, Bp), pl.ds(H4, H4)] + hh[Bp:2 * Bp, H4:H8]
                a = jnp.concatenate([g_f, g_b], axis=0)            # (2Bp, 4H): [i f o g]
                ifo = _sigmoid(a[:, 0:H3])                         # i,f,o in one EUP pass
                g_gate = jnp.tanh(a[:, H3:H4])
                c_new = ifo[:, H:H2] * c_st + ifo[:, 0:H] * g_gate
                h_new = ifo[:, H2:H3] * jnp.tanh(c_new)
                # single store per step: [h_fwd(s) | h_bwd(T-1-s)] at forward row s
                hbuf_ref[pl.ds(row, Bp), :] = jnp.concatenate(
                    [h_new[0:Bp, :], h_new[Bp:2 * Bp, :]], axis=1)
                return h_new, c_new

            z0 = jnp.zeros((2 * Bp, H), jnp.float32)
            jax.lax.fori_loop(0, T, step, (z0, z0), unroll=unr)

        # ---- fused final Linear + Sigmoid (lane-dense padded output) ----
        hall = hbuf_ref[...]
        out_ref[...] = jnp.dot(hall[:, 0:H], wdt_ref[...],
                               preferred_element_type=jnp.float32)        # h_f(t) part
        ybuf_ref[...] = jnp.dot(hall[:, H:H2], wdb_ref[...],
                                preferred_element_type=jnp.float32)       # h_b(T-1-s) part
        bd = bd_ref[...]

        def finish(t, carry):
            row = pl.multiple_of(t * Bp, Bp)
            rrow = pl.multiple_of((T - 1 - t) * Bp, Bp)
            out_ref[pl.ds(row, Bp), :] = _sigmoid(
                out_ref[pl.ds(row, Bp), :] + ybuf_ref[pl.ds(rrow, Bp), :] + bd)
            return carry
        jax.lax.fori_loop(0, T, finish, 0, unroll=unr)

    return kernel


# ----------------------------------- parameters -----------------------------------
def _xavier_normal(key, shape_torch):
    """torch.nn.init.xavier_normal_ for a 2-D param shaped (fan_out, fan_in)."""
    fan_out, fan_in = shape_torch
    std = (2.0 / (fan_in + fan_out)) ** 0.5
    return std * jax.random.normal(key, shape_torch, dtype=jnp.float32)


def init_rnn_model_params(key, hidden_size, num_layers, stft_features):
    """Mirror RNN_model.__init__ + initialize_weights (Xavier weights, zero biases)."""
    H, F = hidden_size, stft_features
    layers = []
    for layer in range(num_layers):
        in_size = F if layer == 0 else 2 * H
        p = {}
        for d in ("f", "b"):
            key, k1, k2 = jax.random.split(key, 3)
            p[f"w_ih_{d}"] = _xavier_normal(k1, (4 * H, in_size))
            p[f"w_hh_{d}"] = _xavier_normal(k2, (4 * H, H))
            p[f"b_ih_{d}"] = jnp.zeros((4 * H,), jnp.float32)
            p[f"b_hh_{d}"] = jnp.zeros((4 * H,), jnp.float32)
        layers.append(p)
    key, kd = jax.random.split(key)
    dnn_w = _xavier_normal(kd, (F, 2 * H))
    dnn_b = jnp.zeros((F,), jnp.float32)
    return {"lstm": layers, "dnn_w": dnn_w, "dnn_b": dnn_b}


# torch gate chunk order is (i, f, g, o); packed block order is (i, f, o, g)
_GATE_PERM = (0, 1, 3, 2)


def pack_params(params, hidden_size, stft_features):
    """Repack PyTorch-layout params into the fused-kernel layouts (bf16 LSTM weights)."""
    H, F = hidden_size, stft_features
    H2, H4, H8 = 2 * H, 4 * H, 8 * H
    Fp = max(128, ((F + 127) // 128) * 128)          # lane-dense output width

    packed_layers = []
    for l, p in enumerate(params["lstm"]):
        in_l = p["w_ih_f"].shape[1]
        whh = jnp.zeros((H, H8), jnp.float32)
        bias = jnp.zeros((1, H8), jnp.float32)
        if l == 0:
            w0 = jnp.zeros((in_l, H8), jnp.float32)
        else:
            wa = jnp.zeros((H, H8), jnp.float32)     # multiplies fwd half of input
            wb = jnp.zeros((H, H8), jnp.float32)     # multiplies bwd half of input
        for di, d in enumerate(("f", "b")):
            base = di * H4
            for q in range(4):
                c0 = base + _GATE_PERM[q] * H
                rows = slice(q * H, (q + 1) * H)
                whh = whh.at[:, c0:c0 + H].set(p[f"w_hh_{d}"][rows, :].T)
                bias = bias.at[0, c0:c0 + H].set(
                    p[f"b_ih_{d}"][rows] + p[f"b_hh_{d}"][rows])
                if l == 0:
                    w0 = w0.at[:, c0:c0 + H].set(p[f"w_ih_{d}"][rows, :].T)
                else:
                    wa = wa.at[:, c0:c0 + H].set(p[f"w_ih_{d}"][rows, 0:H].T)
                    wb = wb.at[:, c0:c0 + H].set(p[f"w_ih_{d}"][rows, H:H2].T)
        bf = lambda a: a.astype(jnp.bfloat16)
        if l == 0:
            packed_layers.append((bf(w0), bias, bf(whh)))
        else:
            packed_layers.append((bf(wa), bf(wb), bias, bf(whh)))

    wdt = jnp.zeros((H, Fp), jnp.float32).at[:, :F].set(params["dnn_w"][:, 0:H].T)
    wdb = jnp.zeros((H, Fp), jnp.float32).at[:, :F].set(params["dnn_w"][:, H:2 * H].T)
    bd = jnp.zeros((1, Fp), jnp.float32).at[0, :F].set(params["dnn_b"])
    return {"layers": tuple(packed_layers), "wdt": wdt, "wdb": wdb, "bd": bd}


# ------------------------------------- forward -------------------------------------
@jax.jit
def rnn_model_forward(x, packed):
    """x: (B, T, F) float32 -> (B, T, F) in (0, 1). One fused pallas_call."""
    layers = packed["layers"]
    wdt, wdb, bd = packed["wdt"], packed["wdb"], packed["bd"]
    B, T, F = x.shape
    num_layers = len(layers)
    H = wdt.shape[0]
    Fp = wdt.shape[1]
    Bp = ((B + 7) // 8) * 8                          # pad batch to full sublane tile

    # time-major, batch-padded, flattened to rows (row = t*Bp + b)
    x_t = jnp.transpose(x, (1, 0, 2))                # (T, B, F)
    x_p = jnp.pad(x_t, ((0, 0), (0, Bp - B), (0, 0)))
    x2d = x_p.reshape(T * Bp, F)

    flat_in = [x2d]
    for lp in layers:
        flat_in.extend(lp)
    flat_in.extend([wdt, wdb, bd])

    scratch = [pltpu.VMEM((T * Bp, 8 * H), jnp.float32)]         # gx: gate x-part
    if num_layers > 1:
        scratch.append(pltpu.VMEM((T * Bp, 8 * H), jnp.float32))  # gtmp: bwd-half proj
    scratch.append(pltpu.VMEM((T * Bp, 2 * H), jnp.float32))      # hbuf: layer outputs
    scratch.append(pltpu.VMEM((T * Bp, Fp), jnp.float32))         # ybuf: dense bwd part

    # VMEM budget from the actual footprint (inputs + output + scratch) with headroom.
    in_bytes = sum(int(a.size) * a.dtype.itemsize for a in flat_in)
    out_bytes = T * Bp * Fp * 4
    scratch_bytes = (T * Bp * 8 * H * 4) * (2 if num_layers > 1 else 1) \
        + T * Bp * 2 * H * 4 + T * Bp * Fp * 4
    footprint = in_bytes + out_bytes + scratch_bytes
    vmem_limit = int(min(96 * 1024 * 1024, max(16 * 1024 * 1024, 2 * footprint)))

    y2d = pl.pallas_call(
        make_rnn_kernel(num_layers, T, Bp, H, unroll=8),
        out_shape=jax.ShapeDtypeStruct((T * Bp, Fp), jnp.float32),
        in_specs=[pl.BlockSpec(memory_space=pltpu.VMEM)] * len(flat_in),
        out_specs=pl.BlockSpec(memory_space=pltpu.VMEM),
        scratch_shapes=scratch,
        compiler_params=pltpu.CompilerParams(vmem_limit_bytes=vmem_limit),
    )(*flat_in)

    y = y2d.reshape(T, Bp, Fp)[:, :B, :F]            # drop batch / lane padding
    return jnp.transpose(y, (1, 0, 2))               # back to (B, T, F)


# --------------------------------- pure-JAX reference ---------------------------------
def rnn_model_reference(x, params):
    """Reference bidirectional LSTM + Linear + Sigmoid (torch semantics), with LSTM
    weights rounded to bf16 to match the kernel's weight storage."""
    def _r(w):
        return w.astype(jnp.bfloat16).astype(jnp.float32)

    B, T, F = x.shape
    z = x
    for p in params["lstm"]:
        H = p["w_hh_f"].shape[1]
        outs = []
        for d, rev in (("f", False), ("b", True)):
            w_ih = _r(p[f"w_ih_{d}"])
            w_hh = _r(p[f"w_hh_{d}"])
            b = p[f"b_ih_{d}"] + p[f"b_hh_{d}"]
            seq = z[:, ::-1, :] if rev else z

            def cell(carry, x_t, w_ih=w_ih, w_hh=w_hh, b=b):
                h, c = carry
                gates = x_t @ w_ih.T + h @ w_hh.T + b
                i, f, g, o = jnp.split(gates, 4, axis=-1)
                i, f, o = jax.nn.sigmoid(i), jax.nn.sigmoid(f), jax.nn.sigmoid(o)
                g = jnp.tanh(g)
                c = f * c + i * g
                h = o * jnp.tanh(c)
                return (h, c), h

            h0 = jnp.zeros((B, H), jnp.float32)
            _, hs = jax.lax.scan(cell, (h0, h0), jnp.swapaxes(seq, 0, 1))
            hs = jnp.swapaxes(hs, 0, 1)              # (B, T, H)
            if rev:
                hs = hs[:, ::-1, :]
            outs.append(hs)
        z = jnp.concatenate(outs, axis=-1)           # (B, T, 2H)
    y = z.reshape(B * T, z.shape[-1]) @ params["dnn_w"].T + params["dnn_b"]
    return jax.nn.sigmoid(y).reshape(B, T, F)


# --------------------------------------- main ---------------------------------------
if __name__ == "__main__":
    hidden_size = 32
    num_layers = 2
    stft_features = 16
    batch, seq_len = 2, 8

    key = jax.random.PRNGKey(0)
    key_x, key_p = jax.random.split(key)
    x = jax.random.normal(key_x, (batch, seq_len, stft_features), dtype=jnp.float32)

    params = init_rnn_model_params(key_p, hidden_size, num_layers, stft_features)
    packed = pack_params(params, hidden_size, stft_features)

    out = jax.block_until_ready(rnn_model_forward(x, packed))

    assert out.shape == (batch, seq_len, stft_features)
    assert bool(jnp.all(jnp.isfinite(out)))
    assert bool(jnp.all((out >= 0.0) & (out <= 1.0)))

    # correctness vs. pure-JAX reference (bf16 weights, f32 activations): loose tolerance
    # only accounts for the kernel's bf16 activation casts before the MXU dots.
    ref = jax.block_until_ready(rnn_model_reference(x, params))
    max_err = float(jnp.max(jnp.abs(out - ref)))
    assert max_err < 5e-2, f"max abs error vs reference: {max_err}"

    print("KERNEL_OK")
</pallas_src>

<mosaic_0001>
module attributes {stable_mosaic.version = 11 : i64} {
  func.func @kernel(%arg0: memref<64x16xf32, #tpu.memory_space<vmem>>, %arg1: memref<16x256xbf16, #tpu.memory_space<vmem>>, %arg2: memref<1x256xf32, #tpu.memory_space<vmem>>, %arg3: memref<32x256xbf16, #tpu.memory_space<vmem>>, %arg4: memref<32x256xbf16, #tpu.memory_space<vmem>>, %arg5: memref<32x256xbf16, #tpu.memory_space<vmem>>, %arg6: memref<1x256xf32, #tpu.memory_space<vmem>>, %arg7: memref<32x256xbf16, #tpu.memory_space<vmem>>, %arg8: memref<32x128xf32, #tpu.memory_space<vmem>>, %arg9: memref<32x128xf32, #tpu.memory_space<vmem>>, %arg10: memref<1x128xf32, #tpu.memory_space<vmem>>, %arg11: memref<64x128xf32, #tpu.memory_space<vmem>>, %arg12: memref<64x256xf32, #tpu.memory_space<vmem>>, %arg13: memref<64x256xf32, #tpu.memory_space<vmem>>, %arg14: memref<64x64xf32, #tpu.memory_space<vmem>>, %arg15: memref<64x128xf32, #tpu.memory_space<vmem>>) attributes {dimension_semantics = [], scalar_prefetch = 0 : i64, scratch_operands = 4 : i64, tpu.core_type = #tpu.core_type<tc>} {
    %c0 = arith.constant 0 : index
    %c0_0 = arith.constant 0 : index
    %0 = vector.load %arg0[%c0, %c0_0] : memref<64x16xf32, #tpu.memory_space<vmem>>, vector<64x16xf32>
    %1 = arith.truncf %0 : vector<64x16xf32> to vector<64x16xbf16>
    %c0_1 = arith.constant 0 : index
    %c0_2 = arith.constant 0 : index
    %2 = vector.load %arg1[%c0_1, %c0_2] : memref<16x256xbf16, #tpu.memory_space<vmem>>, vector<16x256xbf16>
    %cst = arith.constant dense<0.000000e+00> : vector<64x256xf32>
    %3 = tpu.matmul %1, %2, %cst {dimension_numbers = #tpu.dot_dimension_numbers<[1], [0], [0], [1], [0, 0, 1, 1], [], []>} : vector<64x16xbf16>, vector<16x256xbf16>, vector<64x256xf32> -> vector<64x256xf32>
    %c0_3 = arith.constant 0 : index
    %c0_4 = arith.constant 0 : index
    %4 = vector.load %arg2[%c0_3, %c0_4] : memref<1x256xf32, #tpu.memory_space<vmem>>, vector<1x256xf32>
    %5 = vector.broadcast %4 : vector<1x256xf32> to vector<64x256xf32>
    %6 = arith.addf %3, %5 : vector<64x256xf32>
    %c0_5 = arith.constant 0 : index
    %c0_6 = arith.constant 0 : index
    %7 = vector.load %arg12[%c0_5, %c0_6] : memref<64x256xf32, #tpu.memory_space<vmem>>, vector<64x256xf32>
    tpu.vector_store %arg12[%c0_5, %c0_6], %6 {strides = array<i32>} : memref<64x256xf32, #tpu.memory_space<vmem>>, vector<64x256xf32>,
    %c0_7 = arith.constant 0 : index
    %c0_8 = arith.constant 0 : index
    %8 = vector.load %arg3[%c0_7, %c0_8] : memref<32x256xbf16, #tpu.memory_space<vmem>>, vector<32x256xbf16>
    %cst_9 = arith.constant 0.000000e+00 : f32
    %9 = vector.broadcast %cst_9 : f32 to vector<16x32xf32>
    %c0_i32 = arith.constant 0 : i32
    %c8_i32 = arith.constant 8 : i32
    %10 = arith.muli %c0_i32, %c8_i32 : i32
    %11 = tpu.assume_multiple %10, 8 : i32
    %c7_i32 = arith.constant 7 : i32
    %12 = arith.subi %c7_i32, %c0_i32 : i32
    %c8_i32_10 = arith.constant 8 : i32
    %13 = arith.muli %12, %c8_i32_10 : i32
    %14 = tpu.assume_multiple %13, 8 : i32
    %15 = arith.truncf %9 : vector<16x32xf32> to vector<16x32xbf16>
    %cst_11 = arith.constant dense<0.000000e+00> : vector<16x256xf32>
    %16 = tpu.matmul %15, %8, %cst_11 {dimension_numbers = #tpu.dot_dimension_numbers<[1], [0], [0], [1], [0, 0, 1, 1], [], []>} : vector<16x32xbf16>, vector<32x256xbf16>, vector<16x256xf32> -> vector<16x256xf32>
    %17 = arith.index_cast %11 : i32 to index
    %c0_12 = arith.constant 0 : index
    %18 = vector.load %arg12[%17, %c0_12] : memref<64x256xf32, #tpu.memory_space<vmem>>, vector<8x128xf32>
    %19 = vector.extract_strided_slice %16 {offsets = [0, 0], sizes = [8, 128], strides = [1, 1]} : vector<16x256xf32> to vector<8x128xf32>
    %20 = arith.addf %18, %19 : vector<8x128xf32>
    %21 = arith.index_cast %14 : i32 to index
    %c128 = arith.constant 128 : index
    %22 = vector.load %arg12[%21, %c128] : memref<64x256xf32, #tpu.memory_space<vmem>>, vector<8x128xf32>
    %23 = vector.extract_strided_slice %16 {offsets = [8, 128], sizes = [8, 128], strides = [1, 1]} : vector<16x256xf32> to vector<8x128xf32>
    %24 = arith.addf %22, %23 : vector<8x128xf32>
    %25 = tpu.concatenate %20, %24 in 0 : vector<8x128xf32>, vector<8x128xf32> -> vector<16x128xf32>
    %26 = vector.extract_strided_slice %25 {offsets = [0, 0], sizes = [16, 96], strides = [1, 1]} : vector<16x128xf32> to vector<16x96xf32>
    %cst_13 = arith.constant 5.000000e-01 : f32
    %27 = vector.broadcast %cst_13 : f32 to vector<16x96xf32>
    %28 = arith.mulf %27, %26 : vector<16x96xf32>
    %29 = math.tanh %28 : vector<16x96xf32>
    %cst_14 = arith.constant 5.000000e-01 : f32
    %30 = vector.broadcast %cst_14 : f32 to vector<16x96xf32>
    %31 = arith.mulf %30, %29 : vector<16x96xf32>
    %cst_15 = arith.constant 5.000000e-01 : f32
    %32 = vector.broadcast %cst_15 : f32 to vector<16x96xf32>
    %33 = arith.addf %31, %32 : vector<16x96xf32>
    %34 = vector.extract_strided_slice %25 {offsets = [0, 96], sizes = [16, 32], strides = [1, 1]} : vector<16x128xf32> to vector<16x32xf32>
    %35 = math.tanh %34 : vector<16x32xf32>
    %36 = vector.extract_strided_slice %33 {offsets = [0, 32], sizes = [16, 32], strides = [1, 1]} : vector<16x96xf32> to vector<16x32xf32>
    %37 = arith.mulf %36, %9 : vector<16x32xf32>
    %38 = vector.extract_strided_slice %33 {offsets = [0, 0], sizes = [16, 32], strides = [1, 1]} : vector<16x96xf32> to vector<16x32xf32>
    %39 = arith.mulf %38, %35 : vector<16x32xf32>
    %40 = arith.addf %37, %39 : vector<16x32xf32>
    %41 = vector.extract_strided_slice %33 {offsets = [0, 64], sizes = [16, 32], strides = [1, 1]} : vector<16x96xf32> to vector<16x32xf32>
    %42 = math.tanh %40 : vector<16x32xf32>
    %43 = arith.mulf %41, %42 : vector<16x32xf32>
    %44 = vector.extract_strided_slice %43 {offsets = [0, 0], sizes = [8, 32], strides = [1, 1]} : vector<16x32xf32> to vector<8x32xf32>
    %45 = vector.extract_strided_slice %43 {offsets = [8, 0], sizes = [8, 32], strides = [1, 1]} : vector<16x32xf32> to vector<8x32xf32>
    %46 = tpu.concatenate %44, %45 in 1 : vector<8x32xf32>, vector<8x32xf32> -> vector<8x64xf32>
    %47 = arith.index_cast %11 : i32 to index
    %c0_16 = arith.constant 0 : index
    %48 = vector.load %arg14[%47, %c0_16] : memref<64x64xf32, #tpu.memory_space<vmem>>, vector<8x64xf32>
    tpu.vector_store %arg14[%47, %c0_16], %46 {strides = array<i32>} : memref<64x64xf32, #tpu.memory_space<vmem>>, vector<8x64xf32>,
    %c1_i32 = arith.constant 1 : i32
    %c8_i32_17 = arith.constant 8 : i32
    %49 = arith.muli %c1_i32, %c8_i32_17 : i32
    %50 = tpu.assume_multiple %49, 8 : i32
    %c7_i32_18 = arith.constant 7 : i32
    %51 = arith.subi %c7_i32_18, %c1_i32 : i32
    %c8_i32_19 = arith.constant 8 : i32
    %52 = arith.muli %51, %c8_i32_19 : i32
    %53 = tpu.assume_multiple %52, 8 : i32
    %54 = arith.truncf %43 : vector<16x32xf32> to vector<16x32xbf16>
    %cst_20 = arith.constant dense<0.000000e+00> : vector<16x256xf32>
    %55 = tpu.matmul %54, %8, %cst_20 {dimension_numbers = #tpu.dot_dimension_numbers<[1], [0], [0], [1], [0, 0, 1, 1], [], []>} : vector<16x32xbf16>, vector<32x256xbf16>, vector<16x256xf32> -> vector<16x256xf32>
    %56 = arith.index_cast %50 : i32 to index
    %c0_21 = arith.constant 0 : index
    %57 = vector.load %arg12[%56, %c0_21] : memref<64x256xf32, #tpu.memory_space<vmem>>, vector<8x128xf32>
    %58 = vector.extract_strided_slice %55 {offsets = [0, 0], sizes = [8, 128], strides = [1, 1]} : vector<16x256xf32> to vector<8x128xf32>
    %59 = arith.addf %57, %58 : vector<8x128xf32>
    %60 = arith.index_cast %53 : i32 to index
    %c128_22 = arith.constant 128 : index
    %61 = vector.load %arg12[%60, %c128_22] : memref<64x256xf32, #tpu.memory_space<vmem>>, vector<8x128xf32>
    %62 = vector.extract_strided_slice %55 {offsets = [8, 128], sizes = [8, 128], strides = [1, 1]} : vector<16x256xf32> to vector<8x128xf32>
    %63 = arith.addf %61, %62 : vector<8x128xf32>
    %64 = tpu.concatenate %59, %63 in 0 : vector<8x128xf32>, vector<8x128xf32> -> vector<16x128xf32>
    %65 = vector.extract_strided_slice %64 {offsets = [0, 0], sizes = [16, 96], strides = [1, 1]} : vector<16x128xf32> to vector<16x96xf32>
    %cst_23 = arith.constant 5.000000e-01 : f32
    %66 = vector.broadcast %cst_23 : f32 to vector<16x96xf32>
    %67 = arith.mulf %66, %65 : vector<16x96xf32>
    %68 = math.tanh %67 : vector<16x96xf32>
    %cst_24 = arith.constant 5.000000e-01 : f32
    %69 = vector.broadcast %cst_24 : f32 to vector<16x96xf32>
    %70 = arith.mulf %69, %68 : vector<16x96xf32>
    %cst_25 = arith.constant 5.000000e-01 : f32
    %71 = vector.broadcast %cst_25 : f32 to vector<16x96xf32>
    %72 = arith.addf %70, %71 : vector<16x96xf32>
    %73 = vector.extract_strided_slice %64 {offsets = [0, 96], sizes = [16, 32], strides = [1, 1]} : vector<16x128xf32> to vector<16x32xf32>
    %74 = math.tanh %73 : vector<16x32xf32>
    %75 = vector.extract_strided_slice %72 {offsets = [0, 32], sizes = [16, 32], strides = [1, 1]} : vector<16x96xf32> to vector<16x32xf32>
    %76 = arith.mulf %75, %40 : vector<16x32xf32>
    %77 = vector.extract_strided_slice %72 {offsets = [0, 0], sizes = [16, 32], strides = [1, 1]} : vector<16x96xf32> to vector<16x32xf32>
    %78 = arith.mulf %77, %74 : vector<16x32xf32>
    %79 = arith.addf %76, %78 : vector<16x32xf32>
    %80 = vector.extract_strided_slice %72 {offsets = [0, 64], sizes = [16, 32], strides = [1, 1]} : vector<16x96xf32> to vector<16x32xf32>
    %81 = math.tanh %79 : vector<16x32xf32>
    %82 = arith.mulf %80, %81 : vector<16x32xf32>
    %83 = vector.extract_strided_slice %82 {offsets = [0, 0], sizes = [8, 32], strides = [1, 1]} : vector<16x32xf32> to vector<8x32xf32>
    %84 = vector.extract_strided_slice %82 {offsets = [8, 0], sizes = [8, 32], strides = [1, 1]} : vector<16x32xf32> to vector<8x32xf32>
    %85 = tpu.concatenate %83, %84 in 1 : vector<8x32xf32>, vector<8x32xf32> -> vector<8x64xf32>
    %86 = arith.index_cast %50 : i32 to index
    %c0_26 = arith.constant 0 : index
    %87 = vector.load %arg14[%86, %c0_26] : memref<64x64xf32, #tpu.memory_space<vmem>>, vector<8x64xf32>
    tpu.vector_store %arg14[%86, %c0_26], %85 {strides = array<i32>} : memref<64x64xf32, #tpu.memory_space<vmem>>, vector<8x64xf32>,
    %c2_i32 = arith.constant 2 : i32
    %c8_i32_27 = arith.constant 8 : i32
    %88 = arith.muli %c2_i32, %c8_i32_27 : i32
    %89 = tpu.assume_multiple %88, 8 : i32
    %c7_i32_28 = arith.constant 7 : i32
    %90 = arith.subi %c7_i32_28, %c2_i32 : i32
    %c8_i32_29 = arith.constant 8 : i32
    %91 = arith.muli %90, %c8_i32_29 : i32
    %92 = tpu.assume_multiple %91, 8 : i32
    %93 = arith.truncf %82 : vector<16x32xf32> to vector<16x32xbf16>
    %cst_30 = arith.constant dense<0.000000e+00> : vector<16x256xf32>
    %94 = tpu.matmul %93, %8, %cst_30 {dimension_numbers = #tpu.dot_dimension_numbers<[1], [0], [0], [1], [0, 0, 1, 1], [], []>} : vector<16x32xbf16>, vector<32x256xbf16>, vector<16x256xf32> -> vector<16x256xf32>
    %95 = arith.index_cast %89 : i32 to index
    %c0_31 = arith.constant 0 : index
    %96 = vector.load %arg12[%95, %c0_31] : memref<64x256xf32, #tpu.memory_space<vmem>>, vector<8x128xf32>
    %97 = vector.extract_strided_slice %94 {offsets = [0, 0], sizes = [8, 128], strides = [1, 1]} : vector<16x256xf32> to vector<8x128xf32>
    %98 = arith.addf %96, %97 : vector<8x128xf32>
    %99 = arith.index_cast %92 : i32 to index
    %c128_32 = arith.constant 128 : index
    %100 = vector.load %arg12[%99, %c128_32] : memref<64x256xf32, #tpu.memory_space<vmem>>, vector<8x128xf32>
    %101 = vector.extract_strided_slice %94 {offsets = [8, 128], sizes = [8, 128], strides = [1, 1]} : vector<16x256xf32> to vector<8x128xf32>
    %102 = arith.addf %100, %101 : vector<8x128xf32>
    %103 = tpu.concatenate %98, %102 in 0 : vector<8x128xf32>, vector<8x128xf32> -> vector<16x128xf32>
    %104 = vector.extract_strided_slice %103 {offsets = [0, 0], sizes = [16, 96], strides = [1, 1]} : vector<16x128xf32> to vector<16x96xf32>
    %cst_33 = arith.constant 5.000000e-01 : f32
    %105 = vector.broadcast %cst_33 : f32 to vector<16x96xf32>
    %106 = arith.mulf %105, %104 : vector<16x96xf32>
    %107 = math.tanh %106 : vector<16x96xf32>
    %cst_34 = arith.constant 5.000000e-01 : f32
    %108 = vector.broadcast %cst_34 : f32 to vector<16x96xf32>
    %109 = arith.mulf %108, %107 : vector<16x96xf32>
    %cst_35 = arith.constant 5.000000e-01 : f32
    %110 = vector.broadcast %cst_35 : f32 to vector<16x96xf32>
    %111 = arith.addf %109, %110 : vector<16x96xf32>
    %112 = vector.extract_strided_slice %103 {offsets = [0, 96], sizes = [16, 32], strides = [1, 1]} : vector<16x128xf32> to vector<16x32xf32>
    %113 = math.tanh %112 : vector<16x32xf32>
    %114 = vector.extract_strided_slice %111 {offsets = [0, 32], sizes = [16, 32], strides = [1, 1]} : vector<16x96xf32> to vector<16x32xf32>
    %115 = arith.mulf %114, %79 : vector<16x32xf32>
    %116 = vector.extract_strided_slice %111 {offsets = [0, 0], sizes = [16, 32], strides = [1, 1]} : vector<16x96xf32> to vector<16x32xf32>
    %117 = arith.mulf %116, %113 : vector<16x32xf32>
    %118 = arith.addf %115, %117 : vector<16x32xf32>
    %119 = vector.extract_strided_slice %111 {offsets = [0, 64], sizes = [16, 32], strides = [1, 1]} : vector<16x96xf32> to vector<16x32xf32>
    %120 = math.tanh %118 : vector<16x32xf32>
    %121 = arith.mulf %119, %120 : vector<16x32xf32>
    %122 = vector.extract_strided_slice %121 {offsets = [0, 0], sizes = [8, 32], strides = [1, 1]} : vector<16x32xf32> to vector<8x32xf32>
    %123 = vector.extract_strided_slice %121 {offsets = [8, 0], sizes = [8, 32], strides = [1, 1]} : vector<16x32xf32> to vector<8x32xf32>
    %124 = tpu.concatenate %122, %123 in 1 : vector<8x32xf32>, vector<8x32xf32> -> vector<8x64xf32>
    %125 = arith.index_cast %89 : i32 to index
    %c0_36 = arith.constant 0 : index
    %126 = vector.load %arg14[%125, %c0_36] : memref<64x64xf32, #tpu.memory_space<vmem>>, vector<8x64xf32>
    tpu.vector_store %arg14[%125, %c0_36], %124 {strides = array<i32>} : memref<64x64xf32, #tpu.memory_space<vmem>>, vector<8x64xf32>,
    %c3_i32 = arith.constant 3 : i32
    %c8_i32_37 = arith.constant 8 : i32
    %127 = arith.muli %c3_i32, %c8_i32_37 : i32
    %128 = tpu.assume_multiple %127, 8 : i32
    %c7_i32_38 = arith.constant 7 : i32
    %129 = arith.subi %c7_i32_38, %c3_i32 : i32
    %c8_i32_39 = arith.constant 8 : i32
    %130 = arith.muli %129, %c8_i32_39 : i32
    %131 = tpu.assume_multiple %130, 8 : i32
    %132 = arith.truncf %121 : vector<16x32xf32> to vector<16x32xbf16>
    %cst_40 = arith.constant dense<0.000000e+00> : vector<16x256xf32>
    %133 = tpu.matmul %132, %8, %cst_40 {dimension_numbers = #tpu.dot_dimension_numbers<[1], [0], [0], [1], [0, 0, 1, 1], [], []>} : vector<16x32xbf16>, vector<32x256xbf16>, vector<16x256xf32> -> vector<16x256xf32>
    %134 = arith.index_cast %128 : i32 to index
    %c0_41 = arith.constant 0 : index
    %135 = vector.load %arg12[%134, %c0_41] : memref<64x256xf32, #tpu.memory_space<vmem>>, vector<8x128xf32>
    %136 = vector.extract_strided_slice %133 {offsets = [0, 0], sizes = [8, 128], strides = [1, 1]} : vector<16x256xf32> to vector<8x128xf32>
    %137 = arith.addf %135, %136 : vector<8x128xf32>
    %138 = arith.index_cast %131 : i32 to index
    %c128_42 = arith.constant 128 : index
    %139 = vector.load %arg12[%138, %c128_42] : memref<64x256xf32, #tpu.memory_space<vmem>>, vector<8x128xf32>
    %140 = vector.extract_strided_slice %133 {offsets = [8, 128], sizes = [8, 128], strides = [1, 1]} : vector<16x256xf32> to vector<8x128xf32>
    %141 = arith.addf %139, %140 : vector<8x128xf32>
    %142 = tpu.concatenate %137, %141 in 0 : vector<8x128xf32>, vector<8x128xf32> -> vector<16x128xf32>
    %143 = vector.extract_strided_slice %142 {offsets = [0, 0], sizes = [16, 96], strides = [1, 1]} : vector<16x128xf32> to vector<16x96xf32>
    %cst_43 = arith.constant 5.000000e-01 : f32
    %144 = vector.broadcast %cst_43 : f32 to vector<16x96xf32>
    %145 = arith.mulf %144, %143 : vector<16x96xf32>
    %146 = math.tanh %145 : vector<16x96xf32>
    %cst_44 = arith.constant 5.000000e-01 : f32
    %147 = vector.broadcast %cst_44 : f32 to vector<16x96xf32>
    %148 = arith.mulf %147, %146 : vector<16x96xf32>
    %cst_45 = arith.constant 5.000000e-01 : f32
    %149 = vector.broadcast %cst_45 : f32 to vector<16x96xf32>
    %150 = arith.addf %148, %149 : vector<16x96xf32>
    %151 = vector.extract_strided_slice %142 {offsets = [0, 96], sizes = [16, 32], strides = [1, 1]} : vector<16x128xf32> to vector<16x32xf32>
    %152 = math.tanh %151 : vector<16x32xf32>
    %153 = vector.extract_strided_slice %150 {offsets = [0, 32], sizes = [16, 32], strides = [1, 1]} : vector<16x96xf32> to vector<16x32xf32>
    %154 = arith.mulf %153, %118 : vector<16x32xf32>
    %155 = vector.extract_strided_slice %150 {offsets = [0, 0], sizes = [16, 32], strides = [1, 1]} : vector<16x96xf32> to vector<16x32xf32>
    %156 = arith.mulf %155, %152 : vector<16x32xf32>
    %157 = arith.addf %154, %156 : vector<16x32xf32>
    %158 = vector.extract_strided_slice %150 {offsets = [0, 64], sizes = [16, 32], strides = [1, 1]} : vector<16x96xf32> to vector<16x32xf32>
    %159 = math.tanh %157 : vector<16x32xf32>
    %160 = arith.mulf %158, %159 : vector<16x32xf32>
    %161 = vector.extract_strided_slice %160 {offsets = [0, 0], sizes = [8, 32], strides = [1, 1]} : vector<16x32xf32> to vector<8x32xf32>
    %162 = vector.extract_strided_slice %160 {offsets = [8, 0], sizes = [8, 32], strides = [1, 1]} : vector<16x32xf32> to vector<8x32xf32>
    %163 = tpu.concatenate %161, %162 in 1 : vector<8x32xf32>, vector<8x32xf32> -> vector<8x64xf32>
    %164 = arith.index_cast %128 : i32 to index
    %c0_46 = arith.constant 0 : index
    %165 = vector.load %arg14[%164, %c0_46] : memref<64x64xf32, #tpu.memory_space<vmem>>, vector<8x64xf32>
    tpu.vector_store %arg14[%164, %c0_46], %163 {strides = array<i32>} : memref<64x64xf32, #tpu.memory_space<vmem>>, vector<8x64xf32>,
    %c4_i32 = arith.constant 4 : i32
    %c8_i32_47 = arith.constant 8 : i32
    %166 = arith.muli %c4_i32, %c8_i32_47 : i32
    %167 = tpu.assume_multiple %166, 8 : i32
    %c7_i32_48 = arith.constant 7 : i32
    %168 = arith.subi %c7_i32_48, %c4_i32 : i32
    %c8_i32_49 = arith.constant 8 : i32
    %169 = arith.muli %168, %c8_i32_49 : i32
    %170 = tpu.assume_multiple %169, 8 : i32
    %171 = arith.truncf %160 : vector<16x32xf32> to vector<16x32xbf16>
    %cst_50 = arith.constant dense<0.000000e+00> : vector<16x256xf32>
    %172 = tpu.matmul %171, %8, %cst_50 {dimension_numbers = #tpu.dot_dimension_numbers<[1], [0], [0], [1], [0, 0, 1, 1], [], []>} : vector<16x32xbf16>, vector<32x256xbf16>, vector<16x256xf32> -> vector<16x256xf32>
    %173 = arith.index_cast %167 : i32 to index
    %c0_51 = arith.constant 0 : index
    %174 = vector.load %arg12[%173, %c0_51] : memref<64x256xf32, #tpu.memory_space<vmem>>, vector<8x128xf32>
    %175 = vector.extract_strided_slice %172 {offsets = [0, 0], sizes = [8, 128], strides = [1, 1]} : vector<16x256xf32> to vector<8x128xf32>
    %176 = arith.addf %174, %175 : vector<8x128xf32>
    %177 = arith.index_cast %170 : i32 to index
    %c128_52 = arith.constant 128 : index
    %178 = vector.load %arg12[%177, %c128_52] : memref<64x256xf32, #tpu.memory_space<vmem>>, vector<8x128xf32>
    %179 = vector.extract_strided_slice %172 {offsets = [8, 128], sizes = [8, 128], strides = [1, 1]} : vector<16x256xf32> to vector<8x128xf32>
    %180 = arith.addf %178, %179 : vector<8x128xf32>
    %181 = tpu.concatenate %176, %180 in 0 : vector<8x128xf32>, vector<8x128xf32> -> vector<16x128xf32>
    %182 = vector.extract_strided_slice %181 {offsets = [0, 0], sizes = [16, 96], strides = [1, 1]} : vector<16x128xf32> to vector<16x96xf32>
    %cst_53 = arith.constant 5.000000e-01 : f32
    %183 = vector.broadcast %cst_53 : f32 to vector<16x96xf32>
    %184 = arith.mulf %183, %182 : vector<16x96xf32>
    %185 = math.tanh %184 : vector<16x96xf32>
    %cst_54 = arith.constant 5.000000e-01 : f32
    %186 = vector.broadcast %cst_54 : f32 to vector<16x96xf32>
    %187 = arith.mulf %186, %185 : vector<16x96xf32>
    %cst_55 = arith.constant 5.000000e-01 : f32
    %188 = vector.broadcast %cst_55 : f32 to vector<16x96xf32>
    %189 = arith.addf %187, %188 : vector<16x96xf32>
    %190 = vector.extract_strided_slice %181 {offsets = [0, 96], sizes = [16, 32], strides = [1, 1]} : vector<16x128xf32> to vector<16x32xf32>
    %191 = math.tanh %190 : vector<16x32xf32>
    %192 = vector.extract_strided_slice %189 {offsets = [0, 32], sizes = [16, 32], strides = [1, 1]} : vector<16x96xf32> to vector<16x32xf32>
    %193 = arith.mulf %192, %157 : vector<16x32xf32>
    %194 = vector.extract_strided_slice %189 {offsets = [0, 0], sizes = [16, 32], strides = [1, 1]} : vector<16x96xf32> to vector<16x32xf32>
    %195 = arith.mulf %194, %191 : vector<16x32xf32>
    %196 = arith.addf %193, %195 : vector<16x32xf32>
    %197 = vector.extract_strided_slice %189 {offsets = [0, 64], sizes = [16, 32], strides = [1, 1]} : vector<16x96xf32> to vector<16x32xf32>
    %198 = math.tanh %196 : vector<16x32xf32>
    %199 = arith.mulf %197, %198 : vector<16x32xf32>
    %200 = vector.extract_strided_slice %199 {offsets = [0, 0], sizes = [8, 32], strides = [1, 1]} : vector<16x32xf32> to vector<8x32xf32>
    %201 = vector.extract_strided_slice %199 {offsets = [8, 0], sizes = [8, 32], strides = [1, 1]} : vector<16x32xf32> to vector<8x32xf32>
    %202 = tpu.concatenate %200, %201 in 1 : vector<8x32xf32>, vector<8x32xf32> -> vector<8x64xf32>
    %203 = arith.index_cast %167 : i32 to index
    %c0_56 = arith.constant 0 : index
    %204 = vector.load %arg14[%203, %c0_56] : memref<64x64xf32, #tpu.memory_space<vmem>>, vector<8x64xf32>
    tpu.vector_store %arg14[%203, %c0_56], %202 {strides = array<i32>} : memref<64x64xf32, #tpu.memory_space<vmem>>, vector<8x64xf32>,
    %c5_i32 = arith.constant 5 : i32
    %c8_i32_57 = arith.constant 8 : i32
    %205 = arith.muli %c5_i32, %c8_i32_57 : i32
    %206 = tpu.assume_multiple %205, 8 : i32
    %c7_i32_58 = arith.constant 7 : i32
    %207 = arith.subi %c7_i32_58, %c5_i32 : i32
    %c8_i32_59 = arith.constant 8 : i32
    %208 = arith.muli %207, %c8_i32_59 : i32
    %209 = tpu.assume_multiple %208, 8 : i32
    %210 = arith.truncf %199 : vector<16x32xf32> to vector<16x32xbf16>
    %cst_60 = arith.constant dense<0.000000e+00> : vector<16x256xf32>
    %211 = tpu.matmul %210, %8, %cst_60 {dimension_numbers = #tpu.dot_dimension_numbers<[1], [0], [0], [1], [0, 0, 1, 1], [], []>} : vector<16x32xbf16>, vector<32x256xbf16>, vector<16x256xf32> -> vector<16x256xf32>
    %212 = arith.index_cast %206 : i32 to index
    %c0_61 = arith.constant 0 : index
    %213 = vector.load %arg12[%212, %c0_61] : memref<64x256xf32, #tpu.memory_space<vmem>>, vector<8x128xf32>
    %214 = vector.extract_strided_slice %211 {offsets = [0, 0], sizes = [8, 128], strides = [1, 1]} : vector<16x256xf32> to vector<8x128xf32>
    %215 = arith.addf %213, %214 : vector<8x128xf32>
    %216 = arith.index_cast %209 : i32 to index
    %c128_62 = arith.constant 128 : index
    %217 = vector.load %arg12[%216, %c128_62] : memref<64x256xf32, #tpu.memory_space<vmem>>, vector<8x128xf32>
    %218 = vector.extract_strided_slice %211 {offsets = [8, 128], sizes = [8, 128], strides = [1, 1]} : vector<16x256xf32> to vector<8x128xf32>
    %219 = arith.addf %217, %218 : vector<8x128xf32>
    %220 = tpu.concatenate %215, %219 in 0 : vector<8x128xf32>, vector<8x128xf32> -> vector<16x128xf32>
    %221 = vector.extract_strided_slice %220 {offsets = [0, 0], sizes = [16, 96], strides = [1, 1]} : vector<16x128xf32> to vector<16x96xf32>
    %cst_63 = arith.constant 5.000000e-01 : f32
    %222 = vector.broadcast %cst_63 : f32 to vector<16x96xf32>
    %223 = arith.mulf %222, %221 : vector<16x96xf32>
    %224 = math.tanh %223 : vector<16x96xf32>
    %cst_64 = arith.constant 5.000000e-01 : f32
    %225 = vector.broadcast %cst_64 : f32 to vector<16x96xf32>
    %226 = arith.mulf %225, %224 : vector<16x96xf32>
    %cst_65 = arith.constant 5.000000e-01 : f32
    %227 = vector.broadcast %cst_65 : f32 to vector<16x96xf32>
    %228 = arith.addf %226, %227 : vector<16x96xf32>
    %229 = vector.extract_strided_slice %220 {offsets = [0, 96], sizes = [16, 32], strides = [1, 1]} : vector<16x128xf32> to vector<16x32xf32>
    %230 = math.tanh %229 : vector<16x32xf32>
    %231 = vector.extract_strided_slice %228 {offsets = [0, 32], sizes = [16, 32], strides = [1, 1]} : vector<16x96xf32> to vector<16x32xf32>
    %232 = arith.mulf %231, %196 : vector<16x32xf32>
    %233 = vector.extract_strided_slice %228 {offsets = [0, 0], sizes = [16, 32], strides = [1, 1]} : vector<16x96xf32> to vector<16x32xf32>
    %234 = arith.mulf %233, %230 : vector<16x32xf32>
    %235 = arith.addf %232, %234 : vector<16x32xf32>
    %236 = vector.extract_strided_slice %228 {offsets = [0, 64], sizes = [16, 32], strides = [1, 1]} : vector<16x96xf32> to vector<16x32xf32>
    %237 = math.tanh %235 : vector<16x32xf32>
    %238 = arith.mulf %236, %237 : vector<16x32xf32>
    %239 = vector.extract_strided_slice %238 {offsets = [0, 0], sizes = [8, 32], strides = [1, 1]} : vector<16x32xf32> to vector<8x32xf32>
    %240 = vector.extract_strided_slice %238 {offsets = [8, 0], sizes = [8, 32], strides = [1, 1]} : vector<16x32xf32> to vector<8x32xf32>
    %241 = tpu.concatenate %239, %240 in 1 : vector<8x32xf32>, vector<8x32xf32> -> vector<8x64xf32>
    %242 = arith.index_cast %206 : i32 to index
    %c0_66 = arith.constant 0 : index
    %243 = vector.load %arg14[%242, %c0_66] : memref<64x64xf32, #tpu.memory_space<vmem>>, vector<8x64xf32>
    tpu.vector_store %arg14[%242, %c0_66], %241 {strides = array<i32>} : memref<64x64xf32, #tpu.memory_space<vmem>>, vector<8x64xf32>,
    %c6_i32 = arith.constant 6 : i32
    %c8_i32_67 = arith.constant 8 : i32
    %244 = arith.muli %c6_i32, %c8_i32_67 : i32
    %245 = tpu.assume_multiple %244, 8 : i32
    %c7_i32_68 = arith.constant 7 : i32
    %246 = arith.subi %c7_i32_68, %c6_i32 : i32
    %c8_i32_69 = arith.constant 8 : i32
    %247 = arith.muli %246, %c8_i32_69 : i32
    %248 = tpu.assume_multiple %247, 8 : i32
    %249 = arith.truncf %238 : vector<16x32xf32> to vector<16x32xbf16>
    %cst_70 = arith.constant dense<0.000000e+00> : vector<16x256xf32>
    %250 = tpu.matmul %249, %8, %cst_70 {dimension_numbers = #tpu.dot_dimension_numbers<[1], [0], [0], [1], [0, 0, 1, 1], [], []>} : vector<16x32xbf16>, vector<32x256xbf16>, vector<16x256xf32> -> vector<16x256xf32>
    %251 = arith.index_cast %245 : i32 to index
    %c0_71 = arith.constant 0 : index
    %252 = vector.load %arg12[%251, %c0_71] : memref<64x256xf32, #tpu.memory_space<vmem>>, vector<8x128xf32>
    %253 = vector.extract_strided_slice %250 {offsets = [0, 0], sizes = [8, 128], strides = [1, 1]} : vector<16x256xf32> to vector<8x128xf32>
    %254 = arith.addf %252, %253 : vector<8x128xf32>
    %255 = arith.index_cast %248 : i32 to index
    %c128_72 = arith.constant 128 : index
    %256 = vector.load %arg12[%255, %c128_72] : memref<64x256xf32, #tpu.memory_space<vmem>>, vector<8x128xf32>
    %257 = vector.extract_strided_slice %250 {offsets = [8, 128], sizes = [8, 128], strides = [1, 1]} : vector<16x256xf32> to vector<8x128xf32>
    %258 = arith.addf %256, %257 : vector<8x128xf32>
    %259 = tpu.concatenate %254, %258 in 0 : vector<8x128xf32>, vector<8x128xf32> -> vector<16x128xf32>
    %260 = vector.extract_strided_slice %259 {offsets = [0, 0], sizes = [16, 96], strides = [1, 1]} : vector<16x128xf32> to vector<16x96xf32>
    %cst_73 = arith.constant 5.000000e-01 : f32
    %261 = vector.broadcast %cst_73 : f32 to vector<16x96xf32>
    %262 = arith.mulf %261, %260 : vector<16x96xf32>
    %263 = math.tanh %262 : vector<16x96xf32>
    %cst_74 = arith.constant 5.000000e-01 : f32
    %264 = vector.broadcast %cst_74 : f32 to vector<16x96xf32>
    %265 = arith.mulf %264, %263 : vector<16x96xf32>
    %cst_75 = arith.constant 5.000000e-01 : f32
    %266 = vector.broadcast %cst_75 : f32 to vector<16x96xf32>
    %267 = arith.addf %265, %266 : vector<16x96xf32>
    %268 = vector.extract_strided_slice %259 {offsets = [0, 96], sizes = [16, 32], strides = [1, 1]} : vector<16x128xf32> to vector<16x32xf32>
    %269 = math.tanh %268 : vector<16x32xf32>
    %270 = vector.extract_strided_slice %267 {offsets = [0, 32], sizes = [16, 32], strides = [1, 1]} : vector<16x96xf32> to vector<16x32xf32>
    %271 = arith.mulf %270, %235 : vector<16x32xf32>
    %272 = vector.extract_strided_slice %267 {offsets = [0, 0], sizes = [16, 32], strides = [1, 1]} : vector<16x96xf32> to vector<16x32xf32>
    %273 = arith.mulf %272, %269 : vector<16x32xf32>
    %274 = arith.addf %271, %273 : vector<16x32xf32>
    %275 = vector.extract_strided_slice %267 {offsets = [0, 64], sizes = [16, 32], strides = [1, 1]} : vector<16x96xf32> to vector<16x32xf32>
    %276 = math.tanh %274 : vector<16x32xf32>
    %277 = arith.mulf %275, %276 : vector<16x32xf32>
    %278 = vector.extract_strided_slice %277 {offsets = [0, 0], sizes = [8, 32], strides = [1, 1]} : vector<16x32xf32> to vector<8x32xf32>
    %279 = vector.extract_strided_slice %277 {offsets = [8, 0], sizes = [8, 32], strides = [1, 1]} : vector<16x32xf32> to vector<8x32xf32>
    %280 = tpu.concatenate %278, %279 in 1 : vector<8x32xf32>, vector<8x32xf32> -> vector<8x64xf32>
    %281 = arith.index_cast %245 : i32 to index
    %c0_76 = arith.constant 0 : index
    %282 = vector.load %arg14[%281, %c0_76] : memref<64x64xf32, #tpu.memory_space<vmem>>, vector<8x64xf32>
    tpu.vector_store %arg14[%281, %c0_76], %280 {strides = array<i32>} : memref<64x64xf32, #tpu.memory_space<vmem>>, vector<8x64xf32>,
    %c7_i32_77 = arith.constant 7 : i32
    %c8_i32_78 = arith.constant 8 : i32
    %283 = arith.muli %c7_i32_77, %c8_i32_78 : i32
    %284 = tpu.assume_multiple %283, 8 : i32
    %c7_i32_79 = arith.constant 7 : i32
    %285 = arith.subi %c7_i32_79, %c7_i32_77 : i32
    %c8_i32_80 = arith.constant 8 : i32
    %286 = arith.muli %285, %c8_i32_80 : i32
    %287 = tpu.assume_multiple %286, 8 : i32
    %288 = arith.truncf %277 : vector<16x32xf32> to vector<16x32xbf16>
    %cst_81 = arith.constant dense<0.000000e+00> : vector<16x256xf32>
    %289 = tpu.matmul %288, %8, %cst_81 {dimension_numbers = #tpu.dot_dimension_numbers<[1], [0], [0], [1], [0, 0, 1, 1], [], []>} : vector<16x32xbf16>, vector<32x256xbf16>, vector<16x256xf32> -> vector<16x256xf32>
    %290 = arith.index_cast %284 : i32 to index
    %c0_82 = arith.constant 0 : index
    %291 = vector.load %arg12[%290, %c0_82] : memref<64x256xf32, #tpu.memory_space<vmem>>, vector<8x128xf32>
    %292 = vector.extract_strided_slice %289 {offsets = [0, 0], sizes = [8, 128], strides = [1, 1]} : vector<16x256xf32> to vector<8x128xf32>
    %293 = arith.addf %291, %292 : vector<8x128xf32>
    %294 = arith.index_cast %287 : i32 to index
    %c128_83 = arith.constant 128 : index
    %295 = vector.load %arg12[%294, %c128_83] : memref<64x256xf32, #tpu.memory_space<vmem>>, vector<8x128xf32>
    %296 = vector.extract_strided_slice %289 {offsets = [8, 128], sizes = [8, 128], strides = [1, 1]} : vector<16x256xf32> to vector<8x128xf32>
    %297 = arith.addf %295, %296 : vector<8x128xf32>
    %298 = tpu.concatenate %293, %297 in 0 : vector<8x128xf32>, vector<8x128xf32> -> vector<16x128xf32>
    %299 = vector.extract_strided_slice %298 {offsets = [0, 0], sizes = [16, 96], strides = [1, 1]} : vector<16x128xf32> to vector<16x96xf32>
    %cst_84 = arith.constant 5.000000e-01 : f32
    %300 = vector.broadcast %cst_84 : f32 to vector<16x96xf32>
    %301 = arith.mulf %300, %299 : vector<16x96xf32>
    %302 = math.tanh %301 : vector<16x96xf32>
    %cst_85 = arith.constant 5.000000e-01 : f32
    %303 = vector.broadcast %cst_85 : f32 to vector<16x96xf32>
    %304 = arith.mulf %303, %302 : vector<16x96xf32>
    %cst_86 = arith.constant 5.000000e-01 : f32
    %305 = vector.broadcast %cst_86 : f32 to vector<16x96xf32>
    %306 = arith.addf %304, %305 : vector<16x96xf32>
    %307 = vector.extract_strided_slice %298 {offsets = [0, 96], sizes = [16, 32], strides = [1, 1]} : vector<16x128xf32> to vector<16x32xf32>
    %308 = math.tanh %307 : vector<16x32xf32>
    %309 = vector.extract_strided_slice %306 {offsets = [0, 32], sizes = [16, 32], strides = [1, 1]} : vector<16x96xf32> to vector<16x32xf32>
    %310 = arith.mulf %309, %274 : vector<16x32xf32>
    %311 = vector.extract_strided_slice %306 {offsets = [0, 0], sizes = [16, 32], strides = [1, 1]} : vector<16x96xf32> to vector<16x32xf32>
    %312 = arith.mulf %311, %308 : vector<16x32xf32>
    %313 = arith.addf %310, %312 : vector<16x32xf32>
    %314 = vector.extract_strided_slice %306 {offsets = [0, 64], sizes = [16, 32], strides = [1, 1]} : vector<16x96xf32> to vector<16x32xf32>
    %315 = math.tanh %313 : vector<16x32xf32>
    %316 = arith.mulf %314, %315 : vector<16x32xf32>
    %317 = vector.extract_strided_slice %316 {offsets = [0, 0], sizes = [8, 32], strides = [1, 1]} : vector<16x32xf32> to vector<8x32xf32>
    %318 = vector.extract_strided_slice %316 {offsets = [8, 0], sizes = [8, 32], strides = [1, 1]} : vector<16x32xf32> to vector<8x32xf32>
    %319 = tpu.concatenate %317, %318 in 1 : vector<8x32xf32>, vector<8x32xf32> -> vector<8x64xf32>
    %320 = arith.index_cast %284 : i32 to index
    %c0_87 = arith.constant 0 : index
    %321 = vector.load %arg14[%320, %c0_87] : memref<64x64xf32, #tpu.memory_space<vmem>>, vector<8x64xf32>
    tpu.vector_store %arg14[%320, %c0_87], %319 {strides = array<i32>} : memref<64x64xf32, #tpu.memory_space<vmem>>, vector<8x64xf32>,
    %c8_i32_88 = arith.constant 8 : i32
    %c0_89 = arith.constant 0 : index
    %c0_90 = arith.constant 0 : index
    %322 = vector.load %arg14[%c0_89, %c0_90] : memref<64x64xf32, #tpu.memory_space<vmem>>, vector<64x64xf32>
    %323 = vector.extract_strided_slice %322 {offsets = [0, 0], sizes = [64, 32], strides = [1, 1]} : vector<64x64xf32> to vector<64x32xf32>
    %324 = arith.truncf %323 : vector<64x32xf32> to vector<64x32xbf16>
    %c0_91 = arith.constant 0 : index
    %c0_92 = arith.constant 0 : index
    %325 = vector.load %arg4[%c0_91, %c0_92] : memref<32x256xbf16, #tpu.memory_space<vmem>>, vector<32x256xbf16>
    %cst_93 = arith.constant dense<0.000000e+00> : vector<64x256xf32>
    %326 = tpu.matmul %324, %325, %cst_93 {dimension_numbers = #tpu.dot_dimension_numbers<[1], [0], [0], [1], [0, 0, 1, 1], [], []>} : vector<64x32xbf16>, vector<32x256xbf16>, vector<64x256xf32> -> vector<64x256xf32>
    %c0_94 = arith.constant 0 : index
    %c0_95 = arith.constant 0 : index
    %327 = vector.load %arg6[%c0_94, %c0_95] : memref<1x256xf32, #tpu.memory_space<vmem>>, vector<1x256xf32>
    %328 = vector.broadcast %327 : vector<1x256xf32> to vector<64x256xf32>
    %329 = arith.addf %326, %328 : vector<64x256xf32>
    %c0_96 = arith.constant 0 : index
    %c0_97 = arith.constant 0 : index
    %330 = vector.load %arg12[%c0_96, %c0_97] : memref<64x256xf32, #tpu.memory_space<vmem>>, vector<64x256xf32>
    tpu.vector_store %arg12[%c0_96, %c0_97], %329 {strides = array<i32>} : memref<64x256xf32, #tpu.memory_space<vmem>>, vector<64x256xf32>,
    %331 = vector.extract_strided_slice %322 {offsets = [0, 32], sizes = [64, 32], strides = [1, 1]} : vector<64x64xf32> to vector<64x32xf32>
    %332 = arith.truncf %331 : vector<64x32xf32> to vector<64x32xbf16>
    %c0_98 = arith.constant 0 : index
    %c0_99 = arith.constant 0 : index
    %333 = vector.load %arg5[%c0_98, %c0_99] : memref<32x256xbf16, #tpu.memory_space<vmem>>, vector<32x256xbf16>
    %cst_100 = arith.constant dense<0.000000e+00> : vector<64x256xf32>
    %334 = tpu.matmul %332, %333, %cst_100 {dimension_numbers = #tpu.dot_dimension_numbers<[1], [0], [0], [1], [0, 0, 1, 1], [], []>} : vector<64x32xbf16>, vector<32x256xbf16>, vector<64x256xf32> -> vector<64x256xf32>
    %c0_101 = arith.constant 0 : index
    %c0_102 = arith.constant 0 : index
    %335 = vector.load %arg13[%c0_101, %c0_102] : memref<64x256xf32, #tpu.memory_space<vmem>>, vector<64x256xf32>
    tpu.vector_store %arg13[%c0_101, %c0_102], %334 {strides = array<i32>} : memref<64x256xf32, #tpu.memory_space<vmem>>, vector<64x256xf32>,
    %c0_i32_103 = arith.constant 0 : i32
    %c8_i32_104 = arith.constant 8 : i32
    %336 = arith.muli %c0_i32_103, %c8_i32_104 : i32
    %337 = tpu.assume_multiple %336, 8 : i32
    %c7_i32_105 = arith.constant 7 : i32
    %338 = arith.subi %c7_i32_105, %c0_i32_103 : i32
    %c8_i32_106 = arith.constant 8 : i32
    %339 = arith.muli %338, %c8_i32_106 : i32
    %340 = tpu.assume_multiple %339, 8 : i32
    %341 = arith.index_cast %337 : i32 to index
    %c0_107 = arith.constant 0 : index
    %342 = vector.load %arg12[%341, %c0_107] : memref<64x256xf32, #tpu.memory_space<vmem>>, vector<8x256xf32>
    %343 = arith.index_cast %340 : i32 to index
    %c0_108 = arith.constant 0 : index
    %344 = vector.load %arg13[%343, %c0_108] : memref<64x256xf32, #tpu.memory_space<vmem>>, vector<8x256xf32>
    %345 = arith.addf %342, %344 : vector<8x256xf32>
    %346 = arith.index_cast %337 : i32 to index
    %c0_109 = arith.constant 0 : index
    %347 = vector.load %arg12[%346, %c0_109] : memref<64x256xf32, #tpu.memory_space<vmem>>, vector<8x256xf32>
    tpu.vector_store %arg12[%346, %c0_109], %345 {strides = array<i32>} : memref<64x256xf32, #tpu.memory_space<vmem>>, vector<8x256xf32>,
    %c1_i32_110 = arith.constant 1 : i32
    %c8_i32_111 = arith.constant 8 : i32
    %348 = arith.muli %c1_i32_110, %c8_i32_111 : i32
    %349 = tpu.assume_multiple %348, 8 : i32
    %c7_i32_112 = arith.constant 7 : i32
    %350 = arith.subi %c7_i32_112, %c1_i32_110 : i32
    %c8_i32_113 = arith.constant 8 : i32
    %351 = arith.muli %350, %c8_i32_113 : i32
    %352 = tpu.assume_multiple %351, 8 : i32
    %353 = arith.index_cast %349 : i32 to index
    %c0_114 = arith.constant 0 : index
    %354 = vector.load %arg12[%353, %c0_114] : memref<64x256xf32, #tpu.memory_space<vmem>>, vector<8x256xf32>
    %355 = arith.index_cast %352 : i32 to index
    %c0_115 = arith.constant 0 : index
    %356 = vector.load %arg13[%355, %c0_115] : memref<64x256xf32, #tpu.memory_space<vmem>>, vector<8x256xf32>
    %357 = arith.addf %354, %356 : vector<8x256xf32>
    %358 = arith.index_cast %349 : i32 to index
    %c0_116 = arith.constant 0 : index
    %359 = vector.load %arg12[%358, %c0_116] : memref<64x256xf32, #tpu.memory_space<vmem>>, vector<8x256xf32>
    tpu.vector_store %arg12[%358, %c0_116], %357 {strides = array<i32>} : memref<64x256xf32, #tpu.memory_space<vmem>>, vector<8x256xf32>,
    %c2_i32_117 = arith.constant 2 : i32
    %c8_i32_118 = arith.constant 8 : i32
    %360 = arith.muli %c2_i32_117, %c8_i32_118 : i32
    %361 = tpu.assume_multiple %360, 8 : i32
    %c7_i32_119 = arith.constant 7 : i32
    %362 = arith.subi %c7_i32_119, %c2_i32_117 : i32
    %c8_i32_120 = arith.constant 8 : i32
    %363 = arith.muli %362, %c8_i32_120 : i32
    %364 = tpu.assume_multiple %363, 8 : i32
    %365 = arith.index_cast %361 : i32 to index
    %c0_121 = arith.constant 0 : index
    %366 = vector.load %arg12[%365, %c0_121] : memref<64x256xf32, #tpu.memory_space<vmem>>, vector<8x256xf32>
    %367 = arith.index_cast %364 : i32 to index
    %c0_122 = arith.constant 0 : index
    %368 = vector.load %arg13[%367, %c0_122] : memref<64x256xf32, #tpu.memory_space<vmem>>, vector<8x256xf32>
    %369 = arith.addf %366, %368 : vector<8x256xf32>
    %370 = arith.index_cast %361 : i32 to index
    %c0_123 = arith.constant 0 : index
    %371 = vector.load %arg12[%370, %c0_123] : memref<64x256xf32, #tpu.memory_space<vmem>>, vector<8x256xf32>
    tpu.vector_store %arg12[%370, %c0_123], %369 {strides = array<i32>} : memref<64x256xf32, #tpu.memory_space<vmem>>, vector<8x256xf32>,
    %c3_i32_124 = arith.constant 3 : i32
    %c8_i32_125 = arith.constant 8 : i32
    %372 = arith.muli %c3_i32_124, %c8_i32_125 : i32
    %373 = tpu.assume_multiple %372, 8 : i32
    %c7_i32_126 = arith.constant 7 : i32
    %374 = arith.subi %c7_i32_126, %c3_i32_124 : i32
    %c8_i32_127 = arith.constant 8 : i32
    %375 = arith.muli %374, %c8_i32_127 : i32
    %376 = tpu.assume_multiple %375, 8 : i32
    %377 = arith.index_cast %373 : i32 to index
    %c0_128 = arith.constant 0 : index
    %378 = vector.load %arg12[%377, %c0_128] : memref<64x256xf32, #tpu.memory_space<vmem>>, vector<8x256xf32>
    %379 = arith.index_cast %376 : i32 to index
    %c0_129 = arith.constant 0 : index
    %380 = vector.load %arg13[%379, %c0_129] : memref<64x256xf32, #tpu.memory_space<vmem>>, vector<8x256xf32>
    %381 = arith.addf %378, %380 : vector<8x256xf32>
    %382 = arith.index_cast %373 : i32 to index
    %c0_130 = arith.constant 0 : index
    %383 = vector.load %arg12[%382, %c0_130] : memref<64x256xf32, #tpu.memory_space<vmem>>, vector<8x256xf32>
    tpu.vector_store %arg12[%382, %c0_130], %381 {strides = array<i32>} : memref<64x256xf32, #tpu.memory_space<vmem>>, vector<8x256xf32>,
    %c4_i32_131 = arith.constant 4 : i32
    %c8_i32_132 = arith.constant 8 : i32
    %384 = arith.muli %c4_i32_131, %c8_i32_132 : i32
    %385 = tpu.assume_multiple %384, 8 : i32
    %c7_i32_133 = arith.constant 7 : i32
    %386 = arith.subi %c7_i32_133, %c4_i32_131 : i32
    %c8_i32_134 = arith.constant 8 : i32
    %387 = arith.muli %386, %c8_i32_134 : i32
    %388 = tpu.assume_multiple %387, 8 : i32
    %389 = arith.index_cast %385 : i32 to index
    %c0_135 = arith.constant 0 : index
    %390 = vector.load %arg12[%389, %c0_135] : memref<64x256xf32, #tpu.memory_space<vmem>>, vector<8x256xf32>
    %391 = arith.index_cast %388 : i32 to index
    %c0_136 = arith.constant 0 : index
    %392 = vector.load %arg13[%391, %c0_136] : memref<64x256xf32, #tpu.memory_space<vmem>>, vector<8x256xf32>
    %393 = arith.addf %390, %392 : vector<8x256xf32>
    %394 = arith.index_cast %385 : i32 to index
    %c0_137 = arith.constant 0 : index
    %395 = vector.load %arg12[%394, %c0_137] : memref<64x256xf32, #tpu.memory_space<vmem>>, vector<8x256xf32>
    tpu.vector_store %arg12[%394, %c0_137], %393 {strides = array<i32>} : memref<64x256xf32, #tpu.memory_space<vmem>>, vector<8x256xf32>,
    %c5_i32_138 = arith.constant 5 : i32
    %c8_i32_139 = arith.constant 8 : i32
    %396 = arith.muli %c5_i32_138, %c8_i32_139 : i32
    %397 = tpu.assume_multiple %396, 8 : i32
    %c7_i32_140 = arith.constant 7 : i32
    %398 = arith.subi %c7_i32_140, %c5_i32_138 : i32
    %c8_i32_141 = arith.constant 8 : i32
    %399 = arith.muli %398, %c8_i32_141 : i32
    %400 = tpu.assume_multiple %399, 8 : i32
    %401 = arith.index_cast %397 : i32 to index
    %c0_142 = arith.constant 0 : index
    %402 = vector.load %arg12[%401, %c0_142] : memref<64x256xf32, #tpu.memory_space<vmem>>, vector<8x256xf32>
    %403 = arith.index_cast %400 : i32 to index
    %c0_143 = arith.constant 0 : index
    %404 = vector.load %arg13[%403, %c0_143] : memref<64x256xf32, #tpu.memory_space<vmem>>, vector<8x256xf32>
    %405 = arith.addf %402, %404 : vector<8x256xf32>
    %406 = arith.index_cast %397 : i32 to index
    %c0_144 = arith.constant 0 : index
    %407 = vector.load %arg12[%406, %c0_144] : memref<64x256xf32, #tpu.memory_space<vmem>>, vector<8x256xf32>
    tpu.vector_store %arg12[%406, %c0_144], %405 {strides = array<i32>} : memref<64x256xf32, #tpu.memory_space<vmem>>, vector<8x256xf32>,
    %c6_i32_145 = arith.constant 6 : i32
    %c8_i32_146 = arith.constant 8 : i32
    %408 = arith.muli %c6_i32_145, %c8_i32_146 : i32
    %409 = tpu.assume_multiple %408, 8 : i32
    %c7_i32_147 = arith.constant 7 : i32
    %410 = arith.subi %c7_i32_147, %c6_i32_145 : i32
    %c8_i32_148 = arith.constant 8 : i32
    %411 = arith.muli %410, %c8_i32_148 : i32
    %412 = tpu.assume_multiple %411, 8 : i32
    %413 = arith.index_cast %409 : i32 to index
    %c0_149 = arith.constant 0 : index
    %414 = vector.load %arg12[%413, %c0_149] : memref<64x256xf32, #tpu.memory_space<vmem>>, vector<8x256xf32>
    %415 = arith.index_cast %412 : i32 to index
    %c0_150 = arith.constant 0 : index
    %416 = vector.load %arg13[%415, %c0_150] : memref<64x256xf32, #tpu.memory_space<vmem>>, vector<8x256xf32>
    %417 = arith.addf %414, %416 : vector<8x256xf32>
    %418 = arith.index_cast %409 : i32 to index
    %c0_151 = arith.constant 0 : index
    %419 = vector.load %arg12[%418, %c0_151] : memref<64x256xf32, #tpu.memory_space<vmem>>, vector<8x256xf32>
    tpu.vector_store %arg12[%418, %c0_151], %417 {strides = array<i32>} : memref<64x256xf32, #tpu.memory_space<vmem>>, vector<8x256xf32>,
    %c7_i32_152 = arith.constant 7 : i32
    %c8_i32_153 = arith.constant 8 : i32
    %420 = arith.muli %c7_i32_152, %c8_i32_153 : i32
    %421 = tpu.assume_multiple %420, 8 : i32
    %c7_i32_154 = arith.constant 7 : i32
    %422 = arith.subi %c7_i32_154, %c7_i32_152 : i32
    %c8_i32_155 = arith.constant 8 : i32
    %423 = arith.muli %422, %c8_i32_155 : i32
    %424 = tpu.assume_multiple %423, 8 : i32
    %425 = arith.index_cast %421 : i32 to index
    %c0_156 = arith.constant 0 : index
    %426 = vector.load %arg12[%425, %c0_156] : memref<64x256xf32, #tpu.memory_space<vmem>>, vector<8x256xf32>
    %427 = arith.index_cast %424 : i32 to index
    %c0_157 = arith.constant 0 : index
    %428 = vector.load %arg13[%427, %c0_157] : memref<64x256xf32, #tpu.memory_space<vmem>>, vector<8x256xf32>
    %429 = arith.addf %426, %428 : vector<8x256xf32>
    %430 = arith.index_cast %421 : i32 to index
    %c0_158 = arith.constant 0 : index
    %431 = vector.load %arg12[%430, %c0_158] : memref<64x256xf32, #tpu.memory_space<vmem>>, vector<8x256xf32>
    tpu.vector_store %arg12[%430, %c0_158], %429 {strides = array<i32>} : memref<64x256xf32, #tpu.memory_space<vmem>>, vector<8x256xf32>,
    %c8_i32_159 = arith.constant 8 : i32
    %c0_160 = arith.constant 0 : index
    %c0_161 = arith.constant 0 : index
    %432 = vector.load %arg7[%c0_160, %c0_161] : memref<32x256xbf16, #tpu.memory_space<vmem>>, vector<32x256xbf16>
    %cst_162 = arith.constant 0.000000e+00 : f32
    %433 = vector.broadcast %cst_162 : f32 to vector<16x32xf32>
    %c0_i32_163 = arith.constant 0 : i32
    %c8_i32_164 = arith.constant 8 : i32
    %434 = arith.muli %c0_i32_163, %c8_i32_164 : i32
    %435 = tpu.assume_multiple %434, 8 : i32
    %c7_i32_165 = arith.constant 7 : i32
    %436 = arith.subi %c7_i32_165, %c0_i32_163 : i32
    %c8_i32_166 = arith.constant 8 : i32
    %437 = arith.muli %436, %c8_i32_166 : i32
    %438 = tpu.assume_multiple %437, 8 : i32
    %439 = arith.truncf %433 : vector<16x32xf32> to vector<16x32xbf16>
    %cst_167 = arith.constant dense<0.000000e+00> : vector<16x256xf32>
    %440 = tpu.matmul %439, %432, %cst_167 {dimension_numbers = #tpu.dot_dimension_numbers<[1], [0], [0], [1], [0, 0, 1, 1], [], []>} : vector<16x32xbf16>, vector<32x256xbf16>, vector<16x256xf32> -> vector<16x256xf32>
    %441 = arith.index_cast %435 : i32 to index
    %c0_168 = arith.constant 0 : index
    %442 = vector.load %arg12[%441, %c0_168] : memref<64x256xf32, #tpu.memory_space<vmem>>, vector<8x128xf32>
    %443 = vector.extract_strided_slice %440 {offsets = [0, 0], sizes = [8, 128], strides = [1, 1]} : vector<16x256xf32> to vector<8x128xf32>
    %444 = arith.addf %442, %443 : vector<8x128xf32>
    %445 = arith.index_cast %438 : i32 to index
    %c128_169 = arith.constant 128 : index
    %446 = vector.load %arg12[%445, %c128_169] : memref<64x256xf32, #tpu.memory_space<vmem>>, vector<8x128xf32>
    %447 = vector.extract_strided_slice %440 {offsets = [8, 128], sizes = [8, 128], strides = [1, 1]} : vector<16x256xf32> to vector<8x128xf32>
    %448 = arith.addf %446, %447 : vector<8x128xf32>
    %449 = tpu.concatenate %444, %448 in 0 : vector<8x128xf32>, vector<8x128xf32> -> vector<16x128xf32>
    %450 = vector.extract_strided_slice %449 {offsets = [0, 0], sizes = [16, 96], strides = [1, 1]} : vector<16x128xf32> to vector<16x96xf32>
    %cst_170 = arith.constant 5.000000e-01 : f32
    %451 = vector.broadcast %cst_170 : f32 to vector<16x96xf32>
    %452 = arith.mulf %451, %450 : vector<16x96xf32>
    %453 = math.tanh %452 : vector<16x96xf32>
    %cst_171 = arith.constant 5.000000e-01 : f32
    %454 = vector.broadcast %cst_171 : f32 to vector<16x96xf32>
    %455 = arith.mulf %454, %453 : vector<16x96xf32>
    %cst_172 = arith.constant 5.000000e-01 : f32
    %456 = vector.broadcast %cst_172 : f32 to vector<16x96xf32>
    %457 = arith.addf %455, %456 : vector<16x96xf32>
    %458 = vector.extract_strided_slice %449 {offsets = [0, 96], sizes = [16, 32], strides = [1, 1]} : vector<16x128xf32> to vector<16x32xf32>
    %459 = math.tanh %458 : vector<16x32xf32>
    %460 = vector.extract_strided_slice %457 {offsets = [0, 32], sizes = [16, 32], strides = [1, 1]} : vector<16x96xf32> to vector<16x32xf32>
    %461 = arith.mulf %460, %433 : vector<16x32xf32>
    %462 = vector.extract_strided_slice %457 {offsets = [0, 0], sizes = [16, 32], strides = [1, 1]} : vector<16x96xf32> to vector<16x32xf32>
    %463 = arith.mulf %462, %459 : vector<16x32xf32>
    %464 = arith.addf %461, %463 : vector<16x32xf32>
    %465 = vector.extract_strided_slice %457 {offsets = [0, 64], sizes = [16, 32], strides = [1, 1]} : vector<16x96xf32> to vector<16x32xf32>
    %466 = math.tanh %464 : vector<16x32xf32>
    %467 = arith.mulf %465, %466 : vector<16x32xf32>
    %468 = vector.extract_strided_slice %467 {offsets = [0, 0], sizes = [8, 32], strides = [1, 1]} : vector<16x32xf32> to vector<8x32xf32>
    %469 = vector.extract_strided_slice %467 {offsets = [8, 0], sizes = [8, 32], strides = [1, 1]} : vector<16x32xf32> to vector<8x32xf32>
    %470 = tpu.concatenate %468, %469 in 1 : vector<8x32xf32>, vector<8x32xf32> -> vector<8x64xf32>
    %471 = arith.index_cast %435 : i32 to index
    %c0_173 = arith.constant 0 : index
    %472 = vector.load %arg14[%471, %c0_173] : memref<64x64xf32, #tpu.memory_space<vmem>>, vector<8x64xf32>
    tpu.vector_store %arg14[%471, %c0_173], %470 {strides = array<i32>} : memref<64x64xf32, #tpu.memory_space<vmem>>, vector<8x64xf32>,
    %c1_i32_174 = arith.constant 1 : i32
    %c8_i32_175 = arith.constant 8 : i32
    %473 = arith.muli %c1_i32_174, %c8_i32_175 : i32
    %474 = tpu.assume_multiple %473, 8 : i32
    %c7_i32_176 = arith.constant 7 : i32
    %475 = arith.subi %c7_i32_176, %c1_i32_174 : i32
    %c8_i32_177 = arith.constant 8 : i32
    %476 = arith.muli %475, %c8_i32_177 : i32
    %477 = tpu.assume_multiple %476, 8 : i32
    %478 = arith.truncf %467 : vector<16x32xf32> to vector<16x32xbf16>
    %cst_178 = arith.constant dense<0.000000e+00> : vector<16x256xf32>
    %479 = tpu.matmul %478, %432, %cst_178 {dimension_numbers = #tpu.dot_dimension_numbers<[1], [0], [0], [1], [0, 0, 1, 1], [], []>} : vector<16x32xbf16>, vector<32x256xbf16>, vector<16x256xf32> -> vector<16x256xf32>
    %480 = arith.index_cast %474 : i32 to index
    %c0_179 = arith.constant 0 : index
    %481 = vector.load %arg12[%480, %c0_179] : memref<64x256xf32, #tpu.memory_space<vmem>>, vector<8x128xf32>
    %482 = vector.extract_strided_slice %479 {offsets = [0, 0], sizes = [8, 128], strides = [1, 1]} : vector<16x256xf32> to vector<8x128xf32>
    %483 = arith.addf %481, %482 : vector<8x128xf32>
    %484 = arith.index_cast %477 : i32 to index
    %c128_180 = arith.constant 128 : index
    %485 = vector.load %arg12[%484, %c128_180] : memref<64x256xf32, #tpu.memory_space<vmem>>, vector<8x128xf32>
    %486 = vector.extract_strided_slice %479 {offsets = [8, 128], sizes = [8, 128], strides = [1, 1]} : vector<16x256xf32> to vector<8x128xf32>
    %487 = arith.addf %485, %486 : vector<8x128xf32>
    %488 = tpu.concatenate %483, %487 in 0 : vector<8x128xf32>, vector<8x128xf32> -> vector<16x128xf32>
    %489 = vector.extract_strided_slice %488 {offsets = [0, 0], sizes = [16, 96], strides = [1, 1]} : vector<16x128xf32> to vector<16x96xf32>
    %cst_181 = arith.constant 5.000000e-01 : f32
    %490 = vector.broadcast %cst_181 : f32 to vector<16x96xf32>
    %491 = arith.mulf %490, %489 : vector<16x96xf32>
    %492 = math.tanh %491 : vector<16x96xf32>
    %cst_182 = arith.constant 5.000000e-01 : f32
    %493 = vector.broadcast %cst_182 : f32 to vector<16x96xf32>
    %494 = arith.mulf %493, %492 : vector<16x96xf32>
    %cst_183 = arith.constant 5.000000e-01 : f32
    %495 = vector.broadcast %cst_183 : f32 to vector<16x96xf32>
    %496 = arith.addf %494, %495 : vector<16x96xf32>
    %497 = vector.extract_strided_slice %488 {offsets = [0, 96], sizes = [16, 32], strides = [1, 1]} : vector<16x128xf32> to vector<16x32xf32>
    %498 = math.tanh %497 : vector<16x32xf32>
    %499 = vector.extract_strided_slice %496 {offsets = [0, 32], sizes = [16, 32], strides = [1, 1]} : vector<16x96xf32> to vector<16x32xf32>
    %500 = arith.mulf %499, %464 : vector<16x32xf32>
    %501 = vector.extract_strided_slice %496 {offsets = [0, 0], sizes = [16, 32], strides = [1, 1]} : vector<16x96xf32> to vector<16x32xf32>
    %502 = arith.mulf %501, %498 : vector<16x32xf32>
    %503 = arith.addf %500, %502 : vector<16x32xf32>
    %504 = vector.extract_strided_slice %496 {offsets = [0, 64], sizes = [16, 32], strides = [1, 1]} : vector<16x96xf32> to vector<16x32xf32>
    %505 = math.tanh %503 : vector<16x32xf32>
    %506 = arith.mulf %504, %505 : vector<16x32xf32>
    %507 = vector.extract_strided_slice %506 {offsets = [0, 0], sizes = [8, 32], strides = [1, 1]} : vector<16x32xf32> to vector<8x32xf32>
    %508 = vector.extract_strided_slice %506 {offsets = [8, 0], sizes = [8, 32], strides = [1, 1]} : vector<16x32xf32> to vector<8x32xf32>
    %509 = tpu.concatenate %507, %508 in 1 : vector<8x32xf32>, vector<8x32xf32> -> vector<8x64xf32>
    %510 = arith.index_cast %474 : i32 to index
    %c0_184 = arith.constant 0 : index
    %511 = vector.load %arg14[%510, %c0_184] : memref<64x64xf32, #tpu.memory_space<vmem>>, vector<8x64xf32>
    tpu.vector_store %arg14[%510, %c0_184], %509 {strides = array<i32>} : memref<64x64xf32, #tpu.memory_space<vmem>>, vector<8x64xf32>,
    %c2_i32_185 = arith.constant 2 : i32
    %c8_i32_186 = arith.constant 8 : i32
    %512 = arith.muli %c2_i32_185, %c8_i32_186 : i32
    %513 = tpu.assume_multiple %512, 8 : i32
    %c7_i32_187 = arith.constant 7 : i32
    %514 = arith.subi %c7_i32_187, %c2_i32_185 : i32
    %c8_i32_188 = arith.constant 8 : i32
    %515 = arith.muli %514, %c8_i32_188 : i32
    %516 = tpu.assume_multiple %515, 8 : i32
    %517 = arith.truncf %506 : vector<16x32xf32> to vector<16x32xbf16>
    %cst_189 = arith.constant dense<0.000000e+00> : vector<16x256xf32>
    %518 = tpu.matmul %517, %432, %cst_189 {dimension_numbers = #tpu.dot_dimension_numbers<[1], [0], [0], [1], [0, 0, 1, 1], [], []>} : vector<16x32xbf16>, vector<32x256xbf16>, vector<16x256xf32> -> vector<16x256xf32>
    %519 = arith.index_cast %513 : i32 to index
    %c0_190 = arith.constant 0 : index
    %520 = vector.load %arg12[%519, %c0_190] : memref<64x256xf32, #tpu.memory_space<vmem>>, vector<8x128xf32>
    %521 = vector.extract_strided_slice %518 {offsets = [0, 0], sizes = [8, 128], strides = [1, 1]} : vector<16x256xf32> to vector<8x128xf32>
    %522 = arith.addf %520, %521 : vector<8x128xf32>
    %523 = arith.index_cast %516 : i32 to index
    %c128_191 = arith.constant 128 : index
    %524 = vector.load %arg12[%523, %c128_191] : memref<64x256xf32, #tpu.memory_space<vmem>>, vector<8x128xf32>
    %525 = vector.extract_strided_slice %518 {offsets = [8, 128], sizes = [8, 128], strides = [1, 1]} : vector<16x256xf32> to vector<8x128xf32>
    %526 = arith.addf %524, %525 : vector<8x128xf32>
    %527 = tpu.concatenate %522, %526 in 0 : vector<8x128xf32>, vector<8x128xf32> -> vector<16x128xf32>
    %528 = vector.extract_strided_slice %527 {offsets = [0, 0], sizes = [16, 96], strides = [1, 1]} : vector<16x128xf32> to vector<16x96xf32>
    %cst_192 = arith.constant 5.000000e-01 : f32
    %529 = vector.broadcast %cst_192 : f32 to vector<16x96xf32>
    %530 = arith.mulf %529, %528 : vector<16x96xf32>
    %531 = math.tanh %530 : vector<16x96xf32>
    %cst_193 = arith.constant 5.000000e-01 : f32
    %532 = vector.broadcast %cst_193 : f32 to vector<16x96xf32>
    %533 = arith.mulf %532, %531 : vector<16x96xf32>
    %cst_194 = arith.constant 5.000000e-01 : f32
    %534 = vector.broadcast %cst_194 : f32 to vector<16x96xf32>
    %535 = arith.addf %533, %534 : vector<16x96xf32>
    %536 = vector.extract_strided_slice %527 {offsets = [0, 96], sizes = [16, 32], strides = [1, 1]} : vector<16x128xf32> to vector<16x32xf32>
    %537 = math.tanh %536 : vector<16x32xf32>
    %538 = vector.extract_strided_slice %535 {offsets = [0, 32], sizes = [16, 32], strides = [1, 1]} : vector<16x96xf32> to vector<16x32xf32>
    %539 = arith.mulf %538, %503 : vector<16x32xf32>
    %540 = vector.extract_strided_slice %535 {offsets = [0, 0], sizes = [16, 32], strides = [1, 1]} : vector<16x96xf32> to vector<16x32xf32>
    %541 = arith.mulf %540, %537 : vector<16x32xf32>
    %542 = arith.addf %539, %541 : vector<16x32xf32>
    %543 = vector.extract_strided_slice %535 {offsets = [0, 64], sizes = [16, 32], strides = [1, 1]} : vector<16x96xf32> to vector<16x32xf32>
    %544 = math.tanh %542 : vector<16x32xf32>
    %545 = arith.mulf %543, %544 : vector<16x32xf32>
    %546 = vector.extract_strided_slice %545 {offsets = [0, 0], sizes = [8, 32], strides = [1, 1]} : vector<16x32xf32> to vector<8x32xf32>
    %547 = vector.extract_strided_slice %545 {offsets = [8, 0], sizes = [8, 32], strides = [1, 1]} : vector<16x32xf32> to vector<8x32xf32>
    %548 = tpu.concatenate %546, %547 in 1 : vector<8x32xf32>, vector<8x32xf32> -> vector<8x64xf32>
    %549 = arith.index_cast %513 : i32 to index
    %c0_195 = arith.constant 0 : index
    %550 = vector.load %arg14[%549, %c0_195] : memref<64x64xf32, #tpu.memory_space<vmem>>, vector<8x64xf32>
    tpu.vector_store %arg14[%549, %c0_195], %548 {strides = array<i32>} : memref<64x64xf32, #tpu.memory_space<vmem>>, vector<8x64xf32>,
    %c3_i32_196 = arith.constant 3 : i32
    %c8_i32_197 = arith.constant 8 : i32
    %551 = arith.muli %c3_i32_196, %c8_i32_197 : i32
    %552 = tpu.assume_multiple %551, 8 : i32
    %c7_i32_198 = arith.constant 7 : i32
    %553 = arith.subi %c7_i32_198, %c3_i32_196 : i32
    %c8_i32_199 = arith.constant 8 : i32
    %554 = arith.muli %553, %c8_i32_199 : i32
    %555 = tpu.assume_multiple %554, 8 : i32
    %556 = arith.truncf %545 : vector<16x32xf32> to vector<16x32xbf16>
    %cst_200 = arith.constant dense<0.000000e+00> : vector<16x256xf32>
    %557 = tpu.matmul %556, %432, %cst_200 {dimension_numbers = #tpu.dot_dimension_numbers<[1], [0], [0], [1], [0, 0, 1, 1], [], []>} : vector<16x32xbf16>, vector<32x256xbf16>, vector<16x256xf32> -> vector<16x256xf32>
    %558 = arith.index_cast %552 : i32 to index
    %c0_201 = arith.constant 0 : index
    %559 = vector.load %arg12[%558, %c0_201] : memref<64x256xf32, #tpu.memory_space<vmem>>, vector<8x128xf32>
    %560 = vector.extract_strided_slice %557 {offsets = [0, 0], sizes = [8, 128], strides = [1, 1]} : vector<16x256xf32> to vector<8x128xf32>
    %561 = arith.addf %559, %560 : vector<8x128xf32>
    %562 = arith.index_cast %555 : i32 to index
    %c128_202 = arith.constant 128 : index
    %563 = vector.load %arg12[%562, %c128_202] : memref<64x256xf32, #tpu.memory_space<vmem>>, vector<8x128xf32>
    %564 = vector.extract_strided_slice %557 {offsets = [8, 128], sizes = [8, 128], strides = [1, 1]} : vector<16x256xf32> to vector<8x128xf32>
    %565 = arith.addf %563, %564 : vector<8x128xf32>
    %566 = tpu.concatenate %561, %565 in 0 : vector<8x128xf32>, vector<8x128xf32> -> vector<16x128xf32>
    %567 = vector.extract_strided_slice %566 {offsets = [0, 0], sizes = [16, 96], strides = [1, 1]} : vector<16x128xf32> to vector<16x96xf32>
    %cst_203 = arith.constant 5.000000e-01 : f32
    %568 = vector.broadcast %cst_203 : f32 to vector<16x96xf32>
    %569 = arith.mulf %568, %567 : vector<16x96xf32>
    %570 = math.tanh %569 : vector<16x96xf32>
    %cst_204 = arith.constant 5.000000e-01 : f32
    %571 = vector.broadcast %cst_204 : f32 to vector<16x96xf32>
    %572 = arith.mulf %571, %570 : vector<16x96xf32>
    %cst_205 = arith.constant 5.000000e-01 : f32
    %573 = vector.broadcast %cst_205 : f32 to vector<16x96xf32>
    %574 = arith.addf %572, %573 : vector<16x96xf32>
    %575 = vector.extract_strided_slice %566 {offsets = [0, 96], sizes = [16, 32], strides = [1, 1]} : vector<16x128xf32> to vector<16x32xf32>
    %576 = math.tanh %575 : vector<16x32xf32>
    %577 = vector.extract_strided_slice %574 {offsets = [0, 32], sizes = [16, 32], strides = [1, 1]} : vector<16x96xf32> to vector<16x32xf32>
    %578 = arith.mulf %577, %542 : vector<16x32xf32>
    %579 = vector.extract_strided_slice %574 {offsets = [0, 0], sizes = [16, 32], strides = [1, 1]} : vector<16x96xf32> to vector<16x32xf32>
    %580 = arith.mulf %579, %576 : vector<16x32xf32>
    %581 = arith.addf %578, %580 : vector<16x32xf32>
    %582 = vector.extract_strided_slice %574 {offsets = [0, 64], sizes = [16, 32], strides = [1, 1]} : vector<16x96xf32> to vector<16x32xf32>
    %583 = math.tanh %581 : vector<16x32xf32>
    %584 = arith.mulf %582, %583 : vector<16x32xf32>
    %585 = vector.extract_strided_slice %584 {offsets = [0, 0], sizes = [8, 32], strides = [1, 1]} : vector<16x32xf32> to vector<8x32xf32>
    %586 = vector.extract_strided_slice %584 {offsets = [8, 0], sizes = [8, 32], strides = [1, 1]} : vector<16x32xf32> to vector<8x32xf32>
    %587 = tpu.concatenate %585, %586 in 1 : vector<8x32xf32>, vector<8x32xf32> -> vector<8x64xf32>
    %588 = arith.index_cast %552 : i32 to index
    %c0_206 = arith.constant 0 : index
    %589 = vector.load %arg14[%588, %c0_206] : memref<64x64xf32, #tpu.memory_space<vmem>>, vector<8x64xf32>
    tpu.vector_store %arg14[%588, %c0_206], %587 {strides = array<i32>} : memref<64x64xf32, #tpu.memory_space<vmem>>, vector<8x64xf32>,
    %c4_i32_207 = arith.constant 4 : i32
    %c8_i32_208 = arith.constant 8 : i32
    %590 = arith.muli %c4_i32_207, %c8_i32_208 : i32
    %591 = tpu.assume_multiple %590, 8 : i32
    %c7_i32_209 = arith.constant 7 : i32
    %592 = arith.subi %c7_i32_209, %c4_i32_207 : i32
    %c8_i32_210 = arith.constant 8 : i32
    %593 = arith.muli %592, %c8_i32_210 : i32
    %594 = tpu.assume_multiple %593, 8 : i32
    %595 = arith.truncf %584 : vector<16x32xf32> to vector<16x32xbf16>
    %cst_211 = arith.constant dense<0.000000e+00> : vector<16x256xf32>
    %596 = tpu.matmul %595, %432, %cst_211 {dimension_numbers = #tpu.dot_dimension_numbers<[1], [0], [0], [1], [0, 0, 1, 1], [], []>} : vector<16x32xbf16>, vector<32x256xbf16>, vector<16x256xf32> -> vector<16x256xf32>
    %597 = arith.index_cast %591 : i32 to index
    %c0_212 = arith.constant 0 : index
    %598 = vector.load %arg12[%597, %c0_212] : memref<64x256xf32, #tpu.memory_space<vmem>>, vector<8x128xf32>
    %599 = vector.extract_strided_slice %596 {offsets = [0, 0], sizes = [8, 128], strides = [1, 1]} : vector<16x256xf32> to vector<8x128xf32>
    %600 = arith.addf %598, %599 : vector<8x128xf32>
    %601 = arith.index_cast %594 : i32 to index
    %c128_213 = arith.constant 128 : index
    %602 = vector.load %arg12[%601, %c128_213] : memref<64x256xf32, #tpu.memory_space<vmem>>, vector<8x128xf32>
    %603 = vector.extract_strided_slice %596 {offsets = [8, 128], sizes = [8, 128], strides = [1, 1]} : vector<16x256xf32> to vector<8x128xf32>
    %604 = arith.addf %602, %603 : vector<8x128xf32>
    %605 = tpu.concatenate %600, %604 in 0 : vector<8x128xf32>, vector<8x128xf32> -> vector<16x128xf32>
    %606 = vector.extract_strided_slice %605 {offsets = [0, 0], sizes = [16, 96], strides = [1, 1]} : vector<16x128xf32> to vector<16x96xf32>
    %cst_214 = arith.constant 5.000000e-01 : f32
    %607 = vector.broadcast %cst_214 : f32 to vector<16x96xf32>
    %608 = arith.mulf %607, %606 : vector<16x96xf32>
    %609 = math.tanh %608 : vector<16x96xf32>
    %cst_215 = arith.constant 5.000000e-01 : f32
    %610 = vector.broadcast %cst_215 : f32 to vector<16x96xf32>
    %611 = arith.mulf %610, %609 : vector<16x96xf32>
    %cst_216 = arith.constant 5.000000e-01 : f32
    %612 = vector.broadcast %cst_216 : f32 to vector<16x96xf32>
    %613 = arith.addf %611, %612 : vector<16x96xf32>
    %614 = vector.extract_strided_slice %605 {offsets = [0, 96], sizes = [16, 32], strides = [1, 1]} : vector<16x128xf32> to vector<16x32xf32>
    %615 = math.tanh %614 : vector<16x32xf32>
    %616 = vector.extract_strided_slice %613 {offsets = [0, 32], sizes = [16, 32], strides = [1, 1]} : vector<16x96xf32> to vector<16x32xf32>
    %617 = arith.mulf %616, %581 : vector<16x32xf32>
    %618 = vector.extract_strided_slice %613 {offsets = [0, 0], sizes = [16, 32], strides = [1, 1]} : vector<16x96xf32> to vector<16x32xf32>
    %619 = arith.mulf %618, %615 : vector<16x32xf32>
    %620 = arith.addf %617, %619 : vector<16x32xf32>
    %621 = vector.extract_strided_slice %613 {offsets = [0, 64], sizes = [16, 32], strides = [1, 1]} : vector<16x96xf32> to vector<16x32xf32>
    %622 = math.tanh %620 : vector<16x32xf32>
    %623 = arith.mulf %621, %622 : vector<16x32xf32>
    %624 = vector.extract_strided_slice %623 {offsets = [0, 0], sizes = [8, 32], strides = [1, 1]} : vector<16x32xf32> to vector<8x32xf32>
    %625 = vector.extract_strided_slice %623 {offsets = [8, 0], sizes = [8, 32], strides = [1, 1]} : vector<16x32xf32> to vector<8x32xf32>
    %626 = tpu.concatenate %624, %625 in 1 : vector<8x32xf32>, vector<8x32xf32> -> vector<8x64xf32>
    %627 = arith.index_cast %591 : i32 to index
    %c0_217 = arith.constant 0 : index
    %628 = vector.load %arg14[%627, %c0_217] : memref<64x64xf32, #tpu.memory_space<vmem>>, vector<8x64xf32>
    tpu.vector_store %arg14[%627, %c0_217], %626 {strides = array<i32>} : memref<64x64xf32, #tpu.memory_space<vmem>>, vector<8x64xf32>,
    %c5_i32_218 = arith.constant 5 : i32
    %c8_i32_219 = arith.constant 8 : i32
    %629 = arith.muli %c5_i32_218, %c8_i32_219 : i32
    %630 = tpu.assume_multiple %629, 8 : i32
    %c7_i32_220 = arith.constant 7 : i32
    %631 = arith.subi %c7_i32_220, %c5_i32_218 : i32
    %c8_i32_221 = arith.constant 8 : i32
    %632 = arith.muli %631, %c8_i32_221 : i32
    %633 = tpu.assume_multiple %632, 8 : i32
    %634 = arith.truncf %623 : vector<16x32xf32> to vector<16x32xbf16>
    %cst_222 = arith.constant dense<0.000000e+00> : vector<16x256xf32>
    %635 = tpu.matmul %634, %432, %cst_222 {dimension_numbers = #tpu.dot_dimension_numbers<[1], [0], [0], [1], [0, 0, 1, 1], [], []>} : vector<16x32xbf16>, vector<32x256xbf16>, vector<16x256xf32> -> vector<16x256xf32>
    %636 = arith.index_cast %630 : i32 to index
    %c0_223 = arith.constant 0 : index
    %637 = vector.load %arg12[%636, %c0_223] : memref<64x256xf32, #tpu.memory_space<vmem>>, vector<8x128xf32>
    %638 = vector.extract_strided_slice %635 {offsets = [0, 0], sizes = [8, 128], strides = [1, 1]} : vector<16x256xf32> to vector<8x128xf32>
    %639 = arith.addf %637, %638 : vector<8x128xf32>
    %640 = arith.index_cast %633 : i32 to index
    %c128_224 = arith.constant 128 : index
    %641 = vector.load %arg12[%640, %c128_224] : memref<64x256xf32, #tpu.memory_space<vmem>>, vector<8x128xf32>
    %642 = vector.extract_strided_slice %635 {offsets = [8, 128], sizes = [8, 128], strides = [1, 1]} : vector<16x256xf32> to vector<8x128xf32>
    %643 = arith.addf %641, %642 : vector<8x128xf32>
    %644 = tpu.concatenate %639, %643 in 0 : vector<8x128xf32>, vector<8x128xf32> -> vector<16x128xf32>
    %645 = vector.extract_strided_slice %644 {offsets = [0, 0], sizes = [16, 96], strides = [1, 1]} : vector<16x128xf32> to vector<16x96xf32>
    %cst_225 = arith.constant 5.000000e-01 : f32
    %646 = vector.broadcast %cst_225 : f32 to vector<16x96xf32>
    %647 = arith.mulf %646, %645 : vector<16x96xf32>
    %648 = math.tanh %647 : vector<16x96xf32>
    %cst_226 = arith.constant 5.000000e-01 : f32
    %649 = vector.broadcast %cst_226 : f32 to vector<16x96xf32>
    %650 = arith.mulf %649, %648 : vector<16x96xf32>
    %cst_227 = arith.constant 5.000000e-01 : f32
    %651 = vector.broadcast %cst_227 : f32 to vector<16x96xf32>
    %652 = arith.addf %650, %651 : vector<16x96xf32>
    %653 = vector.extract_strided_slice %644 {offsets = [0, 96], sizes = [16, 32], strides = [1, 1]} : vector<16x128xf32> to vector<16x32xf32>
    %654 = math.tanh %653 : vector<16x32xf32>
    %655 = vector.extract_strided_slice %652 {offsets = [0, 32], sizes = [16, 32], strides = [1, 1]} : vector<16x96xf32> to vector<16x32xf32>
    %656 = arith.mulf %655, %620 : vector<16x32xf32>
    %657 = vector.extract_strided_slice %652 {offsets = [0, 0], sizes = [16, 32], strides = [1, 1]} : vector<16x96xf32> to vector<16x32xf32>
    %658 = arith.mulf %657, %654 : vector<16x32xf32>
    %659 = arith.addf %656, %658 : vector<16x32xf32>
    %660 = vector.extract_strided_slice %652 {offsets = [0, 64], sizes = [16, 32], strides = [1, 1]} : vector<16x96xf32> to vector<16x32xf32>
    %661 = math.tanh %659 : vector<16x32xf32>
    %662 = arith.mulf %660, %661 : vector<16x32xf32>
    %663 = vector.extract_strided_slice %662 {offsets = [0, 0], sizes = [8, 32], strides = [1, 1]} : vector<16x32xf32> to vector<8x32xf32>
    %664 = vector.extract_strided_slice %662 {offsets = [8, 0], sizes = [8, 32], strides = [1, 1]} : vector<16x32xf32> to vector<8x32xf32>
    %665 = tpu.concatenate %663, %664 in 1 : vector<8x32xf32>, vector<8x32xf32> -> vector<8x64xf32>
    %666 = arith.index_cast %630 : i32 to index
    %c0_228 = arith.constant 0 : index
    %667 = vector.load %arg14[%666, %c0_228] : memref<64x64xf32, #tpu.memory_space<vmem>>, vector<8x64xf32>
    tpu.vector_store %arg14[%666, %c0_228], %665 {strides = array<i32>} : memref<64x64xf32, #tpu.memory_space<vmem>>, vector<8x64xf32>,
    %c6_i32_229 = arith.constant 6 : i32
    %c8_i32_230 = arith.constant 8 : i32
    %668 = arith.muli %c6_i32_229, %c8_i32_230 : i32
    %669 = tpu.assume_multiple %668, 8 : i32
    %c7_i32_231 = arith.constant 7 : i32
    %670 = arith.subi %c7_i32_231, %c6_i32_229 : i32
    %c8_i32_232 = arith.constant 8 : i32
    %671 = arith.muli %670, %c8_i32_232 : i32
    %672 = tpu.assume_multiple %671, 8 : i32
    %673 = arith.truncf %662 : vector<16x32xf32> to vector<16x32xbf16>
    %cst_233 = arith.constant dense<0.000000e+00> : vector<16x256xf32>
    %674 = tpu.matmul %673, %432, %cst_233 {dimension_numbers = #tpu.dot_dimension_numbers<[1], [0], [0], [1], [0, 0, 1, 1], [], []>} : vector<16x32xbf16>, vector<32x256xbf16>, vector<16x256xf32> -> vector<16x256xf32>
    %675 = arith.index_cast %669 : i32 to index
    %c0_234 = arith.constant 0 : index
    %676 = vector.load %arg12[%675, %c0_234] : memref<64x256xf32, #tpu.memory_space<vmem>>, vector<8x128xf32>
    %677 = vector.extract_strided_slice %674 {offsets = [0, 0], sizes = [8, 128], strides = [1, 1]} : vector<16x256xf32> to vector<8x128xf32>
    %678 = arith.addf %676, %677 : vector<8x128xf32>
    %679 = arith.index_cast %672 : i32 to index
    %c128_235 = arith.constant 128 : index
    %680 = vector.load %arg12[%679, %c128_235] : memref<64x256xf32, #tpu.memory_space<vmem>>, vector<8x128xf32>
    %681 = vector.extract_strided_slice %674 {offsets = [8, 128], sizes = [8, 128], strides = [1, 1]} : vector<16x256xf32> to vector<8x128xf32>
    %682 = arith.addf %680, %681 : vector<8x128xf32>
    %683 = tpu.concatenate %678, %682 in 0 : vector<8x128xf32>, vector<8x128xf32> -> vector<16x128xf32>
    %684 = vector.extract_strided_slice %683 {offsets = [0, 0], sizes = [16, 96], strides = [1, 1]} : vector<16x128xf32> to vector<16x96xf32>
    %cst_236 = arith.constant 5.000000e-01 : f32
    %685 = vector.broadcast %cst_236 : f32 to vector<16x96xf32>
    %686 = arith.mulf %685, %684 : vector<16x96xf32>
    %687 = math.tanh %686 : vector<16x96xf32>
    %cst_237 = arith.constant 5.000000e-01 : f32
    %688 = vector.broadcast %cst_237 : f32 to vector<16x96xf32>
    %689 = arith.mulf %688, %687 : vector<16x96xf32>
    %cst_238 = arith.constant 5.000000e-01 : f32
    %690 = vector.broadcast %cst_238 : f32 to vector<16x96xf32>
    %691 = arith.addf %689, %690 : vector<16x96xf32>
    %692 = vector.extract_strided_slice %683 {offsets = [0, 96], sizes = [16, 32], strides = [1, 1]} : vector<16x128xf32> to vector<16x32xf32>
    %693 = math.tanh %692 : vector<16x32xf32>
    %694 = vector.extract_strided_slice %691 {offsets = [0, 32], sizes = [16, 32], strides = [1, 1]} : vector<16x96xf32> to vector<16x32xf32>
    %695 = arith.mulf %694, %659 : vector<16x32xf32>
    %696 = vector.extract_strided_slice %691 {offsets = [0, 0], sizes = [16, 32], strides = [1, 1]} : vector<16x96xf32> to vector<16x32xf32>
    %697 = arith.mulf %696, %693 : vector<16x32xf32>
    %698 = arith.addf %695, %697 : vector<16x32xf32>
    %699 = vector.extract_strided_slice %691 {offsets = [0, 64], sizes = [16, 32], strides = [1, 1]} : vector<16x96xf32> to vector<16x32xf32>
    %700 = math.tanh %698 : vector<16x32xf32>
    %701 = arith.mulf %699, %700 : vector<16x32xf32>
    %702 = vector.extract_strided_slice %701 {offsets = [0, 0], sizes = [8, 32], strides = [1, 1]} : vector<16x32xf32> to vector<8x32xf32>
    %703 = vector.extract_strided_slice %701 {offsets = [8, 0], sizes = [8, 32], strides = [1, 1]} : vector<16x32xf32> to vector<8x32xf32>
    %704 = tpu.concatenate %702, %703 in 1 : vector<8x32xf32>, vector<8x32xf32> -> vector<8x64xf32>
    %705 = arith.index_cast %669 : i32 to index
    %c0_239 = arith.constant 0 : index
    %706 = vector.load %arg14[%705, %c0_239] : memref<64x64xf32, #tpu.memory_space<vmem>>, vector<8x64xf32>
    tpu.vector_store %arg14[%705, %c0_239], %704 {strides = array<i32>} : memref<64x64xf32, #tpu.memory_space<vmem>>, vector<8x64xf32>,
    %c7_i32_240 = arith.constant 7 : i32
    %c8_i32_241 = arith.constant 8 : i32
    %707 = arith.muli %c7_i32_240, %c8_i32_241 : i32
    %708 = tpu.assume_multiple %707, 8 : i32
    %c7_i32_242 = arith.constant 7 : i32
    %709 = arith.subi %c7_i32_242, %c7_i32_240 : i32
    %c8_i32_243 = arith.constant 8 : i32
    %710 = arith.muli %709, %c8_i32_243 : i32
    %711 = tpu.assume_multiple %710, 8 : i32
    %712 = arith.truncf %701 : vector<16x32xf32> to vector<16x32xbf16>
    %cst_244 = arith.constant dense<0.000000e+00> : vector<16x256xf32>
    %713 = tpu.matmul %712, %432, %cst_244 {dimension_numbers = #tpu.dot_dimension_numbers<[1], [0], [0], [1], [0, 0, 1, 1], [], []>} : vector<16x32xbf16>, vector<32x256xbf16>, vector<16x256xf32> -> vector<16x256xf32>
    %714 = arith.index_cast %708 : i32 to index
    %c0_245 = arith.constant 0 : index
    %715 = vector.load %arg12[%714, %c0_245] : memref<64x256xf32, #tpu.memory_space<vmem>>, vector<8x128xf32>
    %716 = vector.extract_strided_slice %713 {offsets = [0, 0], sizes = [8, 128], strides = [1, 1]} : vector<16x256xf32> to vector<8x128xf32>
    %717 = arith.addf %715, %716 : vector<8x128xf32>
    %718 = arith.index_cast %711 : i32 to index
    %c128_246 = arith.constant 128 : index
    %719 = vector.load %arg12[%718, %c128_246] : memref<64x256xf32, #tpu.memory_space<vmem>>, vector<8x128xf32>
    %720 = vector.extract_strided_slice %713 {offsets = [8, 128], sizes = [8, 128], strides = [1, 1]} : vector<16x256xf32> to vector<8x128xf32>
    %721 = arith.addf %719, %720 : vector<8x128xf32>
    %722 = tpu.concatenate %717, %721 in 0 : vector<8x128xf32>, vector<8x128xf32> -> vector<16x128xf32>
    %723 = vector.extract_strided_slice %722 {offsets = [0, 0], sizes = [16, 96], strides = [1, 1]} : vector<16x128xf32> to vector<16x96xf32>
    %cst_247 = arith.constant 5.000000e-01 : f32
    %724 = vector.broadcast %cst_247 : f32 to vector<16x96xf32>
    %725 = arith.mulf %724, %723 : vector<16x96xf32>
    %726 = math.tanh %725 : vector<16x96xf32>
    %cst_248 = arith.constant 5.000000e-01 : f32
    %727 = vector.broadcast %cst_248 : f32 to vector<16x96xf32>
    %728 = arith.mulf %727, %726 : vector<16x96xf32>
    %cst_249 = arith.constant 5.000000e-01 : f32
    %729 = vector.broadcast %cst_249 : f32 to vector<16x96xf32>
    %730 = arith.addf %728, %729 : vector<16x96xf32>
    %731 = vector.extract_strided_slice %722 {offsets = [0, 96], sizes = [16, 32], strides = [1, 1]} : vector<16x128xf32> to vector<16x32xf32>
    %732 = math.tanh %731 : vector<16x32xf32>
    %733 = vector.extract_strided_slice %730 {offsets = [0, 32], sizes = [16, 32], strides = [1, 1]} : vector<16x96xf32> to vector<16x32xf32>
    %734 = arith.mulf %733, %698 : vector<16x32xf32>
    %735 = vector.extract_strided_slice %730 {offsets = [0, 0], sizes = [16, 32], strides = [1, 1]} : vector<16x96xf32> to vector<16x32xf32>
    %736 = arith.mulf %735, %732 : vector<16x32xf32>
    %737 = arith.addf %734, %736 : vector<16x32xf32>
    %738 = vector.extract_strided_slice %730 {offsets = [0, 64], sizes = [16, 32], strides = [1, 1]} : vector<16x96xf32> to vector<16x32xf32>
    %739 = math.tanh %737 : vector<16x32xf32>
    %740 = arith.mulf %738, %739 : vector<16x32xf32>
    %741 = vector.extract_strided_slice %740 {offsets = [0, 0], sizes = [8, 32], strides = [1, 1]} : vector<16x32xf32> to vector<8x32xf32>
    %742 = vector.extract_strided_slice %740 {offsets = [8, 0], sizes = [8, 32], strides = [1, 1]} : vector<16x32xf32> to vector<8x32xf32>
    %743 = tpu.concatenate %741, %742 in 1 : vector<8x32xf32>, vector<8x32xf32> -> vector<8x64xf32>
    %744 = arith.index_cast %708 : i32 to index
    %c0_250 = arith.constant 0 : index
    %745 = vector.load %arg14[%744, %c0_250] : memref<64x64xf32, #tpu.memory_space<vmem>>, vector<8x64xf32>
    tpu.vector_store %arg14[%744, %c0_250], %743 {strides = array<i32>} : memref<64x64xf32, #tpu.memory_space<vmem>>, vector<8x64xf32>,
    %c8_i32_251 = arith.constant 8 : i32
    %c0_252 = arith.constant 0 : index
    %c0_253 = arith.constant 0 : index
    %746 = vector.load %arg14[%c0_252, %c0_253] : memref<64x64xf32, #tpu.memory_space<vmem>>, vector<64x64xf32>
    %747 = vector.extract_strided_slice %746 {offsets = [0, 0], sizes = [64, 32], strides = [1, 1]} : vector<64x64xf32> to vector<64x32xf32>
    %c0_254 = arith.constant 0 : index
    %c0_255 = arith.constant 0 : index
    %748 = vector.load %arg8[%c0_254, %c0_255] : memref<32x128xf32, #tpu.memory_space<vmem>>, vector<32x128xf32>
    %cst_256 = arith.constant dense<0.000000e+00> : vector<64x128xf32>
    %749 = tpu.matmul %747, %748, %cst_256 {dimension_numbers = #tpu.dot_dimension_numbers<[1], [0], [0], [1], [0, 0, 1, 1], [], []>} : vector<64x32xf32>, vector<32x128xf32>, vector<64x128xf32> -> vector<64x128xf32>
    %c0_257 = arith.constant 0 : index
    %c0_258 = arith.constant 0 : index
    %750 = vector.load %arg11[%c0_257, %c0_258] : memref<64x128xf32, #tpu.memory_space<vmem>>, vector<64x128xf32>
    tpu.vector_store %arg11[%c0_257, %c0_258], %749 {strides = array<i32>} : memref<64x128xf32, #tpu.memory_space<vmem>>, vector<64x128xf32>,
    %751 = vector.extract_strided_slice %746 {offsets = [0, 32], sizes = [64, 32], strides = [1, 1]} : vector<64x64xf32> to vector<64x32xf32>
    %c0_259 = arith.constant 0 : index
    %c0_260 = arith.constant 0 : index
    %752 = vector.load %arg9[%c0_259, %c0_260] : memref<32x128xf32, #tpu.memory_space<vmem>>, vector<32x128xf32>
    %cst_261 = arith.constant dense<0.000000e+00> : vector<64x128xf32>
    %753 = tpu.matmul %751, %752, %cst_261 {dimension_numbers = #tpu.dot_dimension_numbers<[1], [0], [0], [1], [0, 0, 1, 1], [], []>} : vector<64x32xf32>, vector<32x128xf32>, vector<64x128xf32> -> vector<64x128xf32>
    %c0_262 = arith.constant 0 : index
    %c0_263 = arith.constant 0 : index
    %754 = vector.load %arg15[%c0_262, %c0_263] : memref<64x128xf32, #tpu.memory_space<vmem>>, vector<64x128xf32>
    tpu.vector_store %arg15[%c0_262, %c0_263], %753 {strides = array<i32>} : memref<64x128xf32, #tpu.memory_space<vmem>>, vector<64x128xf32>,
    %c0_264 = arith.constant 0 : index
    %c0_265 = arith.constant 0 : index
    %755 = vector.load %arg10[%c0_264, %c0_265] : memref<1x128xf32, #tpu.memory_space<vmem>>, vector<1x128xf32>
    %c0_i32_266 = arith.constant 0 : i32
    %c8_i32_267 = arith.constant 8 : i32
    %756 = arith.muli %c0_i32_266, %c8_i32_267 : i32
    %757 = tpu.assume_multiple %756, 8 : i32
    %c7_i32_268 = arith.constant 7 : i32
    %758 = arith.subi %c7_i32_268, %c0_i32_266 : i32
    %c8_i32_269 = arith.constant 8 : i32
    %759 = arith.muli %758, %c8_i32_269 : i32
    %760 = tpu.assume_multiple %759, 8 : i32
    %761 = arith.index_cast %757 : i32 to index
    %c0_270 = arith.constant 0 : index
    %762 = vector.load %arg11[%761, %c0_270] : memref<64x128xf32, #tpu.memory_space<vmem>>, vector<8x128xf32>
    %763 = arith.index_cast %760 : i32 to index
    %c0_271 = arith.constant 0 : index
    %764 = vector.load %arg15[%763, %c0_271] : memref<64x128xf32, #tpu.memory_space<vmem>>, vector<8x128xf32>
    %765 = arith.addf %762, %764 : vector<8x128xf32>
    %766 = vector.broadcast %755 : vector<1x128xf32> to vector<8x128xf32>
    %767 = arith.addf %765, %766 : vector<8x128xf32>
    %cst_272 = arith.constant 5.000000e-01 : f32
    %768 = vector.broadcast %cst_272 : f32 to vector<8x128xf32>
    %769 = arith.mulf %768, %767 : vector<8x128xf32>
    %770 = math.tanh %769 : vector<8x128xf32>
    %cst_273 = arith.constant 5.000000e-01 : f32
    %771 = vector.broadcast %cst_273 : f32 to vector<8x128xf32>
    %772 = arith.mulf %771, %770 : vector<8x128xf32>
    %cst_274 = arith.constant 5.000000e-01 : f32
    %773 = vector.broadcast %cst_274 : f32 to vector<8x128xf32>
    %774 = arith.addf %772, %773 : vector<8x128xf32>
    %775 = arith.index_cast %757 : i32 to index
    %c0_275 = arith.constant 0 : index
    %776 = vector.load %arg11[%775, %c0_275] : memref<64x128xf32, #tpu.memory_space<vmem>>, vector<8x128xf32>
    tpu.vector_store %arg11[%775, %c0_275], %774 {strides = array<i32>} : memref<64x128xf32, #tpu.memory_space<vmem>>, vector<8x128xf32>,
    %c1_i32_276 = arith.constant 1 : i32
    %c8_i32_277 = arith.constant 8 : i32
    %777 = arith.muli %c1_i32_276, %c8_i32_277 : i32
    %778 = tpu.assume_multiple %777, 8 : i32
    %c7_i32_278 = arith.constant 7 : i32
    %779 = arith.subi %c7_i32_278, %c1_i32_276 : i32
    %c8_i32_279 = arith.constant 8 : i32
    %780 = arith.muli %779, %c8_i32_279 : i32
    %781 = tpu.assume_multiple %780, 8 : i32
    %782 = arith.index_cast %778 : i32 to index
    %c0_280 = arith.constant 0 : index
    %783 = vector.load %arg11[%782, %c0_280] : memref<64x128xf32, #tpu.memory_space<vmem>>, vector<8x128xf32>
    %784 = arith.index_cast %781 : i32 to index
    %c0_281 = arith.constant 0 : index
    %785 = vector.load %arg15[%784, %c0_281] : memref<64x128xf32, #tpu.memory_space<vmem>>, vector<8x128xf32>
    %786 = arith.addf %783, %785 : vector<8x128xf32>
    %787 = vector.broadcast %755 : vector<1x128xf32> to vector<8x128xf32>
    %788 = arith.addf %786, %787 : vector<8x128xf32>
    %cst_282 = arith.constant 5.000000e-01 : f32
    %789 = vector.broadcast %cst_282 : f32 to vector<8x128xf32>
    %790 = arith.mulf %789, %788 : vector<8x128xf32>
    %791 = math.tanh %790 : vector<8x128xf32>
    %cst_283 = arith.constant 5.000000e-01 : f32
    %792 = vector.broadcast %cst_283 : f32 to vector<8x128xf32>
    %793 = arith.mulf %792, %791 : vector<8x128xf32>
    %cst_284 = arith.constant 5.000000e-01 : f32
    %794 = vector.broadcast %cst_284 : f32 to vector<8x128xf32>
    %795 = arith.addf %793, %794 : vector<8x128xf32>
    %796 = arith.index_cast %778 : i32 to index
    %c0_285 = arith.constant 0 : index
    %797 = vector.load %arg11[%796, %c0_285] : memref<64x128xf32, #tpu.memory_space<vmem>>, vector<8x128xf32>
    tpu.vector_store %arg11[%796, %c0_285], %795 {strides = array<i32>} : memref<64x128xf32, #tpu.memory_space<vmem>>, vector<8x128xf32>,
    %c2_i32_286 = arith.constant 2 : i32
    %c8_i32_287 = arith.constant 8 : i32
    %798 = arith.muli %c2_i32_286, %c8_i32_287 : i32
    %799 = tpu.assume_multiple %798, 8 : i32
    %c7_i32_288 = arith.constant 7 : i32
    %800 = arith.subi %c7_i32_288, %c2_i32_286 : i32
    %c8_i32_289 = arith.constant 8 : i32
    %801 = arith.muli %800, %c8_i32_289 : i32
    %802 = tpu.assume_multiple %801, 8 : i32
    %803 = arith.index_cast %799 : i32 to index
    %c0_290 = arith.constant 0 : index
    %804 = vector.load %arg11[%803, %c0_290] : memref<64x128xf32, #tpu.memory_space<vmem>>, vector<8x128xf32>
    %805 = arith.index_cast %802 : i32 to index
    %c0_291 = arith.constant 0 : index
    %806 = vector.load %arg15[%805, %c0_291] : memref<64x128xf32, #tpu.memory_space<vmem>>, vector<8x128xf32>
    %807 = arith.addf %804, %806 : vector<8x128xf32>
    %808 = vector.broadcast %755 : vector<1x128xf32> to vector<8x128xf32>
    %809 = arith.addf %807, %808 : vector<8x128xf32>
    %cst_292 = arith.constant 5.000000e-01 : f32
    %810 = vector.broadcast %cst_292 : f32 to vector<8x128xf32>
    %811 = arith.mulf %810, %809 : vector<8x128xf32>
    %812 = math.tanh %811 : vector<8x128xf32>
    %cst_293 = arith.constant 5.000000e-01 : f32
    %813 = vector.broadcast %cst_293 : f32 to vector<8x128xf32>
    %814 = arith.mulf %813, %812 : vector<8x128xf32>
    %cst_294 = arith.constant 5.000000e-01 : f32
    %815 = vector.broadcast %cst_294 : f32 to vector<8x128xf32>
    %816 = arith.addf %814, %815 : vector<8x128xf32>
    %817 = arith.index_cast %799 : i32 to index
    %c0_295 = arith.constant 0 : index
    %818 = vector.load %arg11[%817, %c0_295] : memref<64x128xf32, #tpu.memory_space<vmem>>, vector<8x128xf32>
    tpu.vector_store %arg11[%817, %c0_295], %816 {strides = array<i32>} : memref<64x128xf32, #tpu.memory_space<vmem>>, vector<8x128xf32>,
    %c3_i32_296 = arith.constant 3 : i32
    %c8_i32_297 = arith.constant 8 : i32
    %819 = arith.muli %c3_i32_296, %c8_i32_297 : i32
    %820 = tpu.assume_multiple %819, 8 : i32
    %c7_i32_298 = arith.constant 7 : i32
    %821 = arith.subi %c7_i32_298, %c3_i32_296 : i32
    %c8_i32_299 = arith.constant 8 : i32
    %822 = arith.muli %821, %c8_i32_299 : i32
    %823 = tpu.assume_multiple %822, 8 : i32
    %824 = arith.index_cast %820 : i32 to index
    %c0_300 = arith.constant 0 : index
    %825 = vector.load %arg11[%824, %c0_300] : memref<64x128xf32, #tpu.memory_space<vmem>>, vector<8x128xf32>
    %826 = arith.index_cast %823 : i32 to index
    %c0_301 = arith.constant 0 : index
    %827 = vector.load %arg15[%826, %c0_301] : memref<64x128xf32, #tpu.memory_space<vmem>>, vector<8x128xf32>
    %828 = arith.addf %825, %827 : vector<8x128xf32>
    %829 = vector.broadcast %755 : vector<1x128xf32> to vector<8x128xf32>
    %830 = arith.addf %828, %829 : vector<8x128xf32>
    %cst_302 = arith.constant 5.000000e-01 : f32
    %831 = vector.broadcast %cst_302 : f32 to vector<8x128xf32>
    %832 = arith.mulf %831, %830 : vector<8x128xf32>
    %833 = math.tanh %832 : vector<8x128xf32>
    %cst_303 = arith.constant 5.000000e-01 : f32
    %834 = vector.broadcast %cst_303 : f32 to vector<8x128xf32>
    %835 = arith.mulf %834, %833 : vector<8x128xf32>
    %cst_304 = arith.constant 5.000000e-01 : f32
    %836 = vector.broadcast %cst_304 : f32 to vector<8x128xf32>
    %837 = arith.addf %835, %836 : vector<8x128xf32>
    %838 = arith.index_cast %820 : i32 to index
    %c0_305 = arith.constant 0 : index
    %839 = vector.load %arg11[%838, %c0_305] : memref<64x128xf32, #tpu.memory_space<vmem>>, vector<8x128xf32>
    tpu.vector_store %arg11[%838, %c0_305], %837 {strides = array<i32>} : memref<64x128xf32, #tpu.memory_space<vmem>>, vector<8x128xf32>,
    %c4_i32_306 = arith.constant 4 : i32
    %c8_i32_307 = arith.constant 8 : i32
    %840 = arith.muli %c4_i32_306, %c8_i32_307 : i32
    %841 = tpu.assume_multiple %840, 8 : i32
    %c7_i32_308 = arith.constant 7 : i32
    %842 = arith.subi %c7_i32_308, %c4_i32_306 : i32
    %c8_i32_309 = arith.constant 8 : i32
    %843 = arith.muli %842, %c8_i32_309 : i32
    %844 = tpu.assume_multiple %843, 8 : i32
    %845 = arith.index_cast %841 : i32 to index
    %c0_310 = arith.constant 0 : index
    %846 = vector.load %arg11[%845, %c0_310] : memref<64x128xf32, #tpu.memory_space<vmem>>, vector<8x128xf32>
    %847 = arith.index_cast %844 : i32 to index
    %c0_311 = arith.constant 0 : index
    %848 = vector.load %arg15[%847, %c0_311] : memref<64x128xf32, #tpu.memory_space<vmem>>, vector<8x128xf32>
    %849 = arith.addf %846, %848 : vector<8x128xf32>
    %850 = vector.broadcast %755 : vector<1x128xf32> to vector<8x128xf32>
    %851 = arith.addf %849, %850 : vector<8x128xf32>
    %cst_312 = arith.constant 5.000000e-01 : f32
    %852 = vector.broadcast %cst_312 : f32 to vector<8x128xf32>
    %853 = arith.mulf %852, %851 : vector<8x128xf32>
    %854 = math.tanh %853 : vector<8x128xf32>
    %cst_313 = arith.constant 5.000000e-01 : f32
    %855 = vector.broadcast %cst_313 : f32 to vector<8x128xf32>
    %856 = arith.mulf %855, %854 : vector<8x128xf32>
    %cst_314 = arith.constant 5.000000e-01 : f32
    %857 = vector.broadcast %cst_314 : f32 to vector<8x128xf32>
    %858 = arith.addf %856, %857 : vector<8x128xf32>
    %859 = arith.index_cast %841 : i32 to index
    %c0_315 = arith.constant 0 : index
    %860 = vector.load %arg11[%859, %c0_315] : memref<64x128xf32, #tpu.memory_space<vmem>>, vector<8x128xf32>
    tpu.vector_store %arg11[%859, %c0_315], %858 {strides = array<i32>} : memref<64x128xf32, #tpu.memory_space<vmem>>, vector<8x128xf32>,
    %c5_i32_316 = arith.constant 5 : i32
    %c8_i32_317 = arith.constant 8 : i32
    %861 = arith.muli %c5_i32_316, %c8_i32_317 : i32
    %862 = tpu.assume_multiple %861, 8 : i32
    %c7_i32_318 = arith.constant 7 : i32
    %863 = arith.subi %c7_i32_318, %c5_i32_316 : i32
    %c8_i32_319 = arith.constant 8 : i32
    %864 = arith.muli %863, %c8_i32_319 : i32
    %865 = tpu.assume_multiple %864, 8 : i32
    %866 = arith.index_cast %862 : i32 to index
    %c0_320 = arith.constant 0 : index
    %867 = vector.load %arg11[%866, %c0_320] : memref<64x128xf32, #tpu.memory_space<vmem>>, vector<8x128xf32>
    %868 = arith.index_cast %865 : i32 to index
    %c0_321 = arith.constant 0 : index
    %869 = vector.load %arg15[%868, %c0_321] : memref<64x128xf32, #tpu.memory_space<vmem>>, vector<8x128xf32>
    %870 = arith.addf %867, %869 : vector<8x128xf32>
    %871 = vector.broadcast %755 : vector<1x128xf32> to vector<8x128xf32>
    %872 = arith.addf %870, %871 : vector<8x128xf32>
    %cst_322 = arith.constant 5.000000e-01 : f32
    %873 = vector.broadcast %cst_322 : f32 to vector<8x128xf32>
    %874 = arith.mulf %873, %872 : vector<8x128xf32>
    %875 = math.tanh %874 : vector<8x128xf32>
    %cst_323 = arith.constant 5.000000e-01 : f32
    %876 = vector.broadcast %cst_323 : f32 to vector<8x128xf32>
    %877 = arith.mulf %876, %875 : vector<8x128xf32>
    %cst_324 = arith.constant 5.000000e-01 : f32
    %878 = vector.broadcast %cst_324 : f32 to vector<8x128xf32>
    %879 = arith.addf %877, %878 : vector<8x128xf32>
    %880 = arith.index_cast %862 : i32 to index
    %c0_325 = arith.constant 0 : index
    %881 = vector.load %arg11[%880, %c0_325] : memref<64x128xf32, #tpu.memory_space<vmem>>, vector<8x128xf32>
    tpu.vector_store %arg11[%880, %c0_325], %879 {strides = array<i32>} : memref<64x128xf32, #tpu.memory_space<vmem>>, vector<8x128xf32>,
    %c6_i32_326 = arith.constant 6 : i32
    %c8_i32_327 = arith.constant 8 : i32
    %882 = arith.muli %c6_i32_326, %c8_i32_327 : i32
    %883 = tpu.assume_multiple %882, 8 : i32
    %c7_i32_328 = arith.constant 7 : i32
    %884 = arith.subi %c7_i32_328, %c6_i32_326 : i32
    %c8_i32_329 = arith.constant 8 : i32
    %885 = arith.muli %884, %c8_i32_329 : i32
    %886 = tpu.assume_multiple %885, 8 : i32
    %887 = arith.index_cast %883 : i32 to index
    %c0_330 = arith.constant 0 : index
    %888 = vector.load %arg11[%887, %c0_330] : memref<64x128xf32, #tpu.memory_space<vmem>>, vector<8x128xf32>
    %889 = arith.index_cast %886 : i32 to index
    %c0_331 = arith.constant 0 : index
    %890 = vector.load %arg15[%889, %c0_331] : memref<64x128xf32, #tpu.memory_space<vmem>>, vector<8x128xf32>
    %891 = arith.addf %888, %890 : vector<8x128xf32>
    %892 = vector.broadcast %755 : vector<1x128xf32> to vector<8x128xf32>
    %893 = arith.addf %891, %892 : vector<8x128xf32>
    %cst_332 = arith.constant 5.000000e-01 : f32
    %894 = vector.broadcast %cst_332 : f32 to vector<8x128xf32>
    %895 = arith.mulf %894, %893 : vector<8x128xf32>
    %896 = math.tanh %895 : vector<8x128xf32>
    %cst_333 = arith.constant 5.000000e-01 : f32
    %897 = vector.broadcast %cst_333 : f32 to vector<8x128xf32>
    %898 = arith.mulf %897, %896 : vector<8x128xf32>
    %cst_334 = arith.constant 5.000000e-01 : f32
    %899 = vector.broadcast %cst_334 : f32 to vector<8x128xf32>
    %900 = arith.addf %898, %899 : vector<8x128xf32>
    %901 = arith.index_cast %883 : i32 to index
    %c0_335 = arith.constant 0 : index
    %902 = vector.load %arg11[%901, %c0_335] : memref<64x128xf32, #tpu.memory_space<vmem>>, vector<8x128xf32>
    tpu.vector_store %arg11[%901, %c0_335], %900 {strides = array<i32>} : memref<64x128xf32, #tpu.memory_space<vmem>>, vector<8x128xf32>,
    %c7_i32_336 = arith.constant 7 : i32
    %c8_i32_337 = arith.constant 8 : i32
    %903 = arith.muli %c7_i32_336, %c8_i32_337 : i32
    %904 = tpu.assume_multiple %903, 8 : i32
    %c7_i32_338 = arith.constant 7 : i32
    %905 = arith.subi %c7_i32_338, %c7_i32_336 : i32
    %c8_i32_339 = arith.constant 8 : i32
    %906 = arith.muli %905, %c8_i32_339 : i32
    %907 = tpu.assume_multiple %906, 8 : i32
    %908 = arith.index_cast %904 : i32 to index
    %c0_340 = arith.constant 0 : index
    %909 = vector.load %arg11[%908, %c0_340] : memref<64x128xf32, #tpu.memory_space<vmem>>, vector<8x128xf32>
    %910 = arith.index_cast %907 : i32 to index
    %c0_341 = arith.constant 0 : index
    %911 = vector.load %arg15[%910, %c0_341] : memref<64x128xf32, #tpu.memory_space<vmem>>, vector<8x128xf32>
    %912 = arith.addf %909, %911 : vector<8x128xf32>
    %913 = vector.broadcast %755 : vector<1x128xf32> to vector<8x128xf32>
    %914 = arith.addf %912, %913 : vector<8x128xf32>
    %cst_342 = arith.constant 5.000000e-01 : f32
    %915 = vector.broadcast %cst_342 : f32 to vector<8x128xf32>
    %916 = arith.mulf %915, %914 : vector<8x128xf32>
    %917 = math.tanh %916 : vector<8x128xf32>
    %cst_343 = arith.constant 5.000000e-01 : f32
    %918 = vector.broadcast %cst_343 : f32 to vector<8x128xf32>
    %919 = arith.mulf %918, %917 : vector<8x128xf32>
    %cst_344 = arith.constant 5.000000e-01 : f32
    %920 = vector.broadcast %cst_344 : f32 to vector<8x128xf32>
    %921 = arith.addf %919, %920 : vector<8x128xf32>
    %922 = arith.index_cast %904 : i32 to index
    %c0_345 = arith.constant 0 : index
    %923 = vector.load %arg11[%922, %c0_345] : memref<64x128xf32, #tpu.memory_space<vmem>>, vector<8x128xf32>
    tpu.vector_store %arg11[%922, %c0_345], %921 {strides = array<i32>} : memref<64x128xf32, #tpu.memory_space<vmem>>, vector<8x128xf32>,
    %c8_i32_346 = arith.constant 8 : i32
    return
  }
}

</mosaic_0001>

<llo_original>
// kernel: rnn_model_forward.1
$region0: #{rnn_model_forward.1}
  #allocation0 [shape = 'u32[]', space=smem, size = 0x4, offset = 0x4, fixed_abs, tag = 'smem constant byte address 0x4 - core index']
  #allocation1 [shape = 'u32[144,128]{1,0:T(1,128)}', space=vmem, size = 0x12000, scoped, tag = 'internal scratch']
  #allocation2 [shape = 'f32[64,256]{1,0:T(8,128)}', space=vmem, size = 0x10000, scoped, tag = 'scratch operand']
  #allocation3 [shape = 'f32[64,256]{1,0:T(8,128)}', space=vmem, size = 0x10000, scoped, tag = 'scratch operand']
  #allocation4 [shape = 'f32[64,64]{1,0:T(8,128)}', space=vmem, size = 0x8000, scoped, tag = 'scratch operand']
  #allocation5 [shape = 'f32[64,128]{1,0:T(8,128)}', space=vmem, size = 0x8000, scoped, tag = 'scratch operand']
  %s0 = inlined_call_operand.vmem [shape: f32[64,16], index: 0, kind: input, shape index: {}]
  %s1 = inlined_call_operand.hbm [shape: bf16[16,256], index: 1, kind: input, shape index: {}]
  %s2 = inlined_call_operand.vmem [shape: f32[1,256], index: 2, kind: input, shape index: {}]
  %s3 = inlined_call_operand.vmem [shape: bf16[32,256], index: 3, kind: input, shape index: {}]
  %s4 = inlined_call_operand.vmem [shape: bf16[32,256], index: 4, kind: input, shape index: {}]
  %s5 = inlined_call_operand.vmem [shape: bf16[32,256], index: 5, kind: input, shape index: {}]
  %s6 = inlined_call_operand.vmem [shape: f32[1,256], index: 6, kind: input, shape index: {}]
  %s7 = inlined_call_operand.vmem [shape: bf16[32,256], index: 7, kind: input, shape index: {}]
  %s8 = inlined_call_operand.hbm [shape: f32[32,128], index: 8, kind: input, shape index: {}]
  %s9 = inlined_call_operand.hbm [shape: f32[32,128], index: 9, kind: input, shape index: {}]
  %s10 = inlined_call_operand.hbm [shape: f32[1,128], index: 10, kind: input, shape index: {}]
  %s11 = inlined_call_operand.vmem [shape: f32[64,128], index: 11, kind: output, shape index: {}]
  %s12 = sld [smem:[#allocation0]]
  $region70: #{rnn_model_forward.1} parent=0
    _
  %s14 = ssub.s32 1, %s12
  %s15 = scalar_select 0, %s14, %s12
  $region1: #{rnn_model_forward.1} parent=0
    #allocation6 [shape = 'u8[8192]{0}', space=vmem, size = 0x2000, scoped, tag = 'input window, operand 1, single buffered']
    #allocation7 [shape = 's32[1]{0}', space=sflag, size = 0x4, scoped, tag = 'scoped memory for rnn_model_forward.1']
    #allocation8 [shape = 'u8[16384]{0}', space=vmem, size = 0x4000, scoped, tag = 'input window, operand 8, single buffered']
    #allocation9 [shape = 's32[1]{0}', space=sflag, size = 0x4, scoped, tag = 'scoped memory for rnn_model_forward.1']
    #allocation10 [shape = 'u8[16384]{0}', space=vmem, size = 0x4000, scoped, tag = 'input window, operand 9, single buffered']
    #allocation11 [shape = 'u8[512]{0}', space=vmem, size = 0x400, scoped, tag = 'input window, operand 10, single buffered']
    #allocation12 [shape = 's32[1]{0}', space=sflag, size = 0x4, scoped, tag = 'scoped memory for rnn_model_forward.1']
    %16 = vsyncpa [#allocation7], 0
    %17 = vsyncpa [#allocation9], 0
    %18 = vsyncpa [#allocation12], 0
    // Predicated region
    $region2: #{rnn_model_forward.1} parent=1 // pred_check
      _
    $region3: #{rnn_model_forward.1} parent=1 // pred_check_branch
      %20 = sbr.rel (0) target = $region5
    $region4: #{rnn_model_forward.1} parent=1 // pred_region
      _
    $region5: #{rnn_model_forward.1} parent=1 // pred_fallthru
      _
    // Predicated region
    $region6: #{rnn_model_forward.1} parent=1 // pred_check
      _
    $region7: #{rnn_model_forward.1} parent=1 // pred_check_branch
      %22 = sbr.rel (0) target = $region9
    $region8: #{rnn_model_forward.1} parent=1 // pred_region
      %s24 = ssub.s32 256, 256
      %25 = vsyncadd [#allocation7], %s24
      %s26 = sshll.u32 [#allocation6], 4
      %s27 = int_to_ptr.vmem [resolvable:$true] %s26
      %32 = dma.hbm_to_vmem [thread:$0]  %s1, 256, %s27, [#allocation7], 128, 128, 8
    $region9: #{rnn_model_forward.1} parent=1 // pred_fallthru
      _
    // Predicated region
    $region10: #{rnn_model_forward.1} parent=1 // pred_check
      _
    $region11: #{rnn_model_forward.1} parent=1 // pred_check_branch
      %34 = sbr.rel (0) target = $region13
    $region12: #{rnn_model_forward.1} parent=1 // pred_region
      _
    $region13: #{rnn_model_forward.1} parent=1 // pred_fallthru
      _
    // Predicated region
    $region14: #{rnn_model_forward.1} parent=1 // pred_check
      _
    $region15: #{rnn_model_forward.1} parent=1 // pred_check_branch
      %36 = sbr.rel (0) target = $region17
    $region16: #{rnn_model_forward.1} parent=1 // pred_region
      _
    $region17: #{rnn_model_forward.1} parent=1 // pred_fallthru
      _
    // Predicated region
    $region18: #{rnn_model_forward.1} parent=1 // pred_check
      _
    $region19: #{rnn_model_forward.1} parent=1 // pred_check_branch
      %38 = sbr.rel (0) target = $region21
    $region20: #{rnn_model_forward.1} parent=1 // pred_region
      _
    $region21: #{rnn_model_forward.1} parent=1 // pred_fallthru
      _
    // Predicated region
    $region22: #{rnn_model_forward.1} parent=1 // pred_check
      _
    $region23: #{rnn_model_forward.1} parent=1 // pred_check_branch
      %40 = sbr.rel (0) target = $region25
    $region24: #{rnn_model_forward.1} parent=1 // pred_region
      _
    $region25: #{rnn_model_forward.1} parent=1 // pred_fallthru
      _
    // Predicated region
    $region26: #{rnn_model_forward.1} parent=1 // pred_check
      _
    $region27: #{rnn_model_forward.1} parent=1 // pred_check_branch
      %42 = sbr.rel (0) target = $region29
    $region28: #{rnn_model_forward.1} parent=1 // pred_region
      _
    $region29: #{rnn_model_forward.1} parent=1 // pred_fallthru
      _
    // Predicated region
    $region30: #{rnn_model_forward.1} parent=1 // pred_check
      _
    $region31: #{rnn_model_forward.1} parent=1 // pred_check_branch
      %44 = sbr.rel (0) target = $region33
    $region32: #{rnn_model_forward.1} parent=1 // pred_region
      _
    $region33: #{rnn_model_forward.1} parent=1 // pred_fallthru
      _
    // Predicated region
    $region34: #{rnn_model_forward.1} parent=1 // pred_check
      _
    $region35: #{rnn_model_forward.1} parent=1 // pred_check_branch
      %46 = sbr.rel (0) target = $region37
    $region36: #{rnn_model_forward.1} parent=1 // pred_region
      %s48 = ssub.s32 512, 512
      %49 = vsyncadd [#allocation9], %s48
      %s50 = sshll.u32 [#allocation8], 4
      %s51 = int_to_ptr.vmem [resolvable:$true] %s50
      %56 = dma.hbm_to_vmem [thread:$0]  %s8, 512, %s51, [#allocation9], 128, 128, 8
    $region37: #{rnn_model_forward.1} parent=1 // pred_fallthru
      _
    // Predicated region
    $region38: #{rnn_model_forward.1} parent=1 // pred_check
      _
    $region39: #{rnn_model_forward.1} parent=1 // pred_check_branch
      %58 = sbr.rel (0) target = $region41
    $region40: #{rnn_model_forward.1} parent=1 // pred_region
      %s60 = ssub.s32 512, 512
      %61 = vsyncadd [#allocation9], %s60
      %s62 = sshll.u32 [#allocation10], 4
      %s63 = int_to_ptr.vmem [resolvable:$true] %s62
      %68 = dma.hbm_to_vmem [thread:$0]  %s9, 512, %s63, [#allocation9], 128, 128, 8
    $region41: #{rnn_model_forward.1} parent=1 // pred_fallthru
      _
    // Predicated region
    $region42: #{rnn_model_forward.1} parent=1 // pred_check
      _
    $region43: #{rnn_model_forward.1} parent=1 // pred_check_branch
      %70 = sbr.rel (0) target = $region45
    $region44: #{rnn_model_forward.1} parent=1 // pred_region
      %s72 = ssub.s32 16, 16
      %73 = vsyncadd [#allocation12], %s72
      %s75 = sshll.u32 [#allocation11], 4
      %s76 = int_to_ptr.vmem [resolvable:$true] %s75
      %78 = dma.hbm_to_vmem [thread:$0]  %s10, 16, %s76, [#allocation12]
    $region45: #{rnn_model_forward.1} parent=1 // pred_fallthru
      _
    // Predicated region
    $region46: #{rnn_model_forward.1} parent=1 // pred_check
      _
    $region47: #{rnn_model_forward.1} parent=1 // pred_check_branch
      %80 = sbr.rel (0) target = $region49
    $region48: #{rnn_model_forward.1} parent=1 // pred_region
      %81 = dma.done [#allocation7], 256
    $region49: #{rnn_model_forward.1} parent=1 // pred_fallthru
      _
    // Predicated region
    $region50: #{rnn_model_forward.1} parent=1 // pred_check
      _
    $region51: #{rnn_model_forward.1} parent=1 // pred_check_branch
      %83 = sbr.rel (0) target = $region53
    $region52: #{rnn_model_forward.1} parent=1 // pred_region
      %84 = dma.done [#allocation9], 512
    $region53: #{rnn_model_forward.1} parent=1 // pred_fallthru
      _
    // Predicated region
    $region54: #{rnn_model_forward.1} parent=1 // pred_check
      _
    $region55: #{rnn_model_forward.1} parent=1 // pred_check_branch
      %86 = sbr.rel (0) target = $region57
    $region56: #{rnn_model_forward.1} parent=1 // pred_region
      %87 = dma.done [#allocation9], 512
    $region57: #{rnn_model_forward.1} parent=1 // pred_fallthru
      _
    // Predicated region
    $region58: #{rnn_model_forward.1} parent=1 // pred_check
      _
    $region59: #{rnn_model_forward.1} parent=1 // pred_check_branch
      %89 = sbr.rel (0) target = $region61
    $region60: #{rnn_model_forward.1} parent=1 // pred_region
      %90 = dma.done [#allocation12], 16
    $region61: #{rnn_model_forward.1} parent=1 // pred_fallthru
      _
    %v92 = vld [vmem:[%s0] sm:$0xff]
    %v93 = vld [vmem:[%s0 + $0x8] sm:$0xff]
    %v94 = vld [vmem:[%s0 + $0x10] sm:$0xff]
    %v95 = vld [vmem:[%s0 + $0x18] sm:$0xff]
    %v96 = vld [vmem:[%s0 + $0x20] sm:$0xff]
    %v97 = vld [vmem:[%s0 + $0x28] sm:$0xff]
    %v98 = vld [vmem:[%s0 + $0x30] sm:$0xff]
    %v99 = vld [vmem:[%s0 + $0x38] sm:$0xff]
    %v100 = vpack.c.bf16 %v93, %v92
    %v101 = vpack.c.bf16 %v95, %v94
    %v102 = vpack.c.bf16 %v97, %v96
    %v103 = vpack.c.bf16 %v99, %v98
    %v104 = vld [vmem:[#allocation6] sm:$0xff]
    %v105 = vld [vmem:[#allocation6 + $0x8] sm:$0xff]
    %v106 = vld [vmem:[%s2] sm:$0x3]
    %v108 = vlaneseq
    %v109 = vshrl.u32 %v108, 7
    %v110 = vsub.s32 0, %v109
    %v111 = vrot.slane %v106, %v110
    %v112 = vlaneseq
    %v113 = vshrl.u32 %v112, 7
    %v114 = vsub.s32 1, %v113
    %v115 = vrot.slane %v106, %v114
    %v120 = vunpack.c.l.b16 %v104
    %v121 = vunpack.c.h.b16 %v104
    %v122 = vunpack.c.l.b16 %v105
    %v123 = vunpack.c.h.b16 %v105
    %v124 = vpack.c.b16 %v122, %v120
    %v125 = vpack.c.b16 %v123, %v121
    %vm128 = vcmask 130048
    %v130 = vsel %vm128, %v100, 0
    %v133 = vsel %vm128, %v101, 0
    %v136 = vsel %vm128, %v102, 0
    %v139 = vsel %vm128, %v103, 0
    %141 = vmatprep.subr.bf16.mxu0 %v125
    %142 = vmatpush1.bf16.msra.mxu0 %v124
    %143 = vmatprep.subr.bf16.mxu0 0
    %144 = vmatpush1.bf16.msra.mxu0 0
    %145 = vmatprep.subr.bf16.mxu0 0
    %146 = vmatpush1.bf16.msra.mxu0 0
    %147 = vmatprep.subr.bf16.mxu0 0
    %148 = vmatpush1.bf16.msra.mxu0 0
    %149 = vmatprep.subr.bf16.mxu0 0
    %150 = vmatpush1.bf16.msra.mxu0 0
    %151 = vmatprep.subr.bf16.mxu0 0
    %152 = vmatpush1.bf16.msra.mxu0 0
    %153 = vmatprep.subr.bf16.mxu0 0
    %154 = vmatpush1.bf16.msra.mxu0 0
    %155 = vmatprep.subr.bf16.mxu0 0
    %156 = vmatpush1.bf16.msra.mxu0 0
    %157 = vmatprep.subr.bf16.mxu0 0
    %158 = vmatpush1.bf16.msra.mxu0 0
    %159 = vmatprep.subr.bf16.mxu0 0
    %160 = vmatpush1.bf16.msra.mxu0 0
    %161 = vmatprep.subr.bf16.mxu0 0
    %162 = vmatpush1.bf16.msra.mxu0 0
    %163 = vmatprep.subr.bf16.mxu0 0
    %164 = vmatpush1.bf16.msra.mxu0 0
    %165 = vmatprep.subr.bf16.mxu0 0
    %166 = vmatpush1.bf16.msra.mxu0 0
    %167 = vmatprep.subr.bf16.mxu0 0
    %168 = vmatpush1.bf16.msra.mxu0 0
    %169 = vmatprep.subr.bf16.mxu0 0
    %170 = vmatpush1.bf16.msra.mxu0 0
    %171 = vmatprep.subr.bf16.mxu0 0
    %172 = vmatpush1.bf16.msra.mxu0 0
    %173 = vmatprep.mubr.bf16.mxu0 0
    %174 = vmatmul.mubr.bf16.gmra.mrb[0].mxu0 %v130
    %v175 = vpop.f32.mrb[0].mxu0
    %v176 = vadd.f32 %v111, %v175
    %v177 = vpop.f32.mrb[0].mxu0
    %v178 = vadd.f32 %v115, %v177
    %v179 = vpop.f32.mrb[0].mxu0
    %v180 = vadd.f32 %v111, %v179
    %v181 = vpop.f32.mrb[0].mxu0
    %v182 = vadd.f32 %v115, %v181
    %183 = vmatprep.mubr.bf16.mxu0 0
    %184 = vmatmul.mubr.bf16.gmra.mrb[0].mxu0 %v133
    %v185 = vpop.f32.mrb[0].mxu0
    %v186 = vadd.f32 %v111, %v185
    %v187 = vpop.f32.mrb[0].mxu0
    %v188 = vadd.f32 %v115, %v187
    %v189 = vpop.f32.mrb[0].mxu0
    %v190 = vadd.f32 %v111, %v189
    %v191 = vpop.f32.mrb[0].mxu0
    %v192 = vadd.f32 %v115, %v191
    %193 = vmatprep.mubr.bf16.mxu0 0
    %194 = vmatmul.mubr.bf16.gmra.mrb[0].mxu0 %v136
    %v195 = vpop.f32.mrb[0].mxu0
    %v196 = vadd.f32 %v111, %v195
    %v197 = vpop.f32.mrb[0].mxu0
    %v198 = vadd.f32 %v115, %v197
    %v199 = vpop.f32.mrb[0].mxu0
    %v200 = vadd.f32 %v111, %v199
    %v201 = vpop.f32.mrb[0].mxu0
    %v202 = vadd.f32 %v115, %v201
    %203 = vmatprep.mubr.bf16.mxu0 0
    %204 = vmatmul.mubr.bf16.gmra.mrb[0].mxu0 %v139
    %v205 = vpop.f32.mrb[0].mxu0
    %v206 = vadd.f32 %v111, %v205
    %v207 = vpop.f32.mrb[0].mxu0
    %v208 = vadd.f32 %v115, %v207
    %v209 = vpop.f32.mrb[0].mxu0
    %v210 = vadd.f32 %v111, %v209
    %v211 = vpop.f32.mrb[0].mxu0
    %v212 = vadd.f32 %v115, %v211
    %213 = vdwg.mxu0
    %214 = vst [vmem:[#allocation2] sm:$0xff] %v176
    %215 = vst [vmem:[#allocation2 + $0x8] sm:$0xff] %v178
    %216 = vst [vmem:[#allocation2 + $0x10] sm:$0xff] %v180
    %217 = vst [vmem:[#allocation2 + $0x18] sm:$0xff] %v182
    %218 = vst [vmem:[#allocation2 + $0x20] sm:$0xff] %v186
    %219 = vst [vmem:[#allocation2 + $0x28] sm:$0xff] %v188
    %220 = vst [vmem:[#allocation2 + $0x30] sm:$0xff] %v190
    %221 = vst [vmem:[#allocation2 + $0x38] sm:$0xff] %v192
    %222 = vst [vmem:[#allocation2 + $0x40] sm:$0xff] %v196
    %223 = vst [vmem:[#allocation2 + $0x48] sm:$0xff] %v198
    %224 = vst [vmem:[#allocation2 + $0x50] sm:$0xff] %v200
    %225 = vst [vmem:[#allocation2 + $0x58] sm:$0xff] %v202
    %226 = vst [vmem:[#allocation2 + $0x60] sm:$0xff] %v206
    %227 = vst [vmem:[#allocation2 + $0x68] sm:$0xff] %v208
    %228 = vst [vmem:[#allocation2 + $0x70] sm:$0xff] %v210
    %229 = vst [vmem:[#allocation2 + $0x78] sm:$0xff] %v212
    %v230 = vld [vmem:[%s3] sm:$0xff]
    %v231 = vld [vmem:[%s3 + $0x8] sm:$0xff]
    %v232 = vld [vmem:[%s3 + $0x10] sm:$0xff]
    %v233 = vld [vmem:[%s3 + $0x18] sm:$0xff]
    %v238 = vunpack.c.l.b16 %v230
    %v239 = vunpack.c.h.b16 %v230
    %v240 = vunpack.c.l.b16 %v231
    %v241 = vunpack.c.h.b16 %v231
    %v242 = vunpack.c.l.b16 %v232
    %v243 = vunpack.c.h.b16 %v232
    %v244 = vunpack.c.l.b16 %v233
    %v245 = vunpack.c.h.b16 %v233
    %v246 = vpack.c.b16 %v240, %v238
    %v247 = vpack.c.b16 %v241, %v239
    %v248 = vpack.c.b16 %v244, %v242
    %v249 = vpack.c.b16 %v245, %v243
    %vm254 = vcmask 261120
    %v256 = vsel %vm254, 0, 0
    %258 = vmatprep.subr.bf16.mxu0 %v247
    %259 = vmatpush1.bf16.msra.mxu0 %v246
    %260 = vmatprep.subr.bf16.mxu0 %v249
    %261 = vmatpush1.bf16.msra.mxu0 %v248
    %262 = vmatprep.subr.bf16.mxu0 0
    %263 = vmatpush1.bf16.msra.mxu0 0
    %264 = vmatprep.subr.bf16.mxu0 0
    %265 = vmatpush1.bf16.msra.mxu0 0
    %266 = vmatprep.subr.bf16.mxu0 0
    %267 = vmatpush1.bf16.msra.mxu0 0
    %268 = vmatprep.subr.bf16.mxu0 0
    %269 = vmatpush1.bf16.msra.mxu0 0
    %270 = vmatprep.subr.bf16.mxu0 0
    %271 = vmatpush1.bf16.msra.mxu0 0
    %272 = vmatprep.subr.bf16.mxu0 0
    %273 = vmatpush1.bf16.msra.mxu0 0
    %274 = vmatprep.subr.bf16.mxu0 0
    %275 = vmatpush1.bf16.msra.mxu0 0
    %276 = vmatprep.subr.bf16.mxu0 0
    %277 = vmatpush1.bf16.msra.mxu0 0
    %278 = vmatprep.subr.bf16.mxu0 0
    %279 = vmatpush1.bf16.msra.mxu0 0
    %280 = vmatprep.subr.bf16.mxu0 0
    %281 = vmatpush1.bf16.msra.mxu0 0
    %282 = vmatprep.subr.bf16.mxu0 0
    %283 = vmatpush1.bf16.msra.mxu0 0
    %284 = vmatprep.subr.bf16.mxu0 0
    %285 = vmatpush1.bf16.msra.mxu0 0
    %286 = vmatprep.subr.bf16.mxu0 0
    %287 = vmatpush1.bf16.msra.mxu0 0
    %288 = vmatprep.subr.bf16.mxu0 0
    %289 = vmatpush1.bf16.msra.mxu0 0
    %290 = vmatprep.mubr.bf16.mxu0 0
    %291 = vmatmul.mubr.bf16.gmra.mrb[0].mxu0 %v256
    %v292 = vpop.f32.mrb[0].mxu0
    %v293 = vadd.f32 0.0, %v292
    %v294 = vpop.f32.mrb[0].mxu0
    %v295 = vpop.f32.mrb[0].mxu0
    %v296 = vpop.f32.mrb[0].mxu0
    %v297 = vadd.f32 0.0, %v296
    %298 = vdwg.mxu0
    %s299 = smul.u32 0, 2
    %s300 = smul.addr %s299, 8
    %s301 = scalar_lea.vmem [#allocation2], %s300
    %v302 = vld [vmem:[%s301] sm:$0xff]
    %v303 = vadd.f32 %v302, %v293
    %s304 = smul.u32 7, 2
    %s305 = smul.addr %s304, 8
    %s306 = scalar_lea.vmem [#allocation2], %s305
    %v307 = vld [vmem:[%s306 + $0x8] sm:$0xff]
    %v308 = vadd.f32 %v307, %v297
    %v309 = vmul.f32 %v303, 0.5
    %v310 = vmul.f32 %v308, 0.5
    %v311 = vtanh.pop %v309
    %v312 = vtanh.pop %v310
    %v313 = vmul.f32 %v311, 0.5
    %v314 = vmul.f32 %v312, 0.5
    %v315 = vadd.f32 %v313, 0.5
    %v316 = vadd.f32 %v314, 0.5
    %v317 = vtanh.pop %v303
    %v318 = vtanh.pop %v308
    %v319 = vmul.f32 %v315, 0.0
    %v320 = vmul.f32 %v316, 0.0
    %323 = vrot.lane.b32.xlu0 %v317, 32
    %v324 = vpop.permute.xlu0 %323
    %325 = vrot.lane.b32.xlu0 %v318, 32
    %v326 = vpop.permute.xlu0 %325
    %v329 = vmul.f32 %v315, %v324
    %v330 = vmul.f32 %v316, %v326
    %333 = vrot.lane.b32.xlu0 %v329, 32
    %v334 = vpop.permute.xlu0 %333
    %335 = vrot.lane.b32.xlu0 %v330, 32
    %v336 = vpop.permute.xlu0 %335
    %v339 = vadd.f32 %v319, %v334
    %v340 = vadd.f32 %v320, %v336
    %v341 = vtanh.pop %v339
    %v342 = vtanh.pop %v340
    %345 = vrot.lane.b32.xlu0 %v341, 32
    %v346 = vpop.permute.xlu0 %345
    %347 = vrot.lane.b32.xlu0 %v342, 32
    %v348 = vpop.permute.xlu0 %347
    %v351 = vmul.f32 %v315, %v346
    %v352 = vmul.f32 %v316, %v348
    %354 = vrot.lane.b32.xlu0 %v351, 64
    %v355 = vpop.permute.xlu0 %354
    %358 = vrot.lane.b32.xlu0 %v352, 96
    %v359 = vpop.permute.xlu0 %358
    %v361 = vsel %vm254, %v355, %v359
    %vm362 = vcmask 523264
    %363 = vst.msk [vmem:[#allocation4] sm:$0xff] %vm362, %v361
    %v364 = vpack.c.bf16 %v352, %v351
    %366 = vrot.lane.b32.xlu0 %v364, 64
    %v367 = vpop.permute.xlu0 %366
    %v369 = vsel %vm254, %v367, 0
    %371 = vmatprep.subr.bf16.mxu0 %v247
    %372 = vmatpush1.bf16.msra.mxu0 %v246
    %373 = vmatprep.subr.bf16.mxu0 %v249
    %374 = vmatpush1.bf16.msra.mxu0 %v248
    %375 = vmatprep.subr.bf16.mxu0 0
    %376 = vmatpush1.bf16.msra.mxu0 0
    %377 = vmatprep.subr.bf16.mxu0 0
    %378 = vmatpush1.bf16.msra.mxu0 0
    %379 = vmatprep.subr.bf16.mxu0 0
    %380 = vmatpush1.bf16.msra.mxu0 0
    %381 = vmatprep.subr.bf16.mxu0 0
    %382 = vmatpush1.bf16.msra.mxu0 0
    %383 = vmatprep.subr.bf16.mxu0 0
    %384 = vmatpush1.bf16.msra.mxu0 0
    %385 = vmatprep.subr.bf16.mxu0 0
    %386 = vmatpush1.bf16.msra.mxu0 0
    %387 = vmatprep.subr.bf16.mxu0 0
    %388 = vmatpush1.bf16.msra.mxu0 0
    %389 = vmatprep.subr.bf16.mxu0 0
    %390 = vmatpush1.bf16.msra.mxu0 0
    %391 = vmatprep.subr.bf16.mxu0 0
    %392 = vmatpush1.bf16.msra.mxu0 0
    %393 = vmatprep.subr.bf16.mxu0 0
    %394 = vmatpush1.bf16.msra.mxu0 0
    %395 = vmatprep.subr.bf16.mxu0 0
    %396 = vmatpush1.bf16.msra.mxu0 0
    %397 = vmatprep.subr.bf16.mxu0 0
    %398 = vmatpush1.bf16.msra.mxu0 0
    %399 = vmatprep.subr.bf16.mxu0 0
    %400 = vmatpush1.bf16.msra.mxu0 0
    %401 = vmatprep.subr.bf16.mxu0 0
    %402 = vmatpush1.bf16.msra.mxu0 0
    %403 = vmatprep.mubr.bf16.mxu0 0
    %404 = vmatmul.mubr.bf16.gmra.mrb[0].mxu0 %v369
    %v405 = vpop.f32.mrb[0].mxu0
    %v406 = vadd.f32 0.0, %v405
    %v407 = vpop.f32.mrb[0].mxu0
    %v408 = vpop.f32.mrb[0].mxu0
    %v409 = vpop.f32.mrb[0].mxu0
    %v410 = vadd.f32 0.0, %v409
    %411 = vdwg.mxu0
    %s412 = smul.u32 1, 2
    %s413 = smul.addr %s412, 8
    %s414 = scalar_lea.vmem [#allocation2], %s413
    %v415 = vld [vmem:[%s414] sm:$0xff]
    %v416 = vadd.f32 %v415, %v406
    %s417 = smul.u32 6, 2
    %s418 = smul.addr %s417, 8
    %s419 = scalar_lea.vmem [#allocation2], %s418
    %v420 = vld [vmem:[%s419 + $0x8] sm:$0xff]
    %v421 = vadd.f32 %v420, %v410
    %v422 = vmul.f32 %v416, 0.5
    %v423 = vmul.f32 %v421, 0.5
    %v424 = vtanh.pop %v422
    %v425 = vtanh.pop %v423
    %v426 = vmul.f32 %v424, 0.5
    %v427 = vmul.f32 %v425, 0.5
    %v428 = vadd.f32 %v426, 0.5
    %v429 = vadd.f32 %v427, 0.5
    %v430 = vtanh.pop %v416
    %v431 = vtanh.pop %v421
    %v432 = vmul.f32 %v428, %v339
    %v433 = vmul.f32 %v429, %v340
    %436 = vrot.lane.b32.xlu0 %v430, 32
    %v437 = vpop.permute.xlu0 %436
    %438 = vrot.lane.b32.xlu0 %v431, 32
    %v439 = vpop.permute.xlu0 %438
    %v442 = vmul.f32 %v428, %v437
    %v443 = vmul.f32 %v429, %v439
    %446 = vrot.lane.b32.xlu0 %v442, 32
    %v447 = vpop.permute.xlu0 %446
    %448 = vrot.lane.b32.xlu0 %v443, 32
    %v449 = vpop.permute.xlu0 %448
    %v452 = vadd.f32 %v432, %v447
    %v453 = vadd.f32 %v433, %v449
    %v454 = vtanh.pop %v452
    %v455 = vtanh.pop %v453
    %458 = vrot.lane.b32.xlu0 %v454, 32
    %v459 = vpop.permute.xlu0 %458
    %460 = vrot.lane.b32.xlu0 %v455, 32
    %v461 = vpop.permute.xlu0 %460
    %v464 = vmul.f32 %v428, %v459
    %v465 = vmul.f32 %v429, %v461
    %467 = vrot.lane.b32.xlu0 %v464, 64
    %v468 = vpop.permute.xlu0 %467
    %471 = vrot.lane.b32.xlu0 %v465, 96
    %v472 = vpop.permute.xlu0 %471
    %v474 = vsel %vm254, %v468, %v472
    %s475 = scalar_lea.vmem [#allocation4], 8
    %476 = vst.msk [vmem:[%s475] sm:$0xff] %vm362, %v474
    %v477 = vpack.c.bf16 %v465, %v464
    %479 = vrot.lane.b32.xlu0 %v477, 64
    %v480 = vpop.permute.xlu0 %479
    %v482 = vsel %vm254, %v480, 0
    %484 = vmatprep.subr.bf16.mxu0 %v247
    %485 = vmatpush1.bf16.msra.mxu0 %v246
    %486 = vmatprep.subr.bf16.mxu0 %v249
    %487 = vmatpush1.bf16.msra.mxu0 %v248
    %488 = vmatprep.subr.bf16.mxu0 0
    %489 = vmatpush1.bf16.msra.mxu0 0
    %490 = vmatprep.subr.bf16.mxu0 0
    %491 = vmatpush1.bf16.msra.mxu0 0
    %492 = vmatprep.subr.bf16.mxu0 0
    %493 = vmatpush1.bf16.msra.mxu0 0
    %494 = vmatprep.subr.bf16.mxu0 0
    %495 = vmatpush1.bf16.msra.mxu0 0
    %496 = vmatprep.subr.bf16.mxu0 0
    %497 = vmatpush1.bf16.msra.mxu0 0
    %498 = vmatprep.subr.bf16.mxu0 0
    %499 = vmatpush1.bf16.msra.mxu0 0
    %500 = vmatprep.subr.bf16.mxu0 0
    %501 = vmatpush1.bf16.msra.mxu0 0
    %502 = vmatprep.subr.bf16.mxu0 0
    %503 = vmatpush1.bf16.msra.mxu0 0
    %504 = vmatprep.subr.bf16.mxu0 0
    %505 = vmatpush1.bf16.msra.mxu0 0
    %506 = vmatprep.subr.bf16.mxu0 0
    %507 = vmatpush1.bf16.msra.mxu0 0
    %508 = vmatprep.subr.bf16.mxu0 0
    %509 = vmatpush1.bf16.msra.mxu0 0
    %510 = vmatprep.subr.bf16.mxu0 0
    %511 = vmatpush1.bf16.msra.mxu0 0
    %512 = vmatprep.subr.bf16.mxu0 0
    %513 = vmatpush1.bf16.msra.mxu0 0
    %514 = vmatprep.subr.bf16.mxu0 0
    %515 = vmatpush1.bf16.msra.mxu0 0
    %516 = vmatprep.mubr.bf16.mxu0 0
    %517 = vmatmul.mubr.bf16.gmra.mrb[0].mxu0 %v482
    %v518 = vpop.f32.mrb[0].mxu0
    %v519 = vadd.f32 0.0, %v518
    %v520 = vpop.f32.mrb[0].mxu0
    %v521 = vpop.f32.mrb[0].mxu0
    %v522 = vpop.f32.mrb[0].mxu0
    %v523 = vadd.f32 0.0, %v522
    %524 = vdwg.mxu0
    %s525 = smul.u32 2, 2
    %s526 = smul.addr %s525, 8
    %s527 = scalar_lea.vmem [#allocation2], %s526
    %v528 = vld [vmem:[%s527] sm:$0xff]
    %v529 = vadd.f32 %v528, %v519
    %s530 = smul.u32 5, 2
    %s531 = smul.addr %s530, 8
    %s532 = scalar_lea.vmem [#allocation2], %s531
    %v533 = vld [vmem:[%s532 + $0x8] sm:$0xff]
    %v534 = vadd.f32 %v533, %v523
    %v535 = vmul.f32 %v529, 0.5
    %v536 = vmul.f32 %v534, 0.5
    %v537 = vtanh.pop %v535
    %v538 = vtanh.pop %v536
    %v539 = vmul.f32 %v537, 0.5
    %v540 = vmul.f32 %v538, 0.5
    %v541 = vadd.f32 %v539, 0.5
    %v542 = vadd.f32 %v540, 0.5
    %v543 = vtanh.pop %v529
    %v544 = vtanh.pop %v534
    %v545 = vmul.f32 %v541, %v452
    %v546 = vmul.f32 %v542, %v453
    %549 = vrot.lane.b32.xlu0 %v543, 32
    %v550 = vpop.permute.xlu0 %549
    %551 = vrot.lane.b32.xlu0 %v544, 32
    %v552 = vpop.permute.xlu0 %551
    %v555 = vmul.f32 %v541, %v550
    %v556 = vmul.f32 %v542, %v552
    %559 = vrot.lane.b32.xlu0 %v555, 32
    %v560 = vpop.permute.xlu0 %559
    %561 = vrot.lane.b32.xlu0 %v556, 32
    %v562 = vpop.permute.xlu0 %561
    %v565 = vadd.f32 %v545, %v560
    %v566 = vadd.f32 %v546, %v562
    %v567 = vtanh.pop %v565
    %v568 = vtanh.pop %v566
    %571 = vrot.lane.b32.xlu0 %v567, 32
    %v572 = vpop.permute.xlu0 %571
    %573 = vrot.lane.b32.xlu0 %v568, 32
    %v574 = vpop.permute.xlu0 %573
    %v577 = vmul.f32 %v541, %v572
    %v578 = vmul.f32 %v542, %v574
    %580 = vrot.lane.b32.xlu0 %v577, 64
    %v581 = vpop.permute.xlu0 %580
    %584 = vrot.lane.b32.xlu0 %v578, 96
    %v585 = vpop.permute.xlu0 %584
    %v587 = vsel %vm254, %v581, %v585
    %s588 = scalar_lea.vmem [#allocation4], 16
    %589 = vst.msk [vmem:[%s588] sm:$0xff] %vm362, %v587
    %v590 = vpack.c.bf16 %v578, %v577
    %592 = vrot.lane.b32.xlu0 %v590, 64
    %v593 = vpop.permute.xlu0 %592
    %v595 = vsel %vm254, %v593, 0
    %597 = vmatprep.subr.bf16.mxu0 %v247
    %598 = vmatpush1.bf16.msra.mxu0 %v246
    %599 = vmatprep.subr.bf16.mxu0 %v249
    %600 = vmatpush1.bf16.msra.mxu0 %v248
    %601 = vmatprep.subr.bf16.mxu0 0
    %602 = vmatpush1.bf16.msra.mxu0 0
    %603 = vmatprep.subr.bf16.mxu0 0
    %604 = vmatpush1.bf16.msra.mxu0 0
    %605 = vmatprep.subr.bf16.mxu0 0
    %606 = vmatpush1.bf16.msra.mxu0 0
    %607 = vmatprep.subr.bf16.mxu0 0
    %608 = vmatpush1.bf16.msra.mxu0 0
    %609 = vmatprep.subr.bf16.mxu0 0
    %610 = vmatpush1.bf16.msra.mxu0 0
    %611 = vmatprep.subr.bf16.mxu0 0
    %612 = vmatpush1.bf16.msra.mxu0 0
    %613 = vmatprep.subr.bf16.mxu0 0
    %614 = vmatpush1.bf16.msra.mxu0 0
    %615 = vmatprep.subr.bf16.mxu0 0
    %616 = vmatpush1.bf16.msra.mxu0 0
    %617 = vmatprep.subr.bf16.mxu0 0
    %618 = vmatpush1.bf16.msra.mxu0 0
    %619 = vmatprep.subr.bf16.mxu0 0
    %620 = vmatpush1.bf16.msra.mxu0 0
    %621 = vmatprep.subr.bf16.mxu0 0
    %622 = vmatpush1.bf16.msra.mxu0 0
    %623 = vmatprep.subr.bf16.mxu0 0
    %624 = vmatpush1.bf16.msra.mxu0 0
    %625 = vmatprep.subr.bf16.mxu0 0
    %626 = vmatpush1.bf16.msra.mxu0 0
    %627 = vmatprep.subr.bf16.mxu0 0
    %628 = vmatpush1.bf16.msra.mxu0 0
    %629 = vmatprep.mubr.bf16.mxu0 0
    %630 = vmatmul.mubr.bf16.gmra.mrb[0].mxu0 %v595
    %v631 = vpop.f32.mrb[0].mxu0
    %v632 = vadd.f32 0.0, %v631
    %v633 = vpop.f32.mrb[0].mxu0
    %v634 = vpop.f32.mrb[0].mxu0
    %v635 = vpop.f32.mrb[0].mxu0
    %v636 = vadd.f32 0.0, %v635
    %637 = vdwg.mxu0
    %s638 = smul.u32 3, 2
    %s639 = smul.addr %s638, 8
    %s640 = scalar_lea.vmem [#allocation2], %s639
    %v641 = vld [vmem:[%s640] sm:$0xff]
    %v642 = vadd.f32 %v641, %v632
    %s643 = smul.u32 4, 2
    %s644 = smul.addr %s643, 8
    %s645 = scalar_lea.vmem [#allocation2], %s644
    %v646 = vld [vmem:[%s645 + $0x8] sm:$0xff]
    %v647 = vadd.f32 %v646, %v636
    %v648 = vmul.f32 %v642, 0.5
    %v649 = vmul.f32 %v647, 0.5
    %v650 = vtanh.pop %v648
    %v651 = vtanh.pop %v649
    %v652 = vmul.f32 %v650, 0.5
    %v653 = vmul.f32 %v651, 0.5
    %v654 = vadd.f32 %v652, 0.5
    %v655 = vadd.f32 %v653, 0.5
    %v656 = vtanh.pop %v642
    %v657 = vtanh.pop %v647
    %v658 = vmul.f32 %v654, %v565
    %v659 = vmul.f32 %v655, %v566
    %662 = vrot.lane.b32.xlu0 %v656, 32
    %v663 = vpop.permute.xlu0 %662
    %664 = vrot.lane.b32.xlu0 %v657, 32
    %v665 = vpop.permute.xlu0 %664
    %v668 = vmul.f32 %v654, %v663
    %v669 = vmul.f32 %v655, %v665
    %672 = vrot.lane.b32.xlu0 %v668, 32
    %v673 = vpop.permute.xlu0 %672
    %674 = vrot.lane.b32.xlu0 %v669, 32
    %v675 = vpop.permute.xlu0 %674
    %v678 = vadd.f32 %v658, %v673
    %v679 = vadd.f32 %v659, %v675
    %v680 = vtanh.pop %v678
    %v681 = vtanh.pop %v679
    %684 = vrot.lane.b32.xlu0 %v680, 32
    %v685 = vpop.permute.xlu0 %684
    %686 = vrot.lane.b32.xlu0 %v681, 32
    %v687 = vpop.permute.xlu0 %686
    %v690 = vmul.f32 %v654, %v685
    %v691 = vmul.f32 %v655, %v687
    %693 = vrot.lane.b32.xlu0 %v690, 64
    %v694 = vpop.permute.xlu0 %693
    %697 = vrot.lane.b32.xlu0 %v691, 96
    %v698 = vpop.permute.xlu0 %697
    %v700 = vsel %vm254, %v694, %v698
    %s701 = scalar_lea.vmem [#allocation4], 24
    %702 = vst.msk [vmem:[%s701] sm:$0xff] %vm362, %v700
    %v703 = vpack.c.bf16 %v691, %v690
    %705 = vrot.lane.b32.xlu0 %v703, 64
    %v706 = vpop.permute.xlu0 %705
    %v708 = vsel %vm254, %v706, 0
    %710 = vmatprep.subr.bf16.mxu0 %v247
    %711 = vmatpush1.bf16.msra.mxu0 %v246
    %712 = vmatprep.subr.bf16.mxu0 %v249
    %713 = vmatpush1.bf16.msra.mxu0 %v248
    %714 = vmatprep.subr.bf16.mxu0 0
    %715 = vmatpush1.bf16.msra.mxu0 0
    %716 = vmatprep.subr.bf16.mxu0 0
    %717 = vmatpush1.bf16.msra.mxu0 0
    %718 = vmatprep.subr.bf16.mxu0 0
    %719 = vmatpush1.bf16.msra.mxu0 0
    %720 = vmatprep.subr.bf16.mxu0 0
    %721 = vmatpush1.bf16.msra.mxu0 0
    %722 = vmatprep.subr.bf16.mxu0 0
    %723 = vmatpush1.bf16.msra.mxu0 0
    %724 = vmatprep.subr.bf16.mxu0 0
    %725 = vmatpush1.bf16.msra.mxu0 0
    %726 = vmatprep.subr.bf16.mxu0 0
    %727 = vmatpush1.bf16.msra.mxu0 0
    %728 = vmatprep.subr.bf16.mxu0 0
    %729 = vmatpush1.bf16.msra.mxu0 0
    %730 = vmatprep.subr.bf16.mxu0 0
    %731 = vmatpush1.bf16.msra.mxu0 0
    %732 = vmatprep.subr.bf16.mxu0 0
    %733 = vmatpush1.bf16.msra.mxu0 0
    %734 = vmatprep.subr.bf16.mxu0 0
    %735 = vmatpush1.bf16.msra.mxu0 0
    %736 = vmatprep.subr.bf16.mxu0 0
    %737 = vmatpush1.bf16.msra.mxu0 0
    %738 = vmatprep.subr.bf16.mxu0 0
    %739 = vmatpush1.bf16.msra.mxu0 0
    %740 = vmatprep.subr.bf16.mxu0 0
    %741 = vmatpush1.bf16.msra.mxu0 0
    %742 = vmatprep.mubr.bf16.mxu0 0
    %743 = vmatmul.mubr.bf16.gmra.mrb[0].mxu0 %v708
    %v744 = vpop.f32.mrb[0].mxu0
    %v745 = vadd.f32 0.0, %v744
    %v746 = vpop.f32.mrb[0].mxu0
    %v747 = vpop.f32.mrb[0].mxu0
    %v748 = vpop.f32.mrb[0].mxu0
    %v749 = vadd.f32 0.0, %v748
    %750 = vdwg.mxu0
    %v751 = vld [vmem:[%s645] sm:$0xff]
    %v752 = vadd.f32 %v751, %v745
    %v753 = vld [vmem:[%s640 + $0x8] sm:$0xff]
    %v754 = vadd.f32 %v753, %v749
    %v755 = vmul.f32 %v752, 0.5
    %v756 = vmul.f32 %v754, 0.5
    %v757 = vtanh.pop %v755
    %v758 = vtanh.pop %v756
    %v759 = vmul.f32 %v757, 0.5
    %v760 = vmul.f32 %v758, 0.5
    %v761 = vadd.f32 %v759, 0.5
    %v762 = vadd.f32 %v760, 0.5
    %v763 = vtanh.pop %v752
    %v764 = vtanh.pop %v754
    %v765 = vmul.f32 %v761, %v678
    %v766 = vmul.f32 %v762, %v679
    %769 = vrot.lane.b32.xlu0 %v763, 32
    %v770 = vpop.permute.xlu0 %769
    %771 = vrot.lane.b32.xlu0 %v764, 32
    %v772 = vpop.permute.xlu0 %771
    %v775 = vmul.f32 %v761, %v770
    %v776 = vmul.f32 %v762, %v772
    %779 = vrot.lane.b32.xlu0 %v775, 32
    %v780 = vpop.permute.xlu0 %779
    %781 = vrot.lane.b32.xlu0 %v776, 32
    %v782 = vpop.permute.xlu0 %781
    %v785 = vadd.f32 %v765, %v780
    %v786 = vadd.f32 %v766, %v782
    %v787 = vtanh.pop %v785
    %v788 = vtanh.pop %v786
    %791 = vrot.lane.b32.xlu0 %v787, 32
    %v792 = vpop.permute.xlu0 %791
    %793 = vrot.lane.b32.xlu0 %v788, 32
    %v794 = vpop.permute.xlu0 %793
    %v797 = vmul.f32 %v761, %v792
    %v798 = vmul.f32 %v762, %v794
    %800 = vrot.lane.b32.xlu0 %v797, 64
    %v801 = vpop.permute.xlu0 %800
    %804 = vrot.lane.b32.xlu0 %v798, 96
    %v805 = vpop.permute.xlu0 %804
    %v807 = vsel %vm254, %v801, %v805
    %s808 = scalar_lea.vmem [#allocation4], 32
    %809 = vst.msk [vmem:[%s808] sm:$0xff] %vm362, %v807
    %v810 = vpack.c.bf16 %v798, %v797
    %812 = vrot.lane.b32.xlu0 %v810, 64
    %v813 = vpop.permute.xlu0 %812
    %v815 = vsel %vm254, %v813, 0
    %817 = vmatprep.subr.bf16.mxu0 %v247
    %818 = vmatpush1.bf16.msra.mxu0 %v246
    %819 = vmatprep.subr.bf16.mxu0 %v249
    %820 = vmatpush1.bf16.msra.mxu0 %v248
    %821 = vmatprep.subr.bf16.mxu0 0
    %822 = vmatpush1.bf16.msra.mxu0 0
    %823 = vmatprep.subr.bf16.mxu0 0
    %824 = vmatpush1.bf16.msra.mxu0 0
    %825 = vmatprep.subr.bf16.mxu0 0
    %826 = vmatpush1.bf16.msra.mxu0 0
    %827 = vmatprep.subr.bf16.mxu0 0
    %828 = vmatpush1.bf16.msra.mxu0 0
    %829 = vmatprep.subr.bf16.mxu0 0
    %830 = vmatpush1.bf16.msra.mxu0 0
    %831 = vmatprep.subr.bf16.mxu0 0
    %832 = vmatpush1.bf16.msra.mxu0 0
    %833 = vmatprep.subr.bf16.mxu0 0
    %834 = vmatpush1.bf16.msra.mxu0 0
    %835 = vmatprep.subr.bf16.mxu0 0
    %836 = vmatpush1.bf16.msra.mxu0 0
    %837 = vmatprep.subr.bf16.mxu0 0
    %838 = vmatpush1.bf16.msra.mxu0 0
    %839 = vmatprep.subr.bf16.mxu0 0
    %840 = vmatpush1.bf16.msra.mxu0 0
    %841 = vmatprep.subr.bf16.mxu0 0
    %842 = vmatpush1.bf16.msra.mxu0 0
    %843 = vmatprep.subr.bf16.mxu0 0
    %844 = vmatpush1.bf16.msra.mxu0 0
    %845 = vmatprep.subr.bf16.mxu0 0
    %846 = vmatpush1.bf16.msra.mxu0 0
    %847 = vmatprep.subr.bf16.mxu0 0
    %848 = vmatpush1.bf16.msra.mxu0 0
    %849 = vmatprep.mubr.bf16.mxu0 0
    %850 = vmatmul.mubr.bf16.gmra.mrb[0].mxu0 %v815
    %v851 = vpop.f32.mrb[0].mxu0
    %v852 = vadd.f32 0.0, %v851
    %v853 = vpop.f32.mrb[0].mxu0
    %v854 = vpop.f32.mrb[0].mxu0
    %v855 = vpop.f32.mrb[0].mxu0
    %v856 = vadd.f32 0.0, %v855
    %857 = vdwg.mxu0
    %v858 = vld [vmem:[%s532] sm:$0xff]
    %v859 = vadd.f32 %v858, %v852
    %v860 = vld [vmem:[%s527 + $0x8] sm:$0xff]
    %v861 = vadd.f32 %v860, %v856
    %v862 = vmul.f32 %v859, 0.5
    %v863 = vmul.f32 %v861, 0.5
    %v864 = vtanh.pop %v862
    %v865 = vtanh.pop %v863
    %v866 = vmul.f32 %v864, 0.5
    %v867 = vmul.f32 %v865, 0.5
    %v868 = vadd.f32 %v866, 0.5
    %v869 = vadd.f32 %v867, 0.5
    %v870 = vtanh.pop %v859
    %v871 = vtanh.pop %v861
    %v872 = vmul.f32 %v868, %v785
    %v873 = vmul.f32 %v869, %v786
    %876 = vrot.lane.b32.xlu0 %v870, 32
    %v877 = vpop.permute.xlu0 %876
    %878 = vrot.lane.b32.xlu0 %v871, 32
    %v879 = vpop.permute.xlu0 %878
    %v882 = vmul.f32 %v868, %v877
    %v883 = vmul.f32 %v869, %v879
    %886 = vrot.lane.b32.xlu0 %v882, 32
    %v887 = vpop.permute.xlu0 %886
    %888 = vrot.lane.b32.xlu0 %v883, 32
    %v889 = vpop.permute.xlu0 %888
    %v892 = vadd.f32 %v872, %v887
    %v893 = vadd.f32 %v873, %v889
    %v894 = vtanh.pop %v892
    %v895 = vtanh.pop %v893
    %898 = vrot.lane.b32.xlu0 %v894, 32
    %v899 = vpop.permute.xlu0 %898
    %900 = vrot.lane.b32.xlu0 %v895, 32
    %v901 = vpop.permute.xlu0 %900
    %v904 = vmul.f32 %v868, %v899
    %v905 = vmul.f32 %v869, %v901
    %907 = vrot.lane.b32.xlu0 %v904, 64
    %v908 = vpop.permute.xlu0 %907
    %911 = vrot.lane.b32.xlu0 %v905, 96
    %v912 = vpop.permute.xlu0 %911
    %v914 = vsel %vm254, %v908, %v912
    %s915 = scalar_lea.vmem [#allocation4], 40
    %916 = vst.msk [vmem:[%s915] sm:$0xff] %vm362, %v914
    %v917 = vpack.c.bf16 %v905, %v904
    %919 = vrot.lane.b32.xlu0 %v917, 64
    %v920 = vpop.permute.xlu0 %919
    %v922 = vsel %vm254, %v920, 0
    %924 = vmatprep.subr.bf16.mxu0 %v247
    %925 = vmatpush1.bf16.msra.mxu0 %v246
    %926 = vmatprep.subr.bf16.mxu0 %v249
    %927 = vmatpush1.bf16.msra.mxu0 %v248
    %928 = vmatprep.subr.bf16.mxu0 0
    %929 = vmatpush1.bf16.msra.mxu0 0
    %930 = vmatprep.subr.bf16.mxu0 0
    %931 = vmatpush1.bf16.msra.mxu0 0
    %932 = vmatprep.subr.bf16.mxu0 0
    %933 = vmatpush1.bf16.msra.mxu0 0
    %934 = vmatprep.subr.bf16.mxu0 0
    %935 = vmatpush1.bf16.msra.mxu0 0
    %936 = vmatprep.subr.bf16.mxu0 0
    %937 = vmatpush1.bf16.msra.mxu0 0
    %938 = vmatprep.subr.bf16.mxu0 0
    %939 = vmatpush1.bf16.msra.mxu0 0
    %940 = vmatprep.subr.bf16.mxu0 0
    %941 = vmatpush1.bf16.msra.mxu0 0
    %942 = vmatprep.subr.bf16.mxu0 0
    %943 = vmatpush1.bf16.msra.mxu0 0
    %944 = vmatprep.subr.bf16.mxu0 0
    %945 = vmatpush1.bf16.msra.mxu0 0
    %946 = vmatprep.subr.bf16.mxu0 0
    %947 = vmatpush1.bf16.msra.mxu0 0
    %948 = vmatprep.subr.bf16.mxu0 0
    %949 = vmatpush1.bf16.msra.mxu0 0
    %950 = vmatprep.subr.bf16.mxu0 0
    %951 = vmatpush1.bf16.msra.mxu0 0
    %952 = vmatprep.subr.bf16.mxu0 0
    %953 = vmatpush1.bf16.msra.mxu0 0
    %954 = vmatprep.subr.bf16.mxu0 0
    %955 = vmatpush1.bf16.msra.mxu0 0
    %956 = vmatprep.mubr.bf16.mxu0 0
    %957 = vmatmul.mubr.bf16.gmra.mrb[0].mxu0 %v922
    %v958 = vpop.f32.mrb[0].mxu0
    %v959 = vadd.f32 0.0, %v958
    %v960 = vpop.f32.mrb[0].mxu0
    %v961 = vpop.f32.mrb[0].mxu0
    %v962 = vpop.f32.mrb[0].mxu0
    %v963 = vadd.f32 0.0, %v962
    %964 = vdwg.mxu0
    %v965 = vld [vmem:[%s419] sm:$0xff]
    %v966 = vadd.f32 %v965, %v959
    %v967 = vld [vmem:[%s414 + $0x8] sm:$0xff]
    %v968 = vadd.f32 %v967, %v963
    %v969 = vmul.f32 %v966, 0.5
    %v970 = vmul.f32 %v968, 0.5
    %v971 = vtanh.pop %v969
    %v972 = vtanh.pop %v970
    %v973 = vmul.f32 %v971, 0.5
    %v974 = vmul.f32 %v972, 0.5
    %v975 = vadd.f32 %v973, 0.5
    %v976 = vadd.f32 %v974, 0.5
    %v977 = vtanh.pop %v966
    %v978 = vtanh.pop %v968
    %v979 = vmul.f32 %v975, %v892
    %v980 = vmul.f32 %v976, %v893
    %983 = vrot.lane.b32.xlu0 %v977, 32
    %v984 = vpop.permute.xlu0 %983
    %985 = vrot.lane.b32.xlu0 %v978, 32
    %v986 = vpop.permute.xlu0 %985
    %v989 = vmul.f32 %v975, %v984
    %v990 = vmul.f32 %v976, %v986
    %993 = vrot.lane.b32.xlu0 %v989, 32
    %v994 = vpop.permute.xlu0 %993
    %995 = vrot.lane.b32.xlu0 %v990, 32
    %v996 = vpop.permute.xlu0 %995
    %v999 = vadd.f32 %v979, %v994
    %v1000 = vadd.f32 %v980, %v996
    %v1001 = vtanh.pop %v999
    %v1002 = vtanh.pop %v1000
    %1005 = vrot.lane.b32.xlu0 %v1001, 32
    %v1006 = vpop.permute.xlu0 %1005
    %1007 = vrot.lane.b32.xlu0 %v1002, 32
    %v1008 = vpop.permute.xlu0 %1007
    %v1011 = vmul.f32 %v975, %v1006
    %v1012 = vmul.f32 %v976, %v1008
    %1014 = vrot.lane.b32.xlu0 %v1011, 64
    %v1015 = vpop.permute.xlu0 %1014
    %1018 = vrot.lane.b32.xlu0 %v1012, 96
    %v1019 = vpop.permute.xlu0 %1018
    %v1021 = vsel %vm254, %v1015, %v1019
    %s1022 = scalar_lea.vmem [#allocation4], 48
    %1023 = vst.msk [vmem:[%s1022] sm:$0xff] %vm362, %v1021
    %v1024 = vpack.c.bf16 %v1012, %v1011
    %1026 = vrot.lane.b32.xlu0 %v1024, 64
    %v1027 = vpop.permute.xlu0 %1026
    %v1029 = vsel %vm254, %v1027, 0
    %1031 = vmatprep.subr.bf16.mxu0 %v247
    %1032 = vmatpush1.bf16.msra.mxu0 %v246
    %1033 = vmatprep.subr.bf16.mxu0 %v249
    %1034 = vmatpush1.bf16.msra.mxu0 %v248
    %1035 = vmatprep.subr.bf16.mxu0 0
    %1036 = vmatpush1.bf16.msra.mxu0 0
    %1037 = vmatprep.subr.bf16.mxu0 0
    %1038 = vmatpush1.bf16.msra.mxu0 0
    %1039 = vmatprep.subr.bf16.mxu0 0
    %1040 = vmatpush1.bf16.msra.mxu0 0
    %1041 = vmatprep.subr.bf16.mxu0 0
    %1042 = vmatpush1.bf16.msra.mxu0 0
    %1043 = vmatprep.subr.bf16.mxu0 0
    %1044 = vmatpush1.bf16.msra.mxu0 0
    %1045 = vmatprep.subr.bf16.mxu0 0
    %1046 = vmatpush1.bf16.msra.mxu0 0
    %1047 = vmatprep.subr.bf16.mxu0 0
    %1048 = vmatpush1.bf16.msra.mxu0 0
    %1049 = vmatprep.subr.bf16.mxu0 0
    %1050 = vmatpush1.bf16.msra.mxu0 0
    %1051 = vmatprep.subr.bf16.mxu0 0
    %1052 = vmatpush1.bf16.msra.mxu0 0
    %1053 = vmatprep.subr.bf16.mxu0 0
    %1054 = vmatpush1.bf16.msra.mxu0 0
    %1055 = vmatprep.subr.bf16.mxu0 0
    %1056 = vmatpush1.bf16.msra.mxu0 0
    %1057 = vmatprep.subr.bf16.mxu0 0
    %1058 = vmatpush1.bf16.msra.mxu0 0
    %1059 = vmatprep.subr.bf16.mxu0 0
    %1060 = vmatpush1.bf16.msra.mxu0 0
    %1061 = vmatprep.subr.bf16.mxu0 0
    %1062 = vmatpush1.bf16.msra.mxu0 0
    %1063 = vmatprep.mubr.bf16.mxu0 0
    %1064 = vmatmul.mubr.bf16.gmra.mrb[0].mxu0 %v1029
    %v1065 = vpop.f32.mrb[0].mxu0
    %v1066 = vadd.f32 0.0, %v1065
    %v1067 = vpop.f32.mrb[0].mxu0
    %v1068 = vpop.f32.mrb[0].mxu0
    %v1069 = vpop.f32.mrb[0].mxu0
    %v1070 = vadd.f32 0.0, %v1069
    %1071 = vdwg.mxu0
    %v1072 = vld [vmem:[%s306] sm:$0xff]
    %v1073 = vadd.f32 %v1072, %v1066
    %v1074 = vld [vmem:[%s301 + $0x8] sm:$0xff]
    %v1075 = vadd.f32 %v1074, %v1070
    %v1076 = vmul.f32 %v1073, 0.5
    %v1077 = vmul.f32 %v1075, 0.5
    %v1078 = vtanh.pop %v1076
    %v1079 = vtanh.pop %v1077
    %v1080 = vmul.f32 %v1078, 0.5
    %v1081 = vmul.f32 %v1079, 0.5
    %v1082 = vadd.f32 %v1080, 0.5
    %v1083 = vadd.f32 %v1081, 0.5
    %v1084 = vtanh.pop %v1073
    %v1085 = vtanh.pop %v1075
    %v1086 = vmul.f32 %v1082, %v999
    %v1087 = vmul.f32 %v1083, %v1000
    %1090 = vrot.lane.b32.xlu0 %v1084, 32
    %v1091 = vpop.permute.xlu0 %1090
    %1092 = vrot.lane.b32.xlu0 %v1085, 32
    %v1093 = vpop.permute.xlu0 %1092
    %v1096 = vmul.f32 %v1082, %v1091
    %v1097 = vmul.f32 %v1083, %v1093
    %1100 = vrot.lane.b32.xlu0 %v1096, 32
    %v1101 = vpop.permute.xlu0 %1100
    %1102 = vrot.lane.b32.xlu0 %v1097, 32
    %v1103 = vpop.permute.xlu0 %1102
    %v1106 = vadd.f32 %v1086, %v1101
    %v1107 = vadd.f32 %v1087, %v1103
    %v1108 = vtanh.pop %v1106
    %v1109 = vtanh.pop %v1107
    %1112 = vrot.lane.b32.xlu0 %v1108, 32
    %v1113 = vpop.permute.xlu0 %1112
    %1114 = vrot.lane.b32.xlu0 %v1109, 32
    %v1115 = vpop.permute.xlu0 %1114
    %v1118 = vmul.f32 %v1082, %v1113
    %v1119 = vmul.f32 %v1083, %v1115
    %1121 = vrot.lane.b32.xlu0 %v1118, 64
    %v1122 = vpop.permute.xlu0 %1121
    %1125 = vrot.lane.b32.xlu0 %v1119, 96
    %v1126 = vpop.permute.xlu0 %1125
    %v1128 = vsel %vm254, %v1122, %v1126
    %s1129 = scalar_lea.vmem [#allocation4], 56
    %1130 = vst.msk [vmem:[%s1129] sm:$0xff] %vm362, %v1128
    %v1131 = vld [vmem:[#allocation4] sm:$0xff]
    %v1132 = vld [vmem:[#allocation4 + $0x8] sm:$0xff]
    %v1133 = vld [vmem:[#allocation4 + $0x10] sm:$0xff]
    %v1134 = vld [vmem:[#allocation4 + $0x18] sm:$0xff]
    %v1135 = vld [vmem:[#allocation4 + $0x20] sm:$0xff]
    %v1136 = vld [vmem:[#allocation4 + $0x28] sm:$0xff]
    %v1137 = vld [vmem:[#allocation4 + $0x30] sm:$0xff]
    %v1138 = vld [vmem:[#allocation4 + $0x38] sm:$0xff]
    %v1139 = vpack.c.bf16 %v1132, %v1131
    %v1140 = vpack.c.bf16 %v1134, %v1133
    %v1141 = vpack.c.bf16 %v1136, %v1135
    %v1142 = vpack.c.bf16 %v1138, %v1137
    %v1143 = vld [vmem:[%s4] sm:$0xff]
    %v1144 = vld [vmem:[%s4 + $0x8] sm:$0xff]
    %v1145 = vld [vmem:[%s4 + $0x10] sm:$0xff]
    %v1146 = vld [vmem:[%s4 + $0x18] sm:$0xff]
    %v1147 = vld [vmem:[%s6] sm:$0x3]
    %v1149 = vlaneseq
    %v1150 = vshrl.u32 %v1149, 7
    %v1151 = vsub.s32 0, %v1150
    %v1152 = vrot.slane %v1147, %v1151
    %v1153 = vlaneseq
    %v1154 = vshrl.u32 %v1153, 7
    %v1155 = vsub.s32 1, %v1154
    %v1156 = vrot.slane %v1147, %v1155
    %v1163 = vunpack.c.l.b16 %v1143
    %v1164 = vunpack.c.h.b16 %v1143
    %v1165 = vunpack.c.l.b16 %v1144
    %v1166 = vunpack.c.h.b16 %v1144
    %v1167 = vunpack.c.l.b16 %v1145
    %v1168 = vunpack.c.h.b16 %v1145
    %v1169 = vunpack.c.l.b16 %v1146
    %v1170 = vunpack.c.h.b16 %v1146
    %v1171 = vpack.c.b16 %v1165, %v1163
    %v1172 = vpack.c.b16 %v1166, %v1164
    %v1173 = vpack.c.b16 %v1169, %v1167
    %v1174 = vpack.c.b16 %v1170, %v1168
    %v1180 = vsel %vm254, %v1139, 0
    %v1183 = vsel %vm254, %v1140, 0
    %v1186 = vsel %vm254, %v1141, 0
    %v1189 = vsel %vm254, %v1142, 0
    %1191 = vmatprep.subr.bf16.mxu0 %v1172
    %1192 = vmatpush1.bf16.msra.mxu0 %v1171
    %1193 = vmatprep.subr.bf16.mxu0 %v1174
    %1194 = vmatpush1.bf16.msra.mxu0 %v1173
    %1195 = vmatprep.subr.bf16.mxu0 0
    %1196 = vmatpush1.bf16.msra.mxu0 0
    %1197 = vmatprep.subr.bf16.mxu0 0
    %1198 = vmatpush1.bf16.msra.mxu0 0
    %1199 = vmatprep.subr.bf16.mxu0 0
    %1200 = vmatpush1.bf16.msra.mxu0 0
    %1201 = vmatprep.subr.bf16.mxu0 0
    %1202 = vmatpush1.bf16.msra.mxu0 0
    %1203 = vmatprep.subr.bf16.mxu0 0
    %1204 = vmatpush1.bf16.msra.mxu0 0
    %1205 = vmatprep.subr.bf16.mxu0 0
    %1206 = vmatpush1.bf16.msra.mxu0 0
    %1207 = vmatprep.subr.bf16.mxu0 0
    %1208 = vmatpush1.bf16.msra.mxu0 0
    %1209 = vmatprep.subr.bf16.mxu0 0
    %1210 = vmatpush1.bf16.msra.mxu0 0
    %1211 = vmatprep.subr.bf16.mxu0 0
    %1212 = vmatpush1.bf16.msra.mxu0 0
    %1213 = vmatprep.subr.bf16.mxu0 0
    %1214 = vmatpush1.bf16.msra.mxu0 0
    %1215 = vmatprep.subr.bf16.mxu0 0
    %1216 = vmatpush1.bf16.msra.mxu0 0
    %1217 = vmatprep.subr.bf16.mxu0 0
    %1218 = vmatpush1.bf16.msra.mxu0 0
    %1219 = vmatprep.subr.bf16.mxu0 0
    %1220 = vmatpush1.bf16.msra.mxu0 0
    %1221 = vmatprep.subr.bf16.mxu0 0
    %1222 = vmatpush1.bf16.msra.mxu0 0
    %1223 = vmatprep.mubr.bf16.mxu0 0
    %1224 = vmatmul.mubr.bf16.gmra.mrb[0].mxu0 %v1180
    %v1225 = vpop.f32.mrb[0].mxu0
    %v1226 = vadd.f32 %v1152, %v1225
    %v1227 = vpop.f32.mrb[0].mxu0
    %v1228 = vadd.f32 %v1156, %v1227
    %v1229 = vpop.f32.mrb[0].mxu0
    %v1230 = vadd.f32 %v1152, %v1229
    %v1231 = vpop.f32.mrb[0].mxu0
    %v1232 = vadd.f32 %v1156, %v1231
    %1233 = vmatprep.mubr.bf16.mxu0 0
    %1234 = vmatmul.mubr.bf16.gmra.mrb[0].mxu0 %v1183
    %v1235 = vpop.f32.mrb[0].mxu0
    %v1236 = vadd.f32 %v1152, %v1235
    %v1237 = vpop.f32.mrb[0].mxu0
    %v1238 = vadd.f32 %v1156, %v1237
    %v1239 = vpop.f32.mrb[0].mxu0
    %v1240 = vadd.f32 %v1152, %v1239
    %v1241 = vpop.f32.mrb[0].mxu0
    %v1242 = vadd.f32 %v1156, %v1241
    %1243 = vmatprep.mubr.bf16.mxu0 0
    %1244 = vmatmul.mubr.bf16.gmra.mrb[0].mxu0 %v1186
    %v1245 = vpop.f32.mrb[0].mxu0
    %v1246 = vadd.f32 %v1152, %v1245
    %v1247 = vpop.f32.mrb[0].mxu0
    %v1248 = vadd.f32 %v1156, %v1247
    %v1249 = vpop.f32.mrb[0].mxu0
    %v1250 = vadd.f32 %v1152, %v1249
    %v1251 = vpop.f32.mrb[0].mxu0
    %v1252 = vadd.f32 %v1156, %v1251
    %1253 = vmatprep.mubr.bf16.mxu0 0
    %1254 = vmatmul.mubr.bf16.gmra.mrb[0].mxu0 %v1189
    %v1255 = vpop.f32.mrb[0].mxu0
    %v1256 = vadd.f32 %v1152, %v1255
    %v1257 = vpop.f32.mrb[0].mxu0
    %v1258 = vadd.f32 %v1156, %v1257
    %v1259 = vpop.f32.mrb[0].mxu0
    %v1260 = vadd.f32 %v1152, %v1259
    %v1261 = vpop.f32.mrb[0].mxu0
    %v1262 = vadd.f32 %v1156, %v1261
    %1263 = vdwg.mxu0
    %1264 = vst [vmem:[#allocation2] sm:$0xff] %v1226
    %1265 = vst [vmem:[#allocation2 + $0x8] sm:$0xff] %v1228
    %1266 = vst [vmem:[#allocation2 + $0x10] sm:$0xff] %v1230
    %1267 = vst [vmem:[#allocation2 + $0x18] sm:$0xff] %v1232
    %1268 = vst [vmem:[#allocation2 + $0x20] sm:$0xff] %v1236
    %1269 = vst [vmem:[#allocation2 + $0x28] sm:$0xff] %v1238
    %1270 = vst [vmem:[#allocation2 + $0x30] sm:$0xff] %v1240
    %1271 = vst [vmem:[#allocation2 + $0x38] sm:$0xff] %v1242
    %1272 = vst [vmem:[#allocation2 + $0x40] sm:$0xff] %v1246
    %1273 = vst [vmem:[#allocation2 + $0x48] sm:$0xff] %v1248
    %1274 = vst [vmem:[#allocation2 + $0x50] sm:$0xff] %v1250
    %1275 = vst [vmem:[#allocation2 + $0x58] sm:$0xff] %v1252
    %1276 = vst [vmem:[#allocation2 + $0x60] sm:$0xff] %v1256
    %1277 = vst [vmem:[#allocation2 + $0x68] sm:$0xff] %v1258
    %1278 = vst [vmem:[#allocation2 + $0x70] sm:$0xff] %v1260
    %1279 = vst [vmem:[#allocation2 + $0x78] sm:$0xff] %v1262
    %v1280 = vld [vmem:[%s5] sm:$0xff]
    %v1281 = vld [vmem:[%s5 + $0x8] sm:$0xff]
    %v1282 = vld [vmem:[%s5 + $0x10] sm:$0xff]
    %v1283 = vld [vmem:[%s5 + $0x18] sm:$0xff]
    %1288 = vrot.lane.b32.xlu0 %v1139, 96
    %v1289 = vpop.permute.xlu0 %1288
    %1290 = vrot.lane.b32.xlu0 %v1140, 96
    %v1291 = vpop.permute.xlu0 %1290
    %1292 = vrot.lane.b32.xlu0 %v1141, 96
    %v1293 = vpop.permute.xlu0 %1292
    %1294 = vrot.lane.b32.xlu0 %v1142, 96
    %v1295 = vpop.permute.xlu0 %1294
    %v1300 = vunpack.c.l.b16 %v1280
    %v1301 = vunpack.c.h.b16 %v1280
    %v1302 = vunpack.c.l.b16 %v1281
    %v1303 = vunpack.c.h.b16 %v1281
    %v1304 = vunpack.c.l.b16 %v1282
    %v1305 = vunpack.c.h.b16 %v1282
    %v1306 = vunpack.c.l.b16 %v1283
    %v1307 = vunpack.c.h.b16 %v1283
    %v1308 = vpack.c.b16 %v1302, %v1300
    %v1309 = vpack.c.b16 %v1303, %v1301
    %v1310 = vpack.c.b16 %v1306, %v1304
    %v1311 = vpack.c.b16 %v1307, %v1305
    %v1317 = vsel %vm254, %v1289, 0
    %v1320 = vsel %vm254, %v1291, 0
    %v1323 = vsel %vm254, %v1293, 0
    %v1326 = vsel %vm254, %v1295, 0
    %1328 = vmatprep.subr.bf16.mxu0 %v1309
    %1329 = vmatpush1.bf16.msra.mxu0 %v1308
    %1330 = vmatprep.subr.bf16.mxu0 %v1311
    %1331 = vmatpush1.bf16.msra.mxu0 %v1310
    %1332 = vmatprep.subr.bf16.mxu0 0
    %1333 = vmatpush1.bf16.msra.mxu0 0
    %1334 = vmatprep.subr.bf16.mxu0 0
    %1335 = vmatpush1.bf16.msra.mxu0 0
    %1336 = vmatprep.subr.bf16.mxu0 0
    %1337 = vmatpush1.bf16.msra.mxu0 0
    %1338 = vmatprep.subr.bf16.mxu0 0
    %1339 = vmatpush1.bf16.msra.mxu0 0
    %1340 = vmatprep.subr.bf16.mxu0 0
    %1341 = vmatpush1.bf16.msra.mxu0 0
    %1342 = vmatprep.subr.bf16.mxu0 0
    %1343 = vmatpush1.bf16.msra.mxu0 0
    %1344 = vmatprep.subr.bf16.mxu0 0
    %1345 = vmatpush1.bf16.msra.mxu0 0
    %1346 = vmatprep.subr.bf16.mxu0 0
    %1347 = vmatpush1.bf16.msra.mxu0 0
    %1348 = vmatprep.subr.bf16.mxu0 0
    %1349 = vmatpush1.bf16.msra.mxu0 0
    %1350 = vmatprep.subr.bf16.mxu0 0
    %1351 = vmatpush1.bf16.msra.mxu0 0
    %1352 = vmatprep.subr.bf16.mxu0 0
    %1353 = vmatpush1.bf16.msra.mxu0 0
    %1354 = vmatprep.subr.bf16.mxu0 0
    %1355 = vmatpush1.bf16.msra.mxu0 0
    %1356 = vmatprep.subr.bf16.mxu0 0
    %1357 = vmatpush1.bf16.msra.mxu0 0
    %1358 = vmatprep.subr.bf16.mxu0 0
    %1359 = vmatpush1.bf16.msra.mxu0 0
    %1360 = vmatprep.mubr.bf16.mxu0 0
    %1361 = vmatmul.mubr.bf16.gmra.mrb[0].mxu0 %v1317
    %v1362 = vpop.f32.mrb[0].mxu0
    %v1363 = vadd.f32 0.0, %v1362
    %v1364 = vpop.f32.mrb[0].mxu0
    %v1365 = vadd.f32 0.0, %v1364
    %v1366 = vpop.f32.mrb[0].mxu0
    %v1367 = vadd.f32 0.0, %v1366
    %v1368 = vpop.f32.mrb[0].mxu0
    %v1369 = vadd.f32 0.0, %v1368
    %1370 = vmatprep.mubr.bf16.mxu0 0
    %1371 = vmatmul.mubr.bf16.gmra.mrb[0].mxu0 %v1320
    %v1372 = vpop.f32.mrb[0].mxu0
    %v1373 = vadd.f32 0.0, %v1372
    %v1374 = vpop.f32.mrb[0].mxu0
    %v1375 = vadd.f32 0.0, %v1374
    %v1376 = vpop.f32.mrb[0].mxu0
    %v1377 = vadd.f32 0.0, %v1376
    %v1378 = vpop.f32.mrb[0].mxu0
    %v1379 = vadd.f32 0.0, %v1378
    %1380 = vmatprep.mubr.bf16.mxu0 0
    %1381 = vmatmul.mubr.bf16.gmra.mrb[0].mxu0 %v1323
    %v1382 = vpop.f32.mrb[0].mxu0
    %v1383 = vadd.f32 0.0, %v1382
    %v1384 = vpop.f32.mrb[0].mxu0
    %v1385 = vadd.f32 0.0, %v1384
    %v1386 = vpop.f32.mrb[0].mxu0
    %v1387 = vadd.f32 0.0, %v1386
    %v1388 = vpop.f32.mrb[0].mxu0
    %v1389 = vadd.f32 0.0, %v1388
    %1390 = vmatprep.mubr.bf16.mxu0 0
    %1391 = vmatmul.mubr.bf16.gmra.mrb[0].mxu0 %v1326
    %v1392 = vpop.f32.mrb[0].mxu0
    %v1393 = vadd.f32 0.0, %v1392
    %v1394 = vpop.f32.mrb[0].mxu0
    %v1395 = vadd.f32 0.0, %v1394
    %v1396 = vpop.f32.mrb[0].mxu0
    %v1397 = vadd.f32 0.0, %v1396
    %v1398 = vpop.f32.mrb[0].mxu0
    %v1399 = vadd.f32 0.0, %v1398
    %1400 = vdwg.mxu0
    %1401 = vst [vmem:[#allocation3] sm:$0xff] %v1363
    %1402 = vst [vmem:[#allocation3 + $0x8] sm:$0xff] %v1365
    %1403 = vst [vmem:[#allocation3 + $0x10] sm:$0xff] %v1367
    %1404 = vst [vmem:[#allocation3 + $0x18] sm:$0xff] %v1369
    %1405 = vst [vmem:[#allocation3 + $0x20] sm:$0xff] %v1373
    %1406 = vst [vmem:[#allocation3 + $0x28] sm:$0xff] %v1375
    %1407 = vst [vmem:[#allocation3 + $0x30] sm:$0xff] %v1377
    %1408 = vst [vmem:[#allocation3 + $0x38] sm:$0xff] %v1379
    %1409 = vst [vmem:[#allocation3 + $0x40] sm:$0xff] %v1383
    %1410 = vst [vmem:[#allocation3 + $0x48] sm:$0xff] %v1385
    %1411 = vst [vmem:[#allocation3 + $0x50] sm:$0xff] %v1387
    %1412 = vst [vmem:[#allocation3 + $0x58] sm:$0xff] %v1389
    %1413 = vst [vmem:[#allocation3 + $0x60] sm:$0xff] %v1393
    %1414 = vst [vmem:[#allocation3 + $0x68] sm:$0xff] %v1395
    %1415 = vst [vmem:[#allocation3 + $0x70] sm:$0xff] %v1397
    %1416 = vst [vmem:[#allocation3 + $0x78] sm:$0xff] %v1399
    %v1417 = vld [vmem:[%s301] sm:$0xff]
    %v1418 = vld [vmem:[%s301 + $0x8] sm:$0xff]
    %s1419 = smul.addr %s304, 8
    %s1420 = scalar_lea.vmem [#allocation3], %s1419
    %v1421 = vld [vmem:[%s1420] sm:$0xff]
    %v1422 = vld [vmem:[%s1420 + $0x8] sm:$0xff]
    %v1423 = vadd.f32 %v1417, %v1421
    %v1424 = vadd.f32 %v1418, %v1422
    %1425 = vst [vmem:[%s301] sm:$0xff] %v1423
    %1426 = vst [vmem:[%s301 + $0x8] sm:$0xff] %v1424
    %v1427 = vld [vmem:[%s414] sm:$0xff]
    %v1428 = vld [vmem:[%s414 + $0x8] sm:$0xff]
    %s1429 = smul.addr %s417, 8
    %s1430 = scalar_lea.vmem [#allocation3], %s1429
    %v1431 = vld [vmem:[%s1430] sm:$0xff]
    %v1432 = vld [vmem:[%s1430 + $0x8] sm:$0xff]
    %v1433 = vadd.f32 %v1427, %v1431
    %v1434 = vadd.f32 %v1428, %v1432
    %1435 = vst [vmem:[%s414] sm:$0xff] %v1433
    %1436 = vst [vmem:[%s414 + $0x8] sm:$0xff] %v1434
    %v1437 = vld [vmem:[%s527] sm:$0xff]
    %v1438 = vld [vmem:[%s527 + $0x8] sm:$0xff]
    %s1439 = smul.addr %s530, 8
    %s1440 = scalar_lea.vmem [#allocation3], %s1439
    %v1441 = vld [vmem:[%s1440] sm:$0xff]
    %v1442 = vld [vmem:[%s1440 + $0x8] sm:$0xff]
    %v1443 = vadd.f32 %v1437, %v1441
    %v1444 = vadd.f32 %v1438, %v1442
    %1445 = vst [vmem:[%s527] sm:$0xff] %v1443
    %1446 = vst [vmem:[%s527 + $0x8] sm:$0xff] %v1444
    %v1447 = vld [vmem:[%s640] sm:$0xff]
    %v1448 = vld [vmem:[%s640 + $0x8] sm:$0xff]
    %s1449 = smul.addr %s643, 8
    %s1450 = scalar_lea.vmem [#allocation3], %s1449
    %v1451 = vld [vmem:[%s1450] sm:$0xff]
    %v1452 = vld [vmem:[%s1450 + $0x8] sm:$0xff]
    %v1453 = vadd.f32 %v1447, %v1451
    %v1454 = vadd.f32 %v1448, %v1452
    %1455 = vst [vmem:[%s640] sm:$0xff] %v1453
    %1456 = vst [vmem:[%s640 + $0x8] sm:$0xff] %v1454
    %v1457 = vld [vmem:[%s645] sm:$0xff]
    %v1458 = vld [vmem:[%s645 + $0x8] sm:$0xff]
    %s1459 = smul.addr %s638, 8
    %s1460 = scalar_lea.vmem [#allocation3], %s1459
    %v1461 = vld [vmem:[%s1460] sm:$0xff]
    %v1462 = vld [vmem:[%s1460 + $0x8] sm:$0xff]
    %v1463 = vadd.f32 %v1457, %v1461
    %v1464 = vadd.f32 %v1458, %v1462
    %1465 = vst [vmem:[%s645] sm:$0xff] %v1463
    %1466 = vst [vmem:[%s645 + $0x8] sm:$0xff] %v1464
    %v1467 = vld [vmem:[%s532] sm:$0xff]
    %v1468 = vld [vmem:[%s532 + $0x8] sm:$0xff]
    %s1469 = smul.addr %s525, 8
    %s1470 = scalar_lea.vmem [#allocation3], %s1469
    %v1471 = vld [vmem:[%s1470] sm:$0xff]
    %v1472 = vld [vmem:[%s1470 + $0x8] sm:$0xff]
    %v1473 = vadd.f32 %v1467, %v1471
    %v1474 = vadd.f32 %v1468, %v1472
    %1475 = vst [vmem:[%s532] sm:$0xff] %v1473
    %1476 = vst [vmem:[%s532 + $0x8] sm:$0xff] %v1474
    %v1477 = vld [vmem:[%s419] sm:$0xff]
    %v1478 = vld [vmem:[%s419 + $0x8] sm:$0xff]
    %s1479 = smul.addr %s412, 8
    %s1480 = scalar_lea.vmem [#allocation3], %s1479
    %v1481 = vld [vmem:[%s1480] sm:$0xff]
    %v1482 = vld [vmem:[%s1480 + $0x8] sm:$0xff]
    %v1483 = vadd.f32 %v1477, %v1481
    %v1484 = vadd.f32 %v1478, %v1482
    %1485 = vst [vmem:[%s419] sm:$0xff] %v1483
    %1486 = vst [vmem:[%s419 + $0x8] sm:$0xff] %v1484
    %v1487 = vld [vmem:[%s306] sm:$0xff]
    %v1488 = vld [vmem:[%s306 + $0x8] sm:$0xff]
    %s1489 = smul.addr %s299, 8
    %s1490 = scalar_lea.vmem [#allocation3], %s1489
    %v1491 = vld [vmem:[%s1490] sm:$0xff]
    %v1492 = vld [vmem:[%s1490 + $0x8] sm:$0xff]
    %v1493 = vadd.f32 %v1487, %v1491
    %v1494 = vadd.f32 %v1488, %v1492
    %1495 = vst [vmem:[%s306] sm:$0xff] %v1493
    %1496 = vst [vmem:[%s306 + $0x8] sm:$0xff] %v1494
    %v1497 = vld [vmem:[%s7] sm:$0xff]
    %v1498 = vld [vmem:[%s7 + $0x8] sm:$0xff]
    %v1499 = vld [vmem:[%s7 + $0x10] sm:$0xff]
    %v1500 = vld [vmem:[%s7 + $0x18] sm:$0xff]
    %v1505 = vunpack.c.l.b16 %v1497
    %v1506 = vunpack.c.h.b16 %v1497
    %v1507 = vunpack.c.l.b16 %v1498
    %v1508 = vunpack.c.h.b16 %v1498
    %v1509 = vunpack.c.l.b16 %v1499
    %v1510 = vunpack.c.h.b16 %v1499
    %v1511 = vunpack.c.l.b16 %v1500
    %v1512 = vunpack.c.h.b16 %v1500
    %v1513 = vpack.c.b16 %v1507, %v1505
    %v1514 = vpack.c.b16 %v1508, %v1506
    %v1515 = vpack.c.b16 %v1511, %v1509
    %v1516 = vpack.c.b16 %v1512, %v1510
    %1521 = vmatprep.subr.bf16.mxu0 %v1514
    %1522 = vmatpush1.bf16.msra.mxu0 %v1513
    %1523 = vmatprep.subr.bf16.mxu0 %v1516
    %1524 = vmatpush1.bf16.msra.mxu0 %v1515
    %1525 = vmatprep.subr.bf16.mxu0 0
    %1526 = vmatpush1.bf16.msra.mxu0 0
    %1527 = vmatprep.subr.bf16.mxu0 0
    %1528 = vmatpush1.bf16.msra.mxu0 0
    %1529 = vmatprep.subr.bf16.mxu0 0
    %1530 = vmatpush1.bf16.msra.mxu0 0
    %1531 = vmatprep.subr.bf16.mxu0 0
    %1532 = vmatpush1.bf16.msra.mxu0 0
    %1533 = vmatprep.subr.bf16.mxu0 0
    %1534 = vmatpush1.bf16.msra.mxu0 0
    %1535 = vmatprep.subr.bf16.mxu0 0
    %1536 = vmatpush1.bf16.msra.mxu0 0
    %1537 = vmatprep.subr.bf16.mxu0 0
    %1538 = vmatpush1.bf16.msra.mxu0 0
    %1539 = vmatprep.subr.bf16.mxu0 0
    %1540 = vmatpush1.bf16.msra.mxu0 0
    %1541 = vmatprep.subr.bf16.mxu0 0
    %1542 = vmatpush1.bf16.msra.mxu0 0
    %1543 = vmatprep.subr.bf16.mxu0 0
    %1544 = vmatpush1.bf16.msra.mxu0 0
    %1545 = vmatprep.subr.bf16.mxu0 0
    %1546 = vmatpush1.bf16.msra.mxu0 0
    %1547 = vmatprep.subr.bf16.mxu0 0
    %1548 = vmatpush1.bf16.msra.mxu0 0
    %1549 = vmatprep.subr.bf16.mxu0 0
    %1550 = vmatpush1.bf16.msra.mxu0 0
    %1551 = vmatprep.subr.bf16.mxu0 0
    %1552 = vmatpush1.bf16.msra.mxu0 0
    %1553 = vmatprep.mubr.bf16.mxu0 0
    %1554 = vmatmul.mubr.bf16.gmra.mrb[0].mxu0 %v256
    %v1555 = vpop.f32.mrb[0].mxu0
    %v1556 = vadd.f32 0.0, %v1555
    %v1557 = vpop.f32.mrb[0].mxu0
    %v1558 = vpop.f32.mrb[0].mxu0
    %v1559 = vpop.f32.mrb[0].mxu0
    %v1560 = vadd.f32 0.0, %v1559
    %1561 = vdwg.mxu0
    %v1562 = vld [vmem:[%s301] sm:$0xff]
    %v1563 = vadd.f32 %v1562, %v1556
    %v1564 = vld [vmem:[%s306 + $0x8] sm:$0xff]
    %v1565 = vadd.f32 %v1564, %v1560
    %v1566 = vmul.f32 %v1563, 0.5
    %v1567 = vmul.f32 %v1565, 0.5
    %v1568 = vtanh.pop %v1566
    %v1569 = vtanh.pop %v1567
    %v1570 = vmul.f32 %v1568, 0.5
    %v1571 = vmul.f32 %v1569, 0.5
    %v1572 = vadd.f32 %v1570, 0.5
    %v1573 = vadd.f32 %v1571, 0.5
    %v1574 = vtanh.pop %v1563
    %v1575 = vtanh.pop %v1565
    %v1576 = vmul.f32 %v1572, 0.0
    %v1577 = vmul.f32 %v1573, 0.0
    %1580 = vrot.lane.b32.xlu0 %v1574, 32
    %v1581 = vpop.permute.xlu0 %1580
    %1582 = vrot.lane.b32.xlu0 %v1575, 32
    %v1583 = vpop.permute.xlu0 %1582
    %v1586 = vmul.f32 %v1572, %v1581
    %v1587 = vmul.f32 %v1573, %v1583
    %1590 = vrot.lane.b32.xlu0 %v1586, 32
    %v1591 = vpop.permute.xlu0 %1590
    %1592 = vrot.lane.b32.xlu0 %v1587, 32
    %v1593 = vpop.permute.xlu0 %1592
    %v1596 = vadd.f32 %v1576, %v1591
    %v1597 = vadd.f32 %v1577, %v1593
    %v1598 = vtanh.pop %v1596
    %v1599 = vtanh.pop %v1597
    %1602 = vrot.lane.b32.xlu0 %v1598, 32
    %v1603 = vpop.permute.xlu0 %1602
    %1604 = vrot.lane.b32.xlu0 %v1599, 32
    %v1605 = vpop.permute.xlu0 %1604
    %v1608 = vmul.f32 %v1572, %v1603
    %v1609 = vmul.f32 %v1573, %v1605
    %1611 = vrot.lane.b32.xlu0 %v1608, 64
    %v1612 = vpop.permute.xlu0 %1611
    %1615 = vrot.lane.b32.xlu0 %v1609, 96
    %v1616 = vpop.permute.xlu0 %1615
    %v1618 = vsel %vm254, %v1612, %v1616
    %1619 = vst.msk [vmem:[#allocation4] sm:$0xff] %vm362, %v1618
    %v1620 = vpack.c.bf16 %v1609, %v1608
    %1622 = vrot.lane.b32.xlu0 %v1620, 64
    %v1623 = vpop.permute.xlu0 %1622
    %v1625 = vsel %vm254, %v1623, 0
    %1627 = vmatprep.subr.bf16.mxu0 %v1514
    %1628 = vmatpush1.bf16.msra.mxu0 %v1513
    %1629 = vmatprep.subr.bf16.mxu0 %v1516
    %1630 = vmatpush1.bf16.msra.mxu0 %v1515
    %1631 = vmatprep.subr.bf16.mxu0 0
    %1632 = vmatpush1.bf16.msra.mxu0 0
    %1633 = vmatprep.subr.bf16.mxu0 0
    %1634 = vmatpush1.bf16.msra.mxu0 0
    %1635 = vmatprep.subr.bf16.mxu0 0
    %1636 = vmatpush1.bf16.msra.mxu0 0
    %1637 = vmatprep.subr.bf16.mxu0 0
    %1638 = vmatpush1.bf16.msra.mxu0 0
    %1639 = vmatprep.subr.bf16.mxu0 0
    %1640 = vmatpush1.bf16.msra.mxu0 0
    %1641 = vmatprep.subr.bf16.mxu0 0
    %1642 = vmatpush1.bf16.msra.mxu0 0
    %1643 = vmatprep.subr.bf16.mxu0 0
    %1644 = vmatpush1.bf16.msra.mxu0 0
    %1645 = vmatprep.subr.bf16.mxu0 0
    %1646 = vmatpush1.bf16.msra.mxu0 0
    %1647 = vmatprep.subr.bf16.mxu0 0
    %1648 = vmatpush1.bf16.msra.mxu0 0
    %1649 = vmatprep.subr.bf16.mxu0 0
    %1650 = vmatpush1.bf16.msra.mxu0 0
    %1651 = vmatprep.subr.bf16.mxu0 0
    %1652 = vmatpush1.bf16.msra.mxu0 0
    %1653 = vmatprep.subr.bf16.mxu0 0
    %1654 = vmatpush1.bf16.msra.mxu0 0
    %1655 = vmatprep.subr.bf16.mxu0 0
    %1656 = vmatpush1.bf16.msra.mxu0 0
    %1657 = vmatprep.subr.bf16.mxu0 0
    %1658 = vmatpush1.bf16.msra.mxu0 0
    %1659 = vmatprep.mubr.bf16.mxu0 0
    %1660 = vmatmul.mubr.bf16.gmra.mrb[0].mxu0 %v1625
    %v1661 = vpop.f32.mrb[0].mxu0
    %v1662 = vadd.f32 0.0, %v1661
    %v1663 = vpop.f32.mrb[0].mxu0
    %v1664 = vpop.f32.mrb[0].mxu0
    %v1665 = vpop.f32.mrb[0].mxu0
    %v1666 = vadd.f32 0.0, %v1665
    %1667 = vdwg.mxu0
    %v1668 = vld [vmem:[%s414] sm:$0xff]
    %v1669 = vadd.f32 %v1668, %v1662
    %v1670 = vld [vmem:[%s419 + $0x8] sm:$0xff]
    %v1671 = vadd.f32 %v1670, %v1666
    %v1672 = vmul.f32 %v1669, 0.5
    %v1673 = vmul.f32 %v1671, 0.5
    %v1674 = vtanh.pop %v1672
    %v1675 = vtanh.pop %v1673
    %v1676 = vmul.f32 %v1674, 0.5
    %v1677 = vmul.f32 %v1675, 0.5
    %v1678 = vadd.f32 %v1676, 0.5
    %v1679 = vadd.f32 %v1677, 0.5
    %v1680 = vtanh.pop %v1669
    %v1681 = vtanh.pop %v1671
    %v1682 = vmul.f32 %v1678, %v1596
    %v1683 = vmul.f32 %v1679, %v1597
    %1686 = vrot.lane.b32.xlu0 %v1680, 32
    %v1687 = vpop.permute.xlu0 %1686
    %1688 = vrot.lane.b32.xlu0 %v1681, 32
    %v1689 = vpop.permute.xlu0 %1688
    %v1692 = vmul.f32 %v1678, %v1687
    %v1693 = vmul.f32 %v1679, %v1689
    %1696 = vrot.lane.b32.xlu0 %v1692, 32
    %v1697 = vpop.permute.xlu0 %1696
    %1698 = vrot.lane.b32.xlu0 %v1693, 32
    %v1699 = vpop.permute.xlu0 %1698
    %v1702 = vadd.f32 %v1682, %v1697
    %v1703 = vadd.f32 %v1683, %v1699
    %v1704 = vtanh.pop %v1702
    %v1705 = vtanh.pop %v1703
    %1708 = vrot.lane.b32.xlu0 %v1704, 32
    %v1709 = vpop.permute.xlu0 %1708
    %1710 = vrot.lane.b32.xlu0 %v1705, 32
    %v1711 = vpop.permute.xlu0 %1710
    %v1714 = vmul.f32 %v1678, %v1709
    %v1715 = vmul.f32 %v1679, %v1711
    %1717 = vrot.lane.b32.xlu0 %v1714, 64
    %v1718 = vpop.permute.xlu0 %1717
    %1721 = vrot.lane.b32.xlu0 %v1715, 96
    %v1722 = vpop.permute.xlu0 %1721
    %v1724 = vsel %vm254, %v1718, %v1722
    %1725 = vst.msk [vmem:[%s475] sm:$0xff] %vm362, %v1724
    %v1726 = vpack.c.bf16 %v1715, %v1714
    %1728 = vrot.lane.b32.xlu0 %v1726, 64
    %v1729 = vpop.permute.xlu0 %1728
    %v1731 = vsel %vm254, %v1729, 0
    %1733 = vmatprep.subr.bf16.mxu0 %v1514
    %1734 = vmatpush1.bf16.msra.mxu0 %v1513
    %1735 = vmatprep.subr.bf16.mxu0 %v1516
    %1736 = vmatpush1.bf16.msra.mxu0 %v1515
    %1737 = vmatprep.subr.bf16.mxu0 0
    %1738 = vmatpush1.bf16.msra.mxu0 0
    %1739 = vmatprep.subr.bf16.mxu0 0
    %1740 = vmatpush1.bf16.msra.mxu0 0
    %1741 = vmatprep.subr.bf16.mxu0 0
    %1742 = vmatpush1.bf16.msra.mxu0 0
    %1743 = vmatprep.subr.bf16.mxu0 0
    %1744 = vmatpush1.bf16.msra.mxu0 0
    %1745 = vmatprep.subr.bf16.mxu0 0
    %1746 = vmatpush1.bf16.msra.mxu0 0
    %1747 = vmatprep.subr.bf16.mxu0 0
    %1748 = vmatpush1.bf16.msra.mxu0 0
    %1749 = vmatprep.subr.bf16.mxu0 0
    %1750 = vmatpush1.bf16.msra.mxu0 0
    %1751 = vmatprep.subr.bf16.mxu0 0
    %1752 = vmatpush1.bf16.msra.mxu0 0
    %1753 = vmatprep.subr.bf16.mxu0 0
    %1754 = vmatpush1.bf16.msra.mxu0 0
    %1755 = vmatprep.subr.bf16.mxu0 0
    %1756 = vmatpush1.bf16.msra.mxu0 0
    %1757 = vmatprep.subr.bf16.mxu0 0
    %1758 = vmatpush1.bf16.msra.mxu0 0
    %1759 = vmatprep.subr.bf16.mxu0 0
    %1760 = vmatpush1.bf16.msra.mxu0 0
    %1761 = vmatprep.subr.bf16.mxu0 0
    %1762 = vmatpush1.bf16.msra.mxu0 0
    %1763 = vmatprep.subr.bf16.mxu0 0
    %1764 = vmatpush1.bf16.msra.mxu0 0
    %1765 = vmatprep.mubr.bf16.mxu0 0
    %1766 = vmatmul.mubr.bf16.gmra.mrb[0].mxu0 %v1731
    %v1767 = vpop.f32.mrb[0].mxu0
    %v1768 = vadd.f32 0.0, %v1767
    %v1769 = vpop.f32.mrb[0].mxu0
    %v1770 = vpop.f32.mrb[0].mxu0
    %v1771 = vpop.f32.mrb[0].mxu0
    %v1772 = vadd.f32 0.0, %v1771
    %1773 = vdwg.mxu0
    %v1774 = vld [vmem:[%s527] sm:$0xff]
    %v1775 = vadd.f32 %v1774, %v1768
    %v1776 = vld [vmem:[%s532 + $0x8] sm:$0xff]
    %v1777 = vadd.f32 %v1776, %v1772
    %v1778 = vmul.f32 %v1775, 0.5
    %v1779 = vmul.f32 %v1777, 0.5
    %v1780 = vtanh.pop %v1778
    %v1781 = vtanh.pop %v1779
    %v1782 = vmul.f32 %v1780, 0.5
    %v1783 = vmul.f32 %v1781, 0.5
    %v1784 = vadd.f32 %v1782, 0.5
    %v1785 = vadd.f32 %v1783, 0.5
    %v1786 = vtanh.pop %v1775
    %v1787 = vtanh.pop %v1777
    %v1788 = vmul.f32 %v1784, %v1702
    %v1789 = vmul.f32 %v1785, %v1703
    %1792 = vrot.lane.b32.xlu0 %v1786, 32
    %v1793 = vpop.permute.xlu0 %1792
    %1794 = vrot.lane.b32.xlu0 %v1787, 32
    %v1795 = vpop.permute.xlu0 %1794
    %v1798 = vmul.f32 %v1784, %v1793
    %v1799 = vmul.f32 %v1785, %v1795
    %1802 = vrot.lane.b32.xlu0 %v1798, 32
    %v1803 = vpop.permute.xlu0 %1802
    %1804 = vrot.lane.b32.xlu0 %v1799, 32
    %v1805 = vpop.permute.xlu0 %1804
    %v1808 = vadd.f32 %v1788, %v1803
    %v1809 = vadd.f32 %v1789, %v1805
    %v1810 = vtanh.pop %v1808
    %v1811 = vtanh.pop %v1809
    %1814 = vrot.lane.b32.xlu0 %v1810, 32
    %v1815 = vpop.permute.xlu0 %1814
    %1816 = vrot.lane.b32.xlu0 %v1811, 32
    %v1817 = vpop.permute.xlu0 %1816
    %v1820 = vmul.f32 %v1784, %v1815
    %v1821 = vmul.f32 %v1785, %v1817
    %1823 = vrot.lane.b32.xlu0 %v1820, 64
    %v1824 = vpop.permute.xlu0 %1823
    %1827 = vrot.lane.b32.xlu0 %v1821, 96
    %v1828 = vpop.permute.xlu0 %1827
    %v1830 = vsel %vm254, %v1824, %v1828
    %1831 = vst.msk [vmem:[%s588] sm:$0xff] %vm362, %v1830
    %v1832 = vpack.c.bf16 %v1821, %v1820
    %1834 = vrot.lane.b32.xlu0 %v1832, 64
    %v1835 = vpop.permute.xlu0 %1834
    %v1837 = vsel %vm254, %v1835, 0
    %1839 = vmatprep.subr.bf16.mxu0 %v1514
    %1840 = vmatpush1.bf16.msra.mxu0 %v1513
    %1841 = vmatprep.subr.bf16.mxu0 %v1516
    %1842 = vmatpush1.bf16.msra.mxu0 %v1515
    %1843 = vmatprep.subr.bf16.mxu0 0
    %1844 = vmatpush1.bf16.msra.mxu0 0
    %1845 = vmatprep.subr.bf16.mxu0 0
    %1846 = vmatpush1.bf16.msra.mxu0 0
    %1847 = vmatprep.subr.bf16.mxu0 0
    %1848 = vmatpush1.bf16.msra.mxu0 0
    %1849 = vmatprep.subr.bf16.mxu0 0
    %1850 = vmatpush1.bf16.msra.mxu0 0
    %1851 = vmatprep.subr.bf16.mxu0 0
    %1852 = vmatpush1.bf16.msra.mxu0 0
    %1853 = vmatprep.subr.bf16.mxu0 0
    %1854 = vmatpush1.bf16.msra.mxu0 0
    %1855 = vmatprep.subr.bf16.mxu0 0
    %1856 = vmatpush1.bf16.msra.mxu0 0
    %1857 = vmatprep.subr.bf16.mxu0 0
    %1858 = vmatpush1.bf16.msra.mxu0 0
    %1859 = vmatprep.subr.bf16.mxu0 0
    %1860 = vmatpush1.bf16.msra.mxu0 0
    %1861 = vmatprep.subr.bf16.mxu0 0
    %1862 = vmatpush1.bf16.msra.mxu0 0
    %1863 = vmatprep.subr.bf16.mxu0 0
    %1864 = vmatpush1.bf16.msra.mxu0 0
    %1865 = vmatprep.subr.bf16.mxu0 0
    %1866 = vmatpush1.bf16.msra.mxu0 0
    %1867 = vmatprep.subr.bf16.mxu0 0
    %1868 = vmatpush1.bf16.msra.mxu0 0
    %1869 = vmatprep.subr.bf16.mxu0 0
    %1870 = vmatpush1.bf16.msra.mxu0 0
    %1871 = vmatprep.mubr.bf16.mxu0 0
    %1872 = vmatmul.mubr.bf16.gmra.mrb[0].mxu0 %v1837
    %v1873 = vpop.f32.mrb[0].mxu0
    %v1874 = vadd.f32 0.0, %v1873
    %v1875 = vpop.f32.mrb[0].mxu0
    %v1876 = vpop.f32.mrb[0].mxu0
    %v1877 = vpop.f32.mrb[0].mxu0
    %v1878 = vadd.f32 0.0, %v1877
    %1879 = vdwg.mxu0
    %v1880 = vld [vmem:[%s640] sm:$0xff]
    %v1881 = vadd.f32 %v1880, %v1874
    %v1882 = vld [vmem:[%s645 + $0x8] sm:$0xff]
    %v1883 = vadd.f32 %v1882, %v1878
    %v1884 = vmul.f32 %v1881, 0.5
    %v1885 = vmul.f32 %v1883, 0.5
    %v1886 = vtanh.pop %v1884
    %v1887 = vtanh.pop %v1885
    %v1888 = vmul.f32 %v1886, 0.5
    %v1889 = vmul.f32 %v1887, 0.5
    %v1890 = vadd.f32 %v1888, 0.5
    %v1891 = vadd.f32 %v1889, 0.5
    %v1892 = vtanh.pop %v1881
    %v1893 = vtanh.pop %v1883
    %v1894 = vmul.f32 %v1890, %v1808
    %v1895 = vmul.f32 %v1891, %v1809
    %1898 = vrot.lane.b32.xlu0 %v1892, 32
    %v1899 = vpop.permute.xlu0 %1898
    %1900 = vrot.lane.b32.xlu0 %v1893, 32
    %v1901 = vpop.permute.xlu0 %1900
    %v1904 = vmul.f32 %v1890, %v1899
    %v1905 = vmul.f32 %v1891, %v1901
    %1908 = vrot.lane.b32.xlu0 %v1904, 32
    %v1909 = vpop.permute.xlu0 %1908
    %1910 = vrot.lane.b32.xlu0 %v1905, 32
    %v1911 = vpop.permute.xlu0 %1910
    %v1914 = vadd.f32 %v1894, %v1909
    %v1915 = vadd.f32 %v1895, %v1911
    %v1916 = vtanh.pop %v1914
    %v1917 = vtanh.pop %v1915
    %1920 = vrot.lane.b32.xlu0 %v1916, 32
    %v1921 = vpop.permute.xlu0 %1920
    %1922 = vrot.lane.b32.xlu0 %v1917, 32
    %v1923 = vpop.permute.xlu0 %1922
    %v1926 = vmul.f32 %v1890, %v1921
    %v1927 = vmul.f32 %v1891, %v1923
    %1929 = vrot.lane.b32.xlu0 %v1926, 64
    %v1930 = vpop.permute.xlu0 %1929
    %1933 = vrot.lane.b32.xlu0 %v1927, 96
    %v1934 = vpop.permute.xlu0 %1933
    %v1936 = vsel %vm254, %v1930, %v1934
    %1937 = vst.msk [vmem:[%s701] sm:$0xff] %vm362, %v1936
    %v1938 = vpack.c.bf16 %v1927, %v1926
    %1940 = vrot.lane.b32.xlu0 %v1938, 64
    %v1941 = vpop.permute.xlu0 %1940
    %v1943 = vsel %vm254, %v1941, 0
    %1945 = vmatprep.subr.bf16.mxu0 %v1514
    %1946 = vmatpush1.bf16.msra.mxu0 %v1513
    %1947 = vmatprep.subr.bf16.mxu0 %v1516
    %1948 = vmatpush1.bf16.msra.mxu0 %v1515
    %1949 = vmatprep.subr.bf16.mxu0 0
    %1950 = vmatpush1.bf16.msra.mxu0 0
    %1951 = vmatprep.subr.bf16.mxu0 0
    %1952 = vmatpush1.bf16.msra.mxu0 0
    %1953 = vmatprep.subr.bf16.mxu0 0
    %1954 = vmatpush1.bf16.msra.mxu0 0
    %1955 = vmatprep.subr.bf16.mxu0 0
    %1956 = vmatpush1.bf16.msra.mxu0 0
    %1957 = vmatprep.subr.bf16.mxu0 0
    %1958 = vmatpush1.bf16.msra.mxu0 0
    %1959 = vmatprep.subr.bf16.mxu0 0
    %1960 = vmatpush1.bf16.msra.mxu0 0
    %1961 = vmatprep.subr.bf16.mxu0 0
    %1962 = vmatpush1.bf16.msra.mxu0 0
    %1963 = vmatprep.subr.bf16.mxu0 0
    %1964 = vmatpush1.bf16.msra.mxu0 0
    %1965 = vmatprep.subr.bf16.mxu0 0
    %1966 = vmatpush1.bf16.msra.mxu0 0
    %1967 = vmatprep.subr.bf16.mxu0 0
    %1968 = vmatpush1.bf16.msra.mxu0 0
    %1969 = vmatprep.subr.bf16.mxu0 0
    %1970 = vmatpush1.bf16.msra.mxu0 0
    %1971 = vmatprep.subr.bf16.mxu0 0
    %1972 = vmatpush1.bf16.msra.mxu0 0
    %1973 = vmatprep.subr.bf16.mxu0 0
    %1974 = vmatpush1.bf16.msra.mxu0 0
    %1975 = vmatprep.subr.bf16.mxu0 0
    %1976 = vmatpush1.bf16.msra.mxu0 0
    %1977 = vmatprep.mubr.bf16.mxu0 0
    %1978 = vmatmul.mubr.bf16.gmra.mrb[0].mxu0 %v1943
    %v1979 = vpop.f32.mrb[0].mxu0
    %v1980 = vadd.f32 0.0, %v1979
    %v1981 = vpop.f32.mrb[0].mxu0
    %v1982 = vpop.f32.mrb[0].mxu0
    %v1983 = vpop.f32.mrb[0].mxu0
    %v1984 = vadd.f32 0.0, %v1983
    %1985 = vdwg.mxu0
    %v1986 = vld [vmem:[%s645] sm:$0xff]
    %v1987 = vadd.f32 %v1986, %v1980
    %v1988 = vld [vmem:[%s640 + $0x8] sm:$0xff]
    %v1989 = vadd.f32 %v1988, %v1984
    %v1990 = vmul.f32 %v1987, 0.5
    %v1991 = vmul.f32 %v1989, 0.5
    %v1992 = vtanh.pop %v1990
    %v1993 = vtanh.pop %v1991
    %v1994 = vmul.f32 %v1992, 0.5
    %v1995 = vmul.f32 %v1993, 0.5
    %v1996 = vadd.f32 %v1994, 0.5
    %v1997 = vadd.f32 %v1995, 0.5
    %v1998 = vtanh.pop %v1987
    %v1999 = vtanh.pop %v1989
    %v2000 = vmul.f32 %v1996, %v1914
    %v2001 = vmul.f32 %v1997, %v1915
    %2004 = vrot.lane.b32.xlu0 %v1998, 32
    %v2005 = vpop.permute.xlu0 %2004
    %2006 = vrot.lane.b32.xlu0 %v1999, 32
    %v2007 = vpop.permute.xlu0 %2006
    %v2010 = vmul.f32 %v1996, %v2005
    %v2011 = vmul.f32 %v1997, %v2007
    %2014 = vrot.lane.b32.xlu0 %v2010, 32
    %v2015 = vpop.permute.xlu0 %2014
    %2016 = vrot.lane.b32.xlu0 %v2011, 32
    %v2017 = vpop.permute.xlu0 %2016
    %v2020 = vadd.f32 %v2000, %v2015
    %v2021 = vadd.f32 %v2001, %v2017
    %v2022 = vtanh.pop %v2020
    %v2023 = vtanh.pop %v2021
    %2026 = vrot.lane.b32.xlu0 %v2022, 32
    %v2027 = vpop.permute.xlu0 %2026
    %2028 = vrot.lane.b32.xlu0 %v2023, 32
    %v2029 = vpop.permute.xlu0 %2028
    %v2032 = vmul.f32 %v1996, %v2027
    %v2033 = vmul.f32 %v1997, %v2029
    %2035 = vrot.lane.b32.xlu0 %v2032, 64
    %v2036 = vpop.permute.xlu0 %2035
    %2039 = vrot.lane.b32.xlu0 %v2033, 96
    %v2040 = vpop.permute.xlu0 %2039
    %v2042 = vsel %vm254, %v2036, %v2040
    %2043 = vst.msk [vmem:[%s808] sm:$0xff] %vm362, %v2042
    %v2044 = vpack.c.bf16 %v2033, %v2032
    %2046 = vrot.lane.b32.xlu0 %v2044, 64
    %v2047 = vpop.permute.xlu0 %2046
    %v2049 = vsel %vm254, %v2047, 0
    %2051 = vmatprep.subr.bf16.mxu0 %v1514
    %2052 = vmatpush1.bf16.msra.mxu0 %v1513
    %2053 = vmatprep.subr.bf16.mxu0 %v1516
    %2054 = vmatpush1.bf16.msra.mxu0 %v1515
    %2055 = vmatprep.subr.bf16.mxu0 0
    %2056 = vmatpush1.bf16.msra.mxu0 0
    %2057 = vmatprep.subr.bf16.mxu0 0
    %2058 = vmatpush1.bf16.msra.mxu0 0
    %2059 = vmatprep.subr.bf16.mxu0 0
    %2060 = vmatpush1.bf16.msra.mxu0 0
    %2061 = vmatprep.subr.bf16.mxu0 0
    %2062 = vmatpush1.bf16.msra.mxu0 0
    %2063 = vmatprep.subr.bf16.mxu0 0
    %2064 = vmatpush1.bf16.msra.mxu0 0
    %2065 = vmatprep.subr.bf16.mxu0 0
    %2066 = vmatpush1.bf16.msra.mxu0 0
    %2067 = vmatprep.subr.bf16.mxu0 0
    %2068 = vmatpush1.bf16.msra.mxu0 0
    %2069 = vmatprep.subr.bf16.mxu0 0
    %2070 = vmatpush1.bf16.msra.mxu0 0
    %2071 = vmatprep.subr.bf16.mxu0 0
    %2072 = vmatpush1.bf16.msra.mxu0 0
    %2073 = vmatprep.subr.bf16.mxu0 0
    %2074 = vmatpush1.bf16.msra.mxu0 0
    %2075 = vmatprep.subr.bf16.mxu0 0
    %2076 = vmatpush1.bf16.msra.mxu0 0
    %2077 = vmatprep.subr.bf16.mxu0 0
    %2078 = vmatpush1.bf16.msra.mxu0 0
    %2079 = vmatprep.subr.bf16.mxu0 0
    %2080 = vmatpush1.bf16.msra.mxu0 0
    %2081 = vmatprep.subr.bf16.mxu0 0
    %2082 = vmatpush1.bf16.msra.mxu0 0
    %2083 = vmatprep.mubr.bf16.mxu0 0
    %2084 = vmatmul.mubr.bf16.gmra.mrb[0].mxu0 %v2049
    %v2085 = vpop.f32.mrb[0].mxu0
    %v2086 = vadd.f32 0.0, %v2085
    %v2087 = vpop.f32.mrb[0].mxu0
    %v2088 = vpop.f32.mrb[0].mxu0
    %v2089 = vpop.f32.mrb[0].mxu0
    %v2090 = vadd.f32 0.0, %v2089
    %2091 = vdwg.mxu0
    %v2092 = vld [vmem:[%s532] sm:$0xff]
    %v2093 = vadd.f32 %v2092, %v2086
    %v2094 = vld [vmem:[%s527 + $0x8] sm:$0xff]
    %v2095 = vadd.f32 %v2094, %v2090
    %v2096 = vmul.f32 %v2093, 0.5
    %v2097 = vmul.f32 %v2095, 0.5
    %v2098 = vtanh.pop %v2096
    %v2099 = vtanh.pop %v2097
    %v2100 = vmul.f32 %v2098, 0.5
    %v2101 = vmul.f32 %v2099, 0.5
    %v2102 = vadd.f32 %v2100, 0.5
    %v2103 = vadd.f32 %v2101, 0.5
    %v2104 = vtanh.pop %v2093
    %v2105 = vtanh.pop %v2095
    %v2106 = vmul.f32 %v2102, %v2020
    %v2107 = vmul.f32 %v2103, %v2021
    %2110 = vrot.lane.b32.xlu0 %v2104, 32
    %v2111 = vpop.permute.xlu0 %2110
    %2112 = vrot.lane.b32.xlu0 %v2105, 32
    %v2113 = vpop.permute.xlu0 %2112
    %v2116 = vmul.f32 %v2102, %v2111
    %v2117 = vmul.f32 %v2103, %v2113
    %2120 = vrot.lane.b32.xlu0 %v2116, 32
    %v2121 = vpop.permute.xlu0 %2120
    %2122 = vrot.lane.b32.xlu0 %v2117, 32
    %v2123 = vpop.permute.xlu0 %2122
    %v2126 = vadd.f32 %v2106, %v2121
    %v2127 = vadd.f32 %v2107, %v2123
    %v2128 = vtanh.pop %v2126
    %v2129 = vtanh.pop %v2127
    %2132 = vrot.lane.b32.xlu0 %v2128, 32
    %v2133 = vpop.permute.xlu0 %2132
    %2134 = vrot.lane.b32.xlu0 %v2129, 32
    %v2135 = vpop.permute.xlu0 %2134
    %v2138 = vmul.f32 %v2102, %v2133
    %v2139 = vmul.f32 %v2103, %v2135
    %2141 = vrot.lane.b32.xlu0 %v2138, 64
    %v2142 = vpop.permute.xlu0 %2141
    %2145 = vrot.lane.b32.xlu0 %v2139, 96
    %v2146 = vpop.permute.xlu0 %2145
    %v2148 = vsel %vm254, %v2142, %v2146
    %2149 = vst.msk [vmem:[%s915] sm:$0xff] %vm362, %v2148
    %v2150 = vpack.c.bf16 %v2139, %v2138
    %2152 = vrot.lane.b32.xlu0 %v2150, 64
    %v2153 = vpop.permute.xlu0 %2152
    %v2155 = vsel %vm254, %v2153, 0
    %2157 = vmatprep.subr.bf16.mxu0 %v1514
    %2158 = vmatpush1.bf16.msra.mxu0 %v1513
    %2159 = vmatprep.subr.bf16.mxu0 %v1516
    %2160 = vmatpush1.bf16.msra.mxu0 %v1515
    %2161 = vmatprep.subr.bf16.mxu0 0
    %2162 = vmatpush1.bf16.msra.mxu0 0
    %2163 = vmatprep.subr.bf16.mxu0 0
    %2164 = vmatpush1.bf16.msra.mxu0 0
    %2165 = vmatprep.subr.bf16.mxu0 0
    %2166 = vmatpush1.bf16.msra.mxu0 0
    %2167 = vmatprep.subr.bf16.mxu0 0
    %2168 = vmatpush1.bf16.msra.mxu0 0
    %2169 = vmatprep.subr.bf16.mxu0 0
    %2170 = vmatpush1.bf16.msra.mxu0 0
    %2171 = vmatprep.subr.bf16.mxu0 0
    %2172 = vmatpush1.bf16.msra.mxu0 0
    %2173 = vmatprep.subr.bf16.mxu0 0
    %2174 = vmatpush1.bf16.msra.mxu0 0
    %2175 = vmatprep.subr.bf16.mxu0 0
    %2176 = vmatpush1.bf16.msra.mxu0 0
    %2177 = vmatprep.subr.bf16.mxu0 0
    %2178 = vmatpush1.bf16.msra.mxu0 0
    %2179 = vmatprep.subr.bf16.mxu0 0
    %2180 = vmatpush1.bf16.msra.mxu0 0
    %2181 = vmatprep.subr.bf16.mxu0 0
    %2182 = vmatpush1.bf16.msra.mxu0 0
    %2183 = vmatprep.subr.bf16.mxu0 0
    %2184 = vmatpush1.bf16.msra.mxu0 0
    %2185 = vmatprep.subr.bf16.mxu0 0
    %2186 = vmatpush1.bf16.msra.mxu0 0
    %2187 = vmatprep.subr.bf16.mxu0 0
    %2188 = vmatpush1.bf16.msra.mxu0 0
    %2189 = vmatprep.mubr.bf16.mxu0 0
    %2190 = vmatmul.mubr.bf16.gmra.mrb[0].mxu0 %v2155
    %v2191 = vpop.f32.mrb[0].mxu0
    %v2192 = vadd.f32 0.0, %v2191
    %v2193 = vpop.f32.mrb[0].mxu0
    %v2194 = vpop.f32.mrb[0].mxu0
    %v2195 = vpop.f32.mrb[0].mxu0
    %v2196 = vadd.f32 0.0, %v2195
    %2197 = vdwg.mxu0
    %v2198 = vld [vmem:[%s419] sm:$0xff]
    %v2199 = vadd.f32 %v2198, %v2192
    %v2200 = vld [vmem:[%s414 + $0x8] sm:$0xff]
    %v2201 = vadd.f32 %v2200, %v2196
    %v2202 = vmul.f32 %v2199, 0.5
    %v2203 = vmul.f32 %v2201, 0.5
    %v2204 = vtanh.pop %v2202
    %v2205 = vtanh.pop %v2203
    %v2206 = vmul.f32 %v2204, 0.5
    %v2207 = vmul.f32 %v2205, 0.5
    %v2208 = vadd.f32 %v2206, 0.5
    %v2209 = vadd.f32 %v2207, 0.5
    %v2210 = vtanh.pop %v2199
    %v2211 = vtanh.pop %v2201
    %v2212 = vmul.f32 %v2208, %v2126
    %v2213 = vmul.f32 %v2209, %v2127
    %2216 = vrot.lane.b32.xlu0 %v2210, 32
    %v2217 = vpop.permute.xlu0 %2216
    %2218 = vrot.lane.b32.xlu0 %v2211, 32
    %v2219 = vpop.permute.xlu0 %2218
    %v2222 = vmul.f32 %v2208, %v2217
    %v2223 = vmul.f32 %v2209, %v2219
    %2226 = vrot.lane.b32.xlu0 %v2222, 32
    %v2227 = vpop.permute.xlu0 %2226
    %2228 = vrot.lane.b32.xlu0 %v2223, 32
    %v2229 = vpop.permute.xlu0 %2228
    %v2232 = vadd.f32 %v2212, %v2227
    %v2233 = vadd.f32 %v2213, %v2229
    %v2234 = vtanh.pop %v2232
    %v2235 = vtanh.pop %v2233
    %2238 = vrot.lane.b32.xlu0 %v2234, 32
    %v2239 = vpop.permute.xlu0 %2238
    %2240 = vrot.lane.b32.xlu0 %v2235, 32
    %v2241 = vpop.permute.xlu0 %2240
    %v2244 = vmul.f32 %v2208, %v2239
    %v2245 = vmul.f32 %v2209, %v2241
    %2247 = vrot.lane.b32.xlu0 %v2244, 64
    %v2248 = vpop.permute.xlu0 %2247
    %2251 = vrot.lane.b32.xlu0 %v2245, 96
    %v2252 = vpop.permute.xlu0 %2251
    %v2254 = vsel %vm254, %v2248, %v2252
    %2255 = vst.msk [vmem:[%s1022] sm:$0xff] %vm362, %v2254
    %v2256 = vpack.c.bf16 %v2245, %v2244
    %2258 = vrot.lane.b32.xlu0 %v2256, 64
    %v2259 = vpop.permute.xlu0 %2258
    %v2261 = vsel %vm254, %v2259, 0
    %2263 = vmatprep.subr.bf16.mxu0 %v1514
    %2264 = vmatpush1.bf16.msra.mxu0 %v1513
    %2265 = vmatprep.subr.bf16.mxu0 %v1516
    %2266 = vmatpush1.bf16.msra.mxu0 %v1515
    %2267 = vmatprep.subr.bf16.mxu0 0
    %2268 = vmatpush1.bf16.msra.mxu0 0
    %2269 = vmatprep.subr.bf16.mxu0 0
    %2270 = vmatpush1.bf16.msra.mxu0 0
    %2271 = vmatprep.subr.bf16.mxu0 0
    %2272 = vmatpush1.bf16.msra.mxu0 0
    %2273 = vmatprep.subr.bf16.mxu0 0
    %2274 = vmatpush1.bf16.msra.mxu0 0
    %2275 = vmatprep.subr.bf16.mxu0 0
    %2276 = vmatpush1.bf16.msra.mxu0 0
    %2277 = vmatprep.subr.bf16.mxu0 0
    %2278 = vmatpush1.bf16.msra.mxu0 0
    %2279 = vmatprep.subr.bf16.mxu0 0
    %2280 = vmatpush1.bf16.msra.mxu0 0
    %2281 = vmatprep.subr.bf16.mxu0 0
    %2282 = vmatpush1.bf16.msra.mxu0 0
    %2283 = vmatprep.subr.bf16.mxu0 0
    %2284 = vmatpush1.bf16.msra.mxu0 0
    %2285 = vmatprep.subr.bf16.mxu0 0
    %2286 = vmatpush1.bf16.msra.mxu0 0
    %2287 = vmatprep.subr.bf16.mxu0 0
    %2288 = vmatpush1.bf16.msra.mxu0 0
    %2289 = vmatprep.subr.bf16.mxu0 0
    %2290 = vmatpush1.bf16.msra.mxu0 0
    %2291 = vmatprep.subr.bf16.mxu0 0
    %2292 = vmatpush1.bf16.msra.mxu0 0
    %2293 = vmatprep.subr.bf16.mxu0 0
    %2294 = vmatpush1.bf16.msra.mxu0 0
    %2295 = vmatprep.mubr.bf16.mxu0 0
    %2296 = vmatmul.mubr.bf16.gmra.mrb[0].mxu0 %v2261
    %v2297 = vpop.f32.mrb[0].mxu0
    %v2298 = vadd.f32 0.0, %v2297
    %v2299 = vpop.f32.mrb[0].mxu0
    %v2300 = vpop.f32.mrb[0].mxu0
    %v2301 = vpop.f32.mrb[0].mxu0
    %v2302 = vadd.f32 0.0, %v2301
    %2303 = vdwg.mxu0
    %v2304 = vld [vmem:[%s306] sm:$0xff]
    %v2305 = vadd.f32 %v2304, %v2298
    %v2306 = vld [vmem:[%s301 + $0x8] sm:$0xff]
    %v2307 = vadd.f32 %v2306, %v2302
    %v2308 = vmul.f32 %v2305, 0.5
    %v2309 = vmul.f32 %v2307, 0.5
    %v2310 = vtanh.pop %v2308
    %v2311 = vtanh.pop %v2309
    %v2312 = vmul.f32 %v2310, 0.5
    %v2313 = vmul.f32 %v2311, 0.5
    %v2314 = vadd.f32 %v2312, 0.5
    %v2315 = vadd.f32 %v2313, 0.5
    %v2316 = vtanh.pop %v2305
    %v2317 = vtanh.pop %v2307
    %v2318 = vmul.f32 %v2314, %v2232
    %v2319 = vmul.f32 %v2315, %v2233
    %2322 = vrot.lane.b32.xlu0 %v2316, 32
    %v2323 = vpop.permute.xlu0 %2322
    %2324 = vrot.lane.b32.xlu0 %v2317, 32
    %v2325 = vpop.permute.xlu0 %2324
    %v2328 = vmul.f32 %v2314, %v2323
    %v2329 = vmul.f32 %v2315, %v2325
    %2332 = vrot.lane.b32.xlu0 %v2328, 32
    %v2333 = vpop.permute.xlu0 %2332
    %2334 = vrot.lane.b32.xlu0 %v2329, 32
    %v2335 = vpop.permute.xlu0 %2334
    %v2338 = vadd.f32 %v2318, %v2333
    %v2339 = vadd.f32 %v2319, %v2335
    %v2340 = vtanh.pop %v2338
    %v2341 = vtanh.pop %v2339
    %2344 = vrot.lane.b32.xlu0 %v2340, 32
    %v2345 = vpop.permute.xlu0 %2344
    %2346 = vrot.lane.b32.xlu0 %v2341, 32
    %v2347 = vpop.permute.xlu0 %2346
    %v2350 = vmul.f32 %v2314, %v2345
    %v2351 = vmul.f32 %v2315, %v2347
    %2353 = vrot.lane.b32.xlu0 %v2350, 64
    %v2354 = vpop.permute.xlu0 %2353
    %2357 = vrot.lane.b32.xlu0 %v2351, 96
    %v2358 = vpop.permute.xlu0 %2357
    %v2360 = vsel %vm254, %v2354, %v2358
    %2361 = vst.msk [vmem:[%s1129] sm:$0xff] %vm362, %v2360
    %v2362 = vld [vmem:[#allocation4] sm:$0xff]
    %v2363 = vld [vmem:[#allocation4 + $0x8] sm:$0xff]
    %v2364 = vld [vmem:[#allocation4 + $0x10] sm:$0xff]
    %v2365 = vld [vmem:[#allocation4 + $0x18] sm:$0xff]
    %v2366 = vld [vmem:[#allocation4 + $0x20] sm:$0xff]
    %v2367 = vld [vmem:[#allocation4 + $0x28] sm:$0xff]
    %v2368 = vld [vmem:[#allocation4 + $0x30] sm:$0xff]
    %v2369 = vld [vmem:[#allocation4 + $0x38] sm:$0xff]
    %v2370 = vld [vmem:[#allocation8] sm:$0xff]
    %v2371 = vld [vmem:[#allocation8 + $0x8] sm:$0xff]
    %v2372 = vld [vmem:[#allocation8 + $0x10] sm:$0xff]
    %v2373 = vld [vmem:[#allocation8 + $0x18] sm:$0xff]
    %v2375 = vsel %vm254, %v2362, 0
    %v2378 = vsel %vm254, %v2363, 0
    %v2381 = vsel %vm254, %v2364, 0
    %v2384 = vsel %vm254, %v2365, 0
    %v2387 = vsel %vm254, %v2366, 0
    %v2390 = vsel %vm254, %v2367, 0
    %v2393 = vsel %vm254, %v2368, 0
    %v2396 = vsel %vm254, %v2369, 0
    %2398 = vmatprep.subr.mxu0 0.0
    %2399 = vmatpush1.msra.mxu0 %v2370
    %2400 = vmatprep.subr.mxu0 0.0
    %2401 = vmatpush1.msra.mxu0 %v2371
    %2402 = vmatprep.subr.mxu0 0.0
    %2403 = vmatpush1.msra.mxu0 %v2372
    %2404 = vmatprep.subr.mxu0 0.0
    %2405 = vmatpush1.msra.mxu0 %v2373
    %2406 = vmatprep.subr.mxu0 0.0
    %2407 = vmatpush1.msra.mxu0 0.0
    %2408 = vmatprep.subr.mxu0 0.0
    %2409 = vmatpush1.msra.mxu0 0.0
    %2410 = vmatprep.subr.mxu0 0.0
    %2411 = vmatpush1.msra.mxu0 0.0
    %2412 = vmatprep.subr.mxu0 0.0
    %2413 = vmatpush1.msra.mxu0 0.0
    %2414 = vmatprep.subr.mxu0 0.0
    %2415 = vmatpush1.msra.mxu0 0.0
    %2416 = vmatprep.subr.mxu0 0.0
    %2417 = vmatpush1.msra.mxu0 0.0
    %2418 = vmatprep.subr.mxu0 0.0
    %2419 = vmatpush1.msra.mxu0 0.0
    %2420 = vmatprep.subr.mxu0 0.0
    %2421 = vmatpush1.msra.mxu0 0.0
    %2422 = vmatprep.subr.mxu0 0.0
    %2423 = vmatpush1.msra.mxu0 0.0
    %2424 = vmatprep.subr.mxu0 0.0
    %2425 = vmatpush1.msra.mxu0 0.0
    %2426 = vmatprep.subr.mxu0 0.0
    %2427 = vmatpush1.msra.mxu0 0.0
    %2428 = vmatprep.subr.mxu0 0.0
    %2429 = vmatpush1.msra.mxu0 0.0
    %2430 = vmatprep.subr.mxu0 0.0
    %2431 = vmatpush1.msra.mxu0 0.0
    %2432 = vmatprep.subr.mxu0 0.0
    %2433 = vmatpush1.msra.mxu0 0.0
    %2434 = vmatprep.subr.mxu0 0.0
    %2435 = vmatpush1.msra.mxu0 0.0
    %2436 = vmatprep.subr.mxu0 0.0
    %2437 = vmatpush1.msra.mxu0 0.0
    %2438 = vmatprep.subr.mxu0 0.0
    %2439 = vmatpush1.msra.mxu0 0.0
    %2440 = vmatprep.subr.mxu0 0.0
    %2441 = vmatpush1.msra.mxu0 0.0
    %2442 = vmatprep.subr.mxu0 0.0
    %2443 = vmatpush1.msra.mxu0 0.0
    %2444 = vmatprep.subr.mxu0 0.0
    %2445 = vmatpush1.msra.mxu0 0.0
    %2446 = vmatprep.subr.mxu0 0.0
    %2447 = vmatpush1.msra.mxu0 0.0
    %2448 = vmatprep.subr.mxu0 0.0
    %2449 = vmatpush1.msra.mxu0 0.0
    %2450 = vmatprep.subr.mxu0 0.0
    %2451 = vmatpush1.msra.mxu0 0.0
    %2452 = vmatprep.subr.mxu0 0.0
    %2453 = vmatpush1.msra.mxu0 0.0
    %2454 = vmatprep.subr.mxu0 0.0
    %2455 = vmatpush1.msra.mxu0 0.0
    %2456 = vmatprep.subr.mxu0 0.0
    %2457 = vmatpush1.msra.mxu0 0.0
    %2458 = vmatprep.subr.mxu0 0.0
    %2459 = vmatpush1.msra.mxu0 0.0
    %2460 = vmatprep.subr.mxu0 0.0
    %2461 = vmatpush1.msra.mxu0 0.0
    %2462 = vmatprep.mubr.f32.mxu0 0.0
    %2463 = vmatmul.mubr.f32.gmra.mrb[0].mxu0 %v2375
    %v2464 = vpop.f32.mrb[0].mxu0
    %v2465 = vadd.f32 0.0, %v2464
    %v2466 = vpop.f32.mrb[0].mxu0
    %2467 = vmatprep.mubr.f32.mxu0 0.0
    %2468 = vmatmul.mubr.f32.gmra.mrb[0].mxu0 %v2378
    %v2469 = vpop.f32.mrb[0].mxu0
    %v2470 = vadd.f32 0.0, %v2469
    %v2471 = vpop.f32.mrb[0].mxu0
    %2472 = vmatprep.mubr.f32.mxu0 0.0
    %2473 = vmatmul.mubr.f32.gmra.mrb[0].mxu0 %v2381
    %v2474 = vpop.f32.mrb[0].mxu0
    %v2475 = vadd.f32 0.0, %v2474
    %v2476 = vpop.f32.mrb[0].mxu0
    %2477 = vmatprep.mubr.f32.mxu0 0.0
    %2478 = vmatmul.mubr.f32.gmra.mrb[0].mxu0 %v2384
    %v2479 = vpop.f32.mrb[0].mxu0
    %v2480 = vadd.f32 0.0, %v2479
    %v2481 = vpop.f32.mrb[0].mxu0
    %2482 = vmatprep.mubr.f32.mxu0 0.0
    %2483 = vmatmul.mubr.f32.gmra.mrb[0].mxu0 %v2387
    %v2484 = vpop.f32.mrb[0].mxu0
    %v2485 = vadd.f32 0.0, %v2484
    %v2486 = vpop.f32.mrb[0].mxu0
    %2487 = vmatprep.mubr.f32.mxu0 0.0
    %2488 = vmatmul.mubr.f32.gmra.mrb[0].mxu0 %v2390
    %v2489 = vpop.f32.mrb[0].mxu0
    %v2490 = vadd.f32 0.0, %v2489
    %v2491 = vpop.f32.mrb[0].mxu0
    %2492 = vmatprep.mubr.f32.mxu0 0.0
    %2493 = vmatmul.mubr.f32.gmra.mrb[0].mxu0 %v2393
    %v2494 = vpop.f32.mrb[0].mxu0
    %v2495 = vadd.f32 0.0, %v2494
    %v2496 = vpop.f32.mrb[0].mxu0
    %2497 = vmatprep.mubr.f32.mxu0 0.0
    %2498 = vmatmul.mubr.f32.gmra.mrb[0].mxu0 %v2396
    %v2499 = vpop.f32.mrb[0].mxu0
    %v2500 = vadd.f32 0.0, %v2499
    %v2501 = vpop.f32.mrb[0].mxu0
    %2502 = vdwg.mxu0
    %2503 = vst [vmem:[%s11] sm:$0xff] %v2465
    %2504 = vst [vmem:[%s11 + $0x8] sm:$0xff] %v2470
    %2505 = vst [vmem:[%s11 + $0x10] sm:$0xff] %v2475
    %2506 = vst [vmem:[%s11 + $0x18] sm:$0xff] %v2480
    %2507 = vst [vmem:[%s11 + $0x20] sm:$0xff] %v2485
    %2508 = vst [vmem:[%s11 + $0x28] sm:$0xff] %v2490
    %2509 = vst [vmem:[%s11 + $0x30] sm:$0xff] %v2495
    %2510 = vst [vmem:[%s11 + $0x38] sm:$0xff] %v2500
    %v2511 = vld [vmem:[#allocation10] sm:$0xff]
    %v2512 = vld [vmem:[#allocation10 + $0x8] sm:$0xff]
    %v2513 = vld [vmem:[#allocation10 + $0x10] sm:$0xff]
    %v2514 = vld [vmem:[#allocation10 + $0x18] sm:$0xff]
    %2515 = vrot.lane.b32.xlu0 %v2362, 96
    %v2516 = vpop.permute.xlu0 %2515
    %2517 = vrot.lane.b32.xlu0 %v2363, 96
    %v2518 = vpop.permute.xlu0 %2517
    %2519 = vrot.lane.b32.xlu0 %v2364, 96
    %v2520 = vpop.permute.xlu0 %2519
    %2521 = vrot.lane.b32.xlu0 %v2365, 96
    %v2522 = vpop.permute.xlu0 %2521
    %2523 = vrot.lane.b32.xlu0 %v2366, 96
    %v2524 = vpop.permute.xlu0 %2523
    %2525 = vrot.lane.b32.xlu0 %v2367, 96
    %v2526 = vpop.permute.xlu0 %2525
    %2527 = vrot.lane.b32.xlu0 %v2368, 96
    %v2528 = vpop.permute.xlu0 %2527
    %2529 = vrot.lane.b32.xlu0 %v2369, 96
    %v2530 = vpop.permute.xlu0 %2529
    %v2531 = vsel %vm254, %v2516, 0
    %v2533 = vsel %vm254, %v2518, 0
    %v2535 = vsel %vm254, %v2520, 0
    %v2537 = vsel %vm254, %v2522, 0
    %v2539 = vsel %vm254, %v2524, 0
    %v2541 = vsel %vm254, %v2526, 0
    %v2543 = vsel %vm254, %v2528, 0
    %v2545 = vsel %vm254, %v2530, 0
    %2547 = vmatprep.subr.mxu0 0.0
    %2548 = vmatpush1.msra.mxu0 %v2511
    %2549 = vmatprep.subr.mxu0 0.0
    %2550 = vmatpush1.msra.mxu0 %v2512
    %2551 = vmatprep.subr.mxu0 0.0
    %2552 = vmatpush1.msra.mxu0 %v2513
    %2553 = vmatprep.subr.mxu0 0.0
    %2554 = vmatpush1.msra.mxu0 %v2514
    %2555 = vmatprep.subr.mxu0 0.0
    %2556 = vmatpush1.msra.mxu0 0.0
    %2557 = vmatprep.subr.mxu0 0.0
    %2558 = vmatpush1.msra.mxu0 0.0
    %2559 = vmatprep.subr.mxu0 0.0
    %2560 = vmatpush1.msra.mxu0 0.0
    %2561 = vmatprep.subr.mxu0 0.0
    %2562 = vmatpush1.msra.mxu0 0.0
    %2563 = vmatprep.subr.mxu0 0.0
    %2564 = vmatpush1.msra.mxu0 0.0
    %2565 = vmatprep.subr.mxu0 0.0
    %2566 = vmatpush1.msra.mxu0 0.0
    %2567 = vmatprep.subr.mxu0 0.0
    %2568 = vmatpush1.msra.mxu0 0.0
    %2569 = vmatprep.subr.mxu0 0.0
    %2570 = vmatpush1.msra.mxu0 0.0
    %2571 = vmatprep.subr.mxu0 0.0
    %2572 = vmatpush1.msra.mxu0 0.0
    %2573 = vmatprep.subr.mxu0 0.0
    %2574 = vmatpush1.msra.mxu0 0.0
    %2575 = vmatprep.subr.mxu0 0.0
    %2576 = vmatpush1.msra.mxu0 0.0
    %2577 = vmatprep.subr.mxu0 0.0
    %2578 = vmatpush1.msra.mxu0 0.0
    %2579 = vmatprep.subr.mxu0 0.0
    %2580 = vmatpush1.msra.mxu0 0.0
    %2581 = vmatprep.subr.mxu0 0.0
    %2582 = vmatpush1.msra.mxu0 0.0
    %2583 = vmatprep.subr.mxu0 0.0
    %2584 = vmatpush1.msra.mxu0 0.0
    %2585 = vmatprep.subr.mxu0 0.0
    %2586 = vmatpush1.msra.mxu0 0.0
    %2587 = vmatprep.subr.mxu0 0.0
    %2588 = vmatpush1.msra.mxu0 0.0
    %2589 = vmatprep.subr.mxu0 0.0
    %2590 = vmatpush1.msra.mxu0 0.0
    %2591 = vmatprep.subr.mxu0 0.0
    %2592 = vmatpush1.msra.mxu0 0.0
    %2593 = vmatprep.subr.mxu0 0.0
    %2594 = vmatpush1.msra.mxu0 0.0
    %2595 = vmatprep.subr.mxu0 0.0
    %2596 = vmatpush1.msra.mxu0 0.0
    %2597 = vmatprep.subr.mxu0 0.0
    %2598 = vmatpush1.msra.mxu0 0.0
    %2599 = vmatprep.subr.mxu0 0.0
    %2600 = vmatpush1.msra.mxu0 0.0
    %2601 = vmatprep.subr.mxu0 0.0
    %2602 = vmatpush1.msra.mxu0 0.0
    %2603 = vmatprep.subr.mxu0 0.0
    %2604 = vmatpush1.msra.mxu0 0.0
    %2605 = vmatprep.subr.mxu0 0.0
    %2606 = vmatpush1.msra.mxu0 0.0
    %2607 = vmatprep.subr.mxu0 0.0
    %2608 = vmatpush1.msra.mxu0 0.0
    %2609 = vmatprep.subr.mxu0 0.0
    %2610 = vmatpush1.msra.mxu0 0.0
    %2611 = vmatprep.mubr.f32.mxu0 0.0
    %2612 = vmatmul.mubr.f32.gmra.mrb[0].mxu0 %v2531
    %v2613 = vpop.f32.mrb[0].mxu0
    %v2614 = vadd.f32 0.0, %v2613
    %v2615 = vpop.f32.mrb[0].mxu0
    %2616 = vmatprep.mubr.f32.mxu0 0.0
    %2617 = vmatmul.mubr.f32.gmra.mrb[0].mxu0 %v2533
    %v2618 = vpop.f32.mrb[0].mxu0
    %v2619 = vadd.f32 0.0, %v2618
    %v2620 = vpop.f32.mrb[0].mxu0
    %2621 = vmatprep.mubr.f32.mxu0 0.0
    %2622 = vmatmul.mubr.f32.gmra.mrb[0].mxu0 %v2535
    %v2623 = vpop.f32.mrb[0].mxu0
    %v2624 = vadd.f32 0.0, %v2623
    %v2625 = vpop.f32.mrb[0].mxu0
    %2626 = vmatprep.mubr.f32.mxu0 0.0
    %2627 = vmatmul.mubr.f32.gmra.mrb[0].mxu0 %v2537
    %v2628 = vpop.f32.mrb[0].mxu0
    %v2629 = vadd.f32 0.0, %v2628
    %v2630 = vpop.f32.mrb[0].mxu0
    %2631 = vmatprep.mubr.f32.mxu0 0.0
    %2632 = vmatmul.mubr.f32.gmra.mrb[0].mxu0 %v2539
    %v2633 = vpop.f32.mrb[0].mxu0
    %v2634 = vadd.f32 0.0, %v2633
    %v2635 = vpop.f32.mrb[0].mxu0
    %2636 = vmatprep.mubr.f32.mxu0 0.0
    %2637 = vmatmul.mubr.f32.gmra.mrb[0].mxu0 %v2541
    %v2638 = vpop.f32.mrb[0].mxu0
    %v2639 = vadd.f32 0.0, %v2638
    %v2640 = vpop.f32.mrb[0].mxu0
    %2641 = vmatprep.mubr.f32.mxu0 0.0
    %2642 = vmatmul.mubr.f32.gmra.mrb[0].mxu0 %v2543
    %v2643 = vpop.f32.mrb[0].mxu0
    %v2644 = vadd.f32 0.0, %v2643
    %v2645 = vpop.f32.mrb[0].mxu0
    %2646 = vmatprep.mubr.f32.mxu0 0.0
    %2647 = vmatmul.mubr.f32.gmra.mrb[0].mxu0 %v2545
    %v2648 = vpop.f32.mrb[0].mxu0
    %v2649 = vadd.f32 0.0, %v2648
    %v2650 = vpop.f32.mrb[0].mxu0
    %2651 = vdwg.mxu0
    %2652 = vst [vmem:[#allocation5] sm:$0xff] %v2614
    %2653 = vst [vmem:[#allocation5 + $0x8] sm:$0xff] %v2619
    %2654 = vst [vmem:[#allocation5 + $0x10] sm:$0xff] %v2624
    %2655 = vst [vmem:[#allocation5 + $0x18] sm:$0xff] %v2629
    %2656 = vst [vmem:[#allocation5 + $0x20] sm:$0xff] %v2634
    %2657 = vst [vmem:[#allocation5 + $0x28] sm:$0xff] %v2639
    %2658 = vst [vmem:[#allocation5 + $0x30] sm:$0xff] %v2644
    %2659 = vst [vmem:[#allocation5 + $0x38] sm:$0xff] %v2649
    %v2660 = vld [vmem:[#allocation11] sm:$0x1]
    %v2661 = vld [vmem:[%s11] sm:$0xff]
    %s2662 = scalar_lea.vmem [#allocation5], 56
    %v2663 = vld [vmem:[%s2662] sm:$0xff]
    %v2664 = vadd.f32 %v2661, %v2663
    %v2666 = vlaneseq
    %v2667 = vshrl.u32 %v2666, 7
    %v2668 = vsub.s32 0, %v2667
    %v2669 = vrot.slane %v2660, %v2668
    %v2671 = vadd.f32 %v2664, %v2669
    %v2672 = vmul.f32 %v2671, 0.5
    %v2673 = vtanh.pop %v2672
    %v2674 = vmul.f32 %v2673, 0.5
    %v2675 = vadd.f32 %v2674, 0.5
    %2676 = vst [vmem:[%s11] sm:$0xff] %v2675
    %s2677 = scalar_lea.vmem %s11, 8
    %v2678 = vld [vmem:[%s2677] sm:$0xff]
    %s2679 = scalar_lea.vmem [#allocation5], 48
    %v2680 = vld [vmem:[%s2679] sm:$0xff]
    %v2681 = vadd.f32 %v2678, %v2680
    %v2682 = vadd.f32 %v2681, %v2669
    %v2683 = vmul.f32 %v2682, 0.5
    %v2684 = vtanh.pop %v2683
    %v2685 = vmul.f32 %v2684, 0.5
    %v2686 = vadd.f32 %v2685, 0.5
    %2687 = vst [vmem:[%s2677] sm:$0xff] %v2686
    %s2688 = scalar_lea.vmem %s11, 16
    %v2689 = vld [vmem:[%s2688] sm:$0xff]
    %s2690 = scalar_lea.vmem [#allocation5], 40
    %v2691 = vld [vmem:[%s2690] sm:$0xff]
    %v2692 = vadd.f32 %v2689, %v2691
    %v2693 = vadd.f32 %v2692, %v2669
    %v2694 = vmul.f32 %v2693, 0.5
    %v2695 = vtanh.pop %v2694
    %v2696 = vmul.f32 %v2695, 0.5
    %v2697 = vadd.f32 %v2696, 0.5
    %2698 = vst [vmem:[%s2688] sm:$0xff] %v2697
    %s2699 = scalar_lea.vmem %s11, 24
    %v2700 = vld [vmem:[%s2699] sm:$0xff]
    %s2701 = scalar_lea.vmem [#allocation5], 32
    %v2702 = vld [vmem:[%s2701] sm:$0xff]
    %v2703 = vadd.f32 %v2700, %v2702
    %v2704 = vadd.f32 %v2703, %v2669
    %v2705 = vmul.f32 %v2704, 0.5
    %v2706 = vtanh.pop %v2705
    %v2707 = vmul.f32 %v2706, 0.5
    %v2708 = vadd.f32 %v2707, 0.5
    %2709 = vst [vmem:[%s2699] sm:$0xff] %v2708
    %s2710 = scalar_lea.vmem %s11, 32
    %v2711 = vld [vmem:[%s2710] sm:$0xff]
    %s2712 = scalar_lea.vmem [#allocation5], 24
    %v2713 = vld [vmem:[%s2712] sm:$0xff]
    %v2714 = vadd.f32 %v2711, %v2713
    %v2715 = vadd.f32 %v2714, %v2669
    %v2716 = vmul.f32 %v2715, 0.5
    %v2717 = vtanh.pop %v2716
    %v2718 = vmul.f32 %v2717, 0.5
    %v2719 = vadd.f32 %v2718, 0.5
    %2720 = vst [vmem:[%s2710] sm:$0xff] %v2719
    %s2721 = scalar_lea.vmem %s11, 40
    %v2722 = vld [vmem:[%s2721] sm:$0xff]
    %s2723 = scalar_lea.vmem [#allocation5], 16
    %v2724 = vld [vmem:[%s2723] sm:$0xff]
    %v2725 = vadd.f32 %v2722, %v2724
    %v2726 = vadd.f32 %v2725, %v2669
    %v2727 = vmul.f32 %v2726, 0.5
    %v2728 = vtanh.pop %v2727
    %v2729 = vmul.f32 %v2728, 0.5
    %v2730 = vadd.f32 %v2729, 0.5
    %2731 = vst [vmem:[%s2721] sm:$0xff] %v2730
    %s2732 = scalar_lea.vmem %s11, 48
    %v2733 = vld [vmem:[%s2732] sm:$0xff]
    %s2734 = scalar_lea.vmem [#allocation5], 8
    %v2735 = vld [vmem:[%s2734] sm:$0xff]
    %v2736 = vadd.f32 %v2733, %v2735
    %v2737 = vadd.f32 %v2736, %v2669
    %v2738 = vmul.f32 %v2737, 0.5
    %v2739 = vtanh.pop %v2738
    %v2740 = vmul.f32 %v2739, 0.5
    %v2741 = vadd.f32 %v2740, 0.5
    %2742 = vst [vmem:[%s2732] sm:$0xff] %v2741
    %s2743 = scalar_lea.vmem %s11, 56
    %v2744 = vld [vmem:[%s2743] sm:$0xff]
    %v2745 = vld [vmem:[#allocation5] sm:$0xff]
    %v2746 = vadd.f32 %v2744, %v2745
    %v2747 = vadd.f32 %v2746, %v2669
    %v2748 = vmul.f32 %v2747, 0.5
    %v2749 = vtanh.pop %v2748
    %v2750 = vmul.f32 %v2749, 0.5
    %v2751 = vadd.f32 %v2750, 0.5
    %2752 = vst [vmem:[%s2743] sm:$0xff] %v2751
    // Predicated region
    $region62: #{rnn_model_forward.1} parent=1 // pred_check
      _
    $region63: #{rnn_model_forward.1} parent=1 // pred_check_branch
      %2754 = sbr.rel (0) target = $region65
    $region64: #{rnn_model_forward.1} parent=1 // pred_region
      _
    $region65: #{rnn_model_forward.1} parent=1 // pred_fallthru
      _
    // Predicated region
    $region66: #{rnn_model_forward.1} parent=1 // pred_check
      _
    $region67: #{rnn_model_forward.1} parent=1 // pred_check_branch
      %2756 = sbr.rel (0) target = $region69
    $region68: #{rnn_model_forward.1} parent=1 // pred_region
      _
    $region69: #{rnn_model_forward.1} parent=1 // pred_fallthru
      _
    %2757 = vsyncpa [#allocation7], 1
    %2758 = vsyncpa [#allocation9], 1
    %2759 = vsyncpa [#allocation12], 1

</llo_original>
